<compile_context>
chip_gen: v5e
topology: v5e:2x2
jax: 0.10.0
libtpu: 0.0.40
codegen_flags: <defaults>
</compile_context>

<pallas_src>
import jax
import jax.numpy as jnp
from jax.experimental import pallas as pl
from jax.experimental.pallas import tpu as pltpu

# ----------------------------- model config (small) --------------------------
NUM_CLASSES = 0          # head = identity (Arcface not defined in the module)
INPUT_RES = 16
PATCH_SIZE = 4
WIDTH = 32
LAYERS = 2
HEADS = 4
OUTPUT_DIM = 32
EMBED_DIM = 64
LN_EPS = 1e-5

S_REAL = (INPUT_RES // PATCH_SIZE) ** 2 + 1      # 17 tokens (cls + 16 patches)
S_PAD = ((S_REAL + 7) // 8) * 8                  # 24 (8-aligned sequence)
CIN = 3 * PATCH_SIZE * PATCH_SIZE                # 48 (im2col width)

MATMUL_DTYPE = jnp.bfloat16   # MXU operand dtype; jnp.float32 for exact parity


def _round8(n):
    return ((n + 7) // 8) * 8


# ------------------------------ parameter packing -----------------------------
def pack_params(params, bpb):
    """Pack every weight into one (R, 128) f32 buffer (8-row-aligned segments).

    Returns (packed_array, offsets) where offsets[name] = (row_start, rows, cols).
    Done ONCE outside the jitted per-call path.
    """
    W = WIDTH
    dh = W // HEADS
    qscale = float(dh) ** -0.5

    segs = []
    segs.append(("conv1_w", params["conv1_w"]))                        # (CIN, W)

    # positional embedding with class_embedding folded into row 0, padded to
    # S_PAD rows (pad rows are zero) and tiled once per image in the block.
    pos = params["positional_embedding"].at[0].add(params["class_embedding"])
    pos = jnp.pad(pos, ((0, S_PAD - S_REAL), (0, 0)))
    segs.append(("pos", jnp.tile(pos, (bpb, 1))))                      # (bpb*S_PAD, W)

    # small vectors: one per row of a (4 + 10*L, 128) block
    rows = [params["ln_pre_g"], params["ln_pre_b"],
            params["ln_post_g"], params["ln_post_b"]]
    for l in range(LAYERS):
        in_b = params["in_b"][l]                                       # (3W,)
        rows += [params["ln1_g"][l], params["ln1_b"][l],
                 in_b[:W] * qscale, in_b[W:2 * W], in_b[2 * W:],
                 params["out_b"][l],
                 params["ln2_g"][l], params["ln2_b"][l],
                 params["fc_b"][l], params["cproj_b"][l]]
    vec = jnp.stack([jnp.pad(jnp.reshape(r, (-1,)), (0, 128 - r.size)) for r in rows])
    segs.append(("vecs", vec))                                         # (24, 128)

    for l in range(LAYERS):
        in_w = params["in_w"][l]                                       # (W, 3W), (in, out)
        segs += [(f"wq{l}", in_w[:, :W] * qscale),                     # q scale folded in
                 (f"wk{l}", in_w[:, W:2 * W]),
                 (f"wv{l}", in_w[:, 2 * W:]),
                 (f"wo{l}", params["out_w"][l]),
                 (f"fcw{l}", params["fc_w"][l]),
                 (f"cprojw{l}", params["cproj_w"][l])]
    segs += [("proj", params["proj"]), ("embed", params["embed_w"])]

    offs, blocks, r = {}, [], 0
    for name, a in segs:
        a = jnp.asarray(a, jnp.float32)
        nr, nc = a.shape
        nr_p = _round8(nr)
        offs[name] = (r, nr, nc)
        blocks.append(jnp.pad(a, ((0, nr_p - nr), (0, 128 - nc))))
        r += nr_p
    packed = jnp.concatenate(blocks, axis=0)                           # (R, 128)
    return packed, offs


# ------------------------------ fused Pallas kernel ----------------------------
def make_kernel(bpb, offs):
    E = WIDTH
    H = HEADS
    Dh = E // H
    T = bpb * S_PAD          # rows of the activation slab in one grid step
    HS = H * S_PAD           # head-stacked rows per image

    def seg(w_ref, name):
        r, nr, nc = offs[name]
        return w_ref[r:r + nr, :nc]

    def vrow(w_ref, idx, width=E):
        r0 = offs["vecs"][0]
        return w_ref[r0 + idx:r0 + idx + 1, :width]                    # (1, width)

    def mm(a, b):
        return jnp.dot(a.astype(MATMUL_DTYPE), b.astype(MATMUL_DTYPE),
                       preferred_element_type=jnp.float32)

    def mm_nt(a, b):   # contract last dims of both (no explicit transpose)
        return jax.lax.dot_general(a.astype(MATMUL_DTYPE), b.astype(MATMUL_DTYPE),
                                   (((1,), (1,)), ((), ())),
                                   preferred_element_type=jnp.float32)

    def ln(x, g, b):   # f32 elementwise math everywhere (v5e-safe)
        mu = jnp.mean(x, axis=-1, keepdims=True)
        xc = x - mu
        var = jnp.mean(xc * xc, axis=-1, keepdims=True)
        return xc * jax.lax.rsqrt(var + LN_EPS) * g + b

    def kernel(patches_ref, w_ref, o_ref):
        # ---- constants built once from 2-D iotas (no int div/rem needed) ----
        c_pos = jax.lax.broadcasted_iota(jnp.int32, (1, E), 1)
        colmask = [jnp.where((c_pos >= hd * Dh) & (c_pos < (hd + 1) * Dh),
                             1.0, 0.0).astype(jnp.float32) for hd in range(H)]
        j_pos = jax.lax.broadcasted_iota(jnp.int32, (HS, S_PAD), 1)
        amask = jnp.where(j_pos < S_REAL, 0.0, -1e30).astype(jnp.float32)

        # ---- patch embedding + positional (cls folded into pos row 0) -------
        x = mm(patches_ref[0], seg(w_ref, "conv1_w")) + seg(w_ref, "pos")   # (T, E)
        x = ln(x, vrow(w_ref, 0), vrow(w_ref, 1))                            # ln_pre

        # ---- transformer layers ---------------------------------------------
        for l in range(LAYERS):
            vb = 4 + 10 * l
            # attention branch: x + out_proj(MHA(ln_1(x)))
            h = ln(x, vrow(w_ref, vb + 0), vrow(w_ref, vb + 1))
            q = mm(h, seg(w_ref, f"wq{l}")) + vrow(w_ref, vb + 2)   # scaled q
            k = mm(h, seg(w_ref, f"wk{l}")) + vrow(w_ref, vb + 3)
            v = mm(h, seg(w_ref, f"wv{l}")) + vrow(w_ref, vb + 4)

            attn_rows = []
            for img in range(bpb):
                sl = slice(img * S_PAD, (img + 1) * S_PAD)
                q_i, k_i, v_i = q[sl, :], k[sl, :], v[sl, :]         # 8-aligned
                # head-stacked q: row block hd keeps only head hd's columns,
                # so ONE NT matmul yields all heads' scores (no lane slicing).
                qb = jnp.concatenate([q_i * cm for cm in colmask], axis=0)  # (HS, E)
                s = mm_nt(qb, k_i) + amask                                   # (HS, S_PAD)
                m = jnp.max(s, axis=-1, keepdims=True)
                p = jnp.exp(s - m)
                p = p / jnp.sum(p, axis=-1, keepdims=True)                   # exact
                ost = mm(p, v_i)                                             # (HS, E)
                # merge heads: keep head hd's feature columns from row block hd
                a_i = ost[0:S_PAD, :] * colmask[0]
                for hd in range(1, H):
                    a_i = a_i + ost[hd * S_PAD:(hd + 1) * S_PAD, :] * colmask[hd]
                attn_rows.append(a_i)
            attn = attn_rows[0] if bpb == 1 else jnp.concatenate(attn_rows, axis=0)
            x = x + mm(attn, seg(w_ref, f"wo{l}")) + vrow(w_ref, vb + 5)

            # MLP branch: x + c_proj(QuickGELU(c_fc(ln_2(x))))
            h = ln(x, vrow(w_ref, vb + 6), vrow(w_ref, vb + 7))
            fc = mm(h, seg(w_ref, f"fcw{l}")) + vrow(w_ref, vb + 8, 4 * E)
            fc = fc * jax.nn.sigmoid(1.702 * fc)                             # QuickGELU
            x = x + mm(fc, seg(w_ref, f"cprojw{l}")) + vrow(w_ref, vb + 9)

        # ---- head: ln_post on CLS rows, proj, embed ---------------------------
        cls_rows = [x[i * S_PAD:i * S_PAD + 1, :] for i in range(bpb)]
        cls = cls_rows[0] if bpb == 1 else jnp.concatenate(cls_rows, axis=0)  # (bpb, E)
        cls = ln(cls, vrow(w_ref, 2), vrow(w_ref, 3))
        feat = mm(cls, seg(w_ref, "proj"))
        out = mm(feat, seg(w_ref, "embed"))
        # TODO(synk): Arcface head is not defined in the reference module; with
        # num_classes == 0 the head is nn.Identity(), which is what we apply.
        o_ref[0] = out

    return kernel


# ------------------------------ forward builder --------------------------------
def _num_tensorcores():
    """2 parallel blocks only on v7x (2 TC/chip); 1 on single-TC v5e/v6e."""
    try:
        kind = jax.devices()[0].device_kind.lower()
    except Exception:
        return 1
    return 2 if ("v7" in kind or "tpu7" in kind) else 1


def build_forward(params, batch_size):
    nblk = _num_tensorcores()
    if batch_size % nblk != 0 or nblk > batch_size:
        nblk = 1
    bpb = batch_size // nblk
    T = bpb * S_PAD

    packed, offs = pack_params(params, bpb)        # once, outside per-call path
    kernel = make_kernel(bpb, offs)
    w_shape = packed.shape

    @jax.jit
    def forward(x, w):
        """x: (B, 3, H, W) float32 NCHW -> (B, 64)."""
        B = batch_size
        ps = PATCH_SIZE
        hp, wp = x.shape[2] // ps, x.shape[3] // ps
        npatch = hp * wp
        # conv1 (stride == kernel) lowered to im2col; row 0 = zero cls patch,
        # rows [S_REAL, S_PAD) = zero sequence padding.
        patches = x.reshape(B, 3, hp, ps, wp, ps).transpose(0, 2, 4, 1, 3, 5)
        patches = patches.reshape(B, npatch, CIN).astype(jnp.float32)
        patches = jnp.pad(patches, ((0, 0), (1, S_PAD - 1 - npatch), (0, 0)))
        patches = patches.reshape(nblk, T, CIN)

        out = pl.pallas_call(
            kernel,
            out_shape=jax.ShapeDtypeStruct((nblk, bpb, EMBED_DIM), jnp.float32),
            grid=(nblk,),
            in_specs=[
                pl.BlockSpec((1, T, CIN), lambda b: (b, 0, 0)),   # per-block patches
                pl.BlockSpec(w_shape, lambda b: (0, 0)),          # packed weights
            ],
            out_specs=pl.BlockSpec((1, bpb, EMBED_DIM), lambda b: (b, 0, 0)),
            compiler_params=pltpu.CompilerParams(
                dimension_semantics=("parallel",)),
        )(patches, w)
        return out.reshape(B, EMBED_DIM)

    return forward, packed


# ------------------------------ parameter init --------------------------------
def init_params(key):
    scale = WIDTH ** -0.5
    w_std = 0.02
    L, W = LAYERS, WIDTH
    ks = iter(jax.random.split(key, 12))

    def nrm(shape, std):
        return std * jax.random.normal(next(ks), shape, dtype=jnp.float32)

    return {
        # conv weight pre-flattened as (3*ps*ps, width), (c, kh, kw) row order
        "conv1_w": nrm((CIN, W), w_std),
        "class_embedding": nrm((W,), scale),
        "positional_embedding": nrm((S_REAL, W), scale),
        "ln_pre_g": jnp.ones((W,), jnp.float32),
        "ln_pre_b": jnp.zeros((W,), jnp.float32),
        "ln_post_g": jnp.ones((W,), jnp.float32),
        "ln_post_b": jnp.zeros((W,), jnp.float32),
        "proj": nrm((W, OUTPUT_DIM), scale),
        # nn.Linear(output_dim, 64, bias=False); stored as (in, out)
        "embed_w": nrm((OUTPUT_DIM, EMBED_DIM), w_std),
        # per-layer weights stacked along a leading LAYERS axis
        "ln1_g": jnp.ones((L, W), jnp.float32),
        "ln1_b": jnp.zeros((L, W), jnp.float32),
        "ln2_g": jnp.ones((L, W), jnp.float32),
        "ln2_b": jnp.zeros((L, W), jnp.float32),
        # MultiheadAttention in_proj / out_proj, stored as (in, out)
        "in_w": nrm((L, W, 3 * W), w_std),
        "in_b": jnp.zeros((L, 3 * W), jnp.float32),
        "out_w": nrm((L, W, W), w_std),
        "out_b": jnp.zeros((L, W), jnp.float32),
        # MLP: c_fc (W -> 4W), c_proj (4W -> W)
        "fc_w": nrm((L, W, 4 * W), w_std),
        "fc_b": jnp.zeros((L, 4 * W), jnp.float32),
        "cproj_w": nrm((L, 4 * W, W), w_std),
        "cproj_b": jnp.zeros((L, W), jnp.float32),
    }


# ----------------------------------- main --------------------------------------
if __name__ == "__main__":
    key = jax.random.PRNGKey(0)
    k_x, k_p = jax.random.split(key)
    x = jax.random.normal(k_x, (2, 3, INPUT_RES, INPUT_RES), dtype=jnp.float32)
    params = init_params(k_p)

    fwd, packed_w = build_forward(params, batch_size=2)
    out = jax.block_until_ready(fwd(x, packed_w))

    assert out.shape == (2, EMBED_DIM), out.shape
    assert bool(jnp.all(jnp.isfinite(out)))
    print("KERNEL_OK")
</pallas_src>

<mosaic_0001>
module attributes {stable_mosaic.version = 11 : i64} {
  func.func @kernel(%arg0: i32, %arg1: memref<1x48x48xf32, #tpu.memory_space<vmem>>, %arg2: memref<760x128xf32, #tpu.memory_space<vmem>>, %arg3: memref<1x2x64xf32, #tpu.memory_space<vmem>>) attributes {dimension_semantics = [#tpu.dimension_semantics<parallel>], iteration_bounds = array<i64: 1>, scalar_prefetch = 0 : i64, scratch_operands = 0 : i64, tpu.core_type = #tpu.core_type<tc>, window_params = [{transform_indices = @transform_0, window_bounds = array<i64: 1, 48, 48>}, {pipeline_mode = #tpu.pipeline_mode<synchronous>, transform_indices = @transform_1, window_bounds = array<i64: 760, 128>}, {transform_indices = @transform_2, window_bounds = array<i64: 1, 2, 64>}]} {
    %0 = tpu.iota {dimensions = array<i32: 1>} : vector<1x32xi32>
    %c0_i32 = arith.constant 0 : i32
    %1 = vector.broadcast %c0_i32 : i32 to vector<1x32xi32>
    %2 = arith.cmpi sge, %0, %1 : vector<1x32xi32>
    %c8_i32 = arith.constant 8 : i32
    %3 = vector.broadcast %c8_i32 : i32 to vector<1x32xi32>
    %4 = arith.cmpi slt, %0, %3 : vector<1x32xi32>
    %5 = arith.andi %2, %4 : vector<1x32xi1>
    %cst = arith.constant 1.000000e+00 : f32
    %cst_0 = arith.constant 0.000000e+00 : f32
    %6 = vector.broadcast %cst : f32 to vector<1x32xf32>
    %7 = vector.broadcast %cst_0 : f32 to vector<1x32xf32>
    %8 = arith.select %5, %6, %7 : vector<1x32xi1>, vector<1x32xf32>
    %c8_i32_1 = arith.constant 8 : i32
    %9 = vector.broadcast %c8_i32_1 : i32 to vector<1x32xi32>
    %10 = arith.cmpi sge, %0, %9 : vector<1x32xi32>
    %c16_i32 = arith.constant 16 : i32
    %11 = vector.broadcast %c16_i32 : i32 to vector<1x32xi32>
    %12 = arith.cmpi slt, %0, %11 : vector<1x32xi32>
    %13 = arith.andi %10, %12 : vector<1x32xi1>
    %cst_2 = arith.constant 1.000000e+00 : f32
    %cst_3 = arith.constant 0.000000e+00 : f32
    %14 = vector.broadcast %cst_2 : f32 to vector<1x32xf32>
    %15 = vector.broadcast %cst_3 : f32 to vector<1x32xf32>
    %16 = arith.select %13, %14, %15 : vector<1x32xi1>, vector<1x32xf32>
    %c16_i32_4 = arith.constant 16 : i32
    %17 = vector.broadcast %c16_i32_4 : i32 to vector<1x32xi32>
    %18 = arith.cmpi sge, %0, %17 : vector<1x32xi32>
    %c24_i32 = arith.constant 24 : i32
    %19 = vector.broadcast %c24_i32 : i32 to vector<1x32xi32>
    %20 = arith.cmpi slt, %0, %19 : vector<1x32xi32>
    %21 = arith.andi %18, %20 : vector<1x32xi1>
    %cst_5 = arith.constant 1.000000e+00 : f32
    %cst_6 = arith.constant 0.000000e+00 : f32
    %22 = vector.broadcast %cst_5 : f32 to vector<1x32xf32>
    %23 = vector.broadcast %cst_6 : f32 to vector<1x32xf32>
    %24 = arith.select %21, %22, %23 : vector<1x32xi1>, vector<1x32xf32>
    %c24_i32_7 = arith.constant 24 : i32
    %25 = vector.broadcast %c24_i32_7 : i32 to vector<1x32xi32>
    %26 = arith.cmpi sge, %0, %25 : vector<1x32xi32>
    %c32_i32 = arith.constant 32 : i32
    %27 = vector.broadcast %c32_i32 : i32 to vector<1x32xi32>
    %28 = arith.cmpi slt, %0, %27 : vector<1x32xi32>
    %29 = arith.andi %26, %28 : vector<1x32xi1>
    %cst_8 = arith.constant 1.000000e+00 : f32
    %cst_9 = arith.constant 0.000000e+00 : f32
    %30 = vector.broadcast %cst_8 : f32 to vector<1x32xf32>
    %31 = vector.broadcast %cst_9 : f32 to vector<1x32xf32>
    %32 = arith.select %29, %30, %31 : vector<1x32xi1>, vector<1x32xf32>
    %33 = tpu.iota {dimensions = array<i32: 1>} : vector<96x24xi32>
    %c17_i32 = arith.constant 17 : i32
    %34 = vector.broadcast %c17_i32 : i32 to vector<96x24xi32>
    %35 = arith.cmpi slt, %33, %34 : vector<96x24xi32>
    %cst_10 = arith.constant 0.000000e+00 : f32
    %cst_11 = arith.constant -1.000000e+30 : f32
    %36 = vector.broadcast %cst_10 : f32 to vector<96x24xf32>
    %37 = vector.broadcast %cst_11 : f32 to vector<96x24xf32>
    %38 = arith.select %35, %36, %37 : vector<96x24xi1>, vector<96x24xf32>
    %c0 = arith.constant 0 : index
    %c0_12 = arith.constant 0 : index
    %c0_13 = arith.constant 0 : index
    %39 = vector.load %arg1[%c0, %c0_12, %c0_13] : memref<1x48x48xf32, #tpu.memory_space<vmem>>, vector<1x48x48xf32>
    %40 = vector.shape_cast %39 : vector<1x48x48xf32> to vector<48x48xf32>
    %c0_14 = arith.constant 0 : index
    %c0_15 = arith.constant 0 : index
    %41 = vector.load %arg2[%c0_14, %c0_15] : memref<760x128xf32, #tpu.memory_space<vmem>>, vector<48x32xf32>
    %42 = arith.truncf %40 : vector<48x48xf32> to vector<48x48xbf16>
    %43 = arith.truncf %41 : vector<48x32xf32> to vector<48x32xbf16>
    %cst_16 = arith.constant dense<0.000000e+00> : vector<48x32xf32>
    %44 = tpu.matmul %42, %43, %cst_16 {dimension_numbers = #tpu.dot_dimension_numbers<[1], [0], [0], [1], [0, 0, 1, 1], [], []>} : vector<48x48xbf16>, vector<48x32xbf16>, vector<48x32xf32> -> vector<48x32xf32>
    %c48 = arith.constant 48 : index
    %c0_17 = arith.constant 0 : index
    %45 = vector.load %arg2[%c48, %c0_17] : memref<760x128xf32, #tpu.memory_space<vmem>>, vector<48x32xf32>
    %46 = arith.addf %44, %45 : vector<48x32xf32>
    %c96 = arith.constant 96 : index
    %c0_18 = arith.constant 0 : index
    %47 = vector.load %arg2[%c96, %c0_18] : memref<760x128xf32, #tpu.memory_space<vmem>>, vector<1x32xf32>
    %c97 = arith.constant 97 : index
    %c0_19 = arith.constant 0 : index
    %48 = vector.load %arg2[%c97, %c0_19] : memref<760x128xf32, #tpu.memory_space<vmem>>, vector<1x32xf32>
    %cst_20 = arith.constant dense<0.000000e+00> : vector<48xf32>
    %49 = vector.multi_reduction <add>, %46, %cst_20 [1] : vector<48x32xf32> to vector<48xf32>
    %50 = vector.shape_cast %49 : vector<48xf32> to vector<48x1xf32>
    %cst_21 = arith.constant 3.200000e+01 : f32
    %51 = vector.broadcast %cst_21 : f32 to vector<48x1xf32>
    %52 = arith.divf %50, %51 : vector<48x1xf32>
    %53 = vector.broadcast %52 : vector<48x1xf32> to vector<48x32xf32>
    %54 = arith.subf %46, %53 : vector<48x32xf32>
    %55 = arith.mulf %54, %54 : vector<48x32xf32>
    %cst_22 = arith.constant dense<0.000000e+00> : vector<48xf32>
    %56 = vector.multi_reduction <add>, %55, %cst_22 [1] : vector<48x32xf32> to vector<48xf32>
    %57 = vector.shape_cast %56 : vector<48xf32> to vector<48x1xf32>
    %cst_23 = arith.constant 3.200000e+01 : f32
    %58 = vector.broadcast %cst_23 : f32 to vector<48x1xf32>
    %59 = arith.divf %57, %58 : vector<48x1xf32>
    %cst_24 = arith.constant 9.99999974E-6 : f32
    %60 = vector.broadcast %cst_24 : f32 to vector<48x1xf32>
    %61 = arith.addf %59, %60 : vector<48x1xf32>
    %62 = math.rsqrt %61 : vector<48x1xf32>
    %63 = vector.broadcast %62 : vector<48x1xf32> to vector<48x32xf32>
    %64 = arith.mulf %54, %63 : vector<48x32xf32>
    %65 = vector.broadcast %47 : vector<1x32xf32> to vector<48x32xf32>
    %66 = arith.mulf %64, %65 : vector<48x32xf32>
    %67 = vector.broadcast %48 : vector<1x32xf32> to vector<48x32xf32>
    %68 = arith.addf %66, %67 : vector<48x32xf32>
    %c100 = arith.constant 100 : index
    %c0_25 = arith.constant 0 : index
    %69 = vector.load %arg2[%c100, %c0_25] : memref<760x128xf32, #tpu.memory_space<vmem>>, vector<1x32xf32>
    %c101 = arith.constant 101 : index
    %c0_26 = arith.constant 0 : index
    %70 = vector.load %arg2[%c101, %c0_26] : memref<760x128xf32, #tpu.memory_space<vmem>>, vector<1x32xf32>
    %cst_27 = arith.constant dense<0.000000e+00> : vector<48xf32>
    %71 = vector.multi_reduction <add>, %68, %cst_27 [1] : vector<48x32xf32> to vector<48xf32>
    %72 = vector.shape_cast %71 : vector<48xf32> to vector<48x1xf32>
    %cst_28 = arith.constant 3.200000e+01 : f32
    %73 = vector.broadcast %cst_28 : f32 to vector<48x1xf32>
    %74 = arith.divf %72, %73 : vector<48x1xf32>
    %75 = vector.broadcast %74 : vector<48x1xf32> to vector<48x32xf32>
    %76 = arith.subf %68, %75 : vector<48x32xf32>
    %77 = arith.mulf %76, %76 : vector<48x32xf32>
    %cst_29 = arith.constant dense<0.000000e+00> : vector<48xf32>
    %78 = vector.multi_reduction <add>, %77, %cst_29 [1] : vector<48x32xf32> to vector<48xf32>
    %79 = vector.shape_cast %78 : vector<48xf32> to vector<48x1xf32>
    %cst_30 = arith.constant 3.200000e+01 : f32
    %80 = vector.broadcast %cst_30 : f32 to vector<48x1xf32>
    %81 = arith.divf %79, %80 : vector<48x1xf32>
    %cst_31 = arith.constant 9.99999974E-6 : f32
    %82 = vector.broadcast %cst_31 : f32 to vector<48x1xf32>
    %83 = arith.addf %81, %82 : vector<48x1xf32>
    %84 = math.rsqrt %83 : vector<48x1xf32>
    %85 = vector.broadcast %84 : vector<48x1xf32> to vector<48x32xf32>
    %86 = arith.mulf %76, %85 : vector<48x32xf32>
    %87 = vector.broadcast %69 : vector<1x32xf32> to vector<48x32xf32>
    %88 = arith.mulf %86, %87 : vector<48x32xf32>
    %89 = vector.broadcast %70 : vector<1x32xf32> to vector<48x32xf32>
    %90 = arith.addf %88, %89 : vector<48x32xf32>
    %c120 = arith.constant 120 : index
    %c0_32 = arith.constant 0 : index
    %91 = vector.load %arg2[%c120, %c0_32] : memref<760x128xf32, #tpu.memory_space<vmem>>, vector<32x32xf32>
    %92 = arith.truncf %90 : vector<48x32xf32> to vector<48x32xbf16>
    %93 = arith.truncf %91 : vector<32x32xf32> to vector<32x32xbf16>
    %cst_33 = arith.constant dense<0.000000e+00> : vector<48x32xf32>
    %94 = tpu.matmul %92, %93, %cst_33 {dimension_numbers = #tpu.dot_dimension_numbers<[1], [0], [0], [1], [0, 0, 1, 1], [], []>} : vector<48x32xbf16>, vector<32x32xbf16>, vector<48x32xf32> -> vector<48x32xf32>
    %c102 = arith.constant 102 : index
    %c0_34 = arith.constant 0 : index
    %95 = vector.load %arg2[%c102, %c0_34] : memref<760x128xf32, #tpu.memory_space<vmem>>, vector<1x32xf32>
    %96 = vector.broadcast %95 : vector<1x32xf32> to vector<48x32xf32>
    %97 = arith.addf %94, %96 : vector<48x32xf32>
    %c152 = arith.constant 152 : index
    %c0_35 = arith.constant 0 : index
    %98 = vector.load %arg2[%c152, %c0_35] : memref<760x128xf32, #tpu.memory_space<vmem>>, vector<32x32xf32>
    %99 = arith.truncf %90 : vector<48x32xf32> to vector<48x32xbf16>
    %100 = arith.truncf %98 : vector<32x32xf32> to vector<32x32xbf16>
    %cst_36 = arith.constant dense<0.000000e+00> : vector<48x32xf32>
    %101 = tpu.matmul %99, %100, %cst_36 {dimension_numbers = #tpu.dot_dimension_numbers<[1], [0], [0], [1], [0, 0, 1, 1], [], []>} : vector<48x32xbf16>, vector<32x32xbf16>, vector<48x32xf32> -> vector<48x32xf32>
    %c103 = arith.constant 103 : index
    %c0_37 = arith.constant 0 : index
    %102 = vector.load %arg2[%c103, %c0_37] : memref<760x128xf32, #tpu.memory_space<vmem>>, vector<1x32xf32>
    %103 = vector.broadcast %102 : vector<1x32xf32> to vector<48x32xf32>
    %104 = arith.addf %101, %103 : vector<48x32xf32>
    %c184 = arith.constant 184 : index
    %c0_38 = arith.constant 0 : index
    %105 = vector.load %arg2[%c184, %c0_38] : memref<760x128xf32, #tpu.memory_space<vmem>>, vector<32x32xf32>
    %106 = arith.truncf %90 : vector<48x32xf32> to vector<48x32xbf16>
    %107 = arith.truncf %105 : vector<32x32xf32> to vector<32x32xbf16>
    %cst_39 = arith.constant dense<0.000000e+00> : vector<48x32xf32>
    %108 = tpu.matmul %106, %107, %cst_39 {dimension_numbers = #tpu.dot_dimension_numbers<[1], [0], [0], [1], [0, 0, 1, 1], [], []>} : vector<48x32xbf16>, vector<32x32xbf16>, vector<48x32xf32> -> vector<48x32xf32>
    %c104 = arith.constant 104 : index
    %c0_40 = arith.constant 0 : index
    %109 = vector.load %arg2[%c104, %c0_40] : memref<760x128xf32, #tpu.memory_space<vmem>>, vector<1x32xf32>
    %110 = vector.broadcast %109 : vector<1x32xf32> to vector<48x32xf32>
    %111 = arith.addf %108, %110 : vector<48x32xf32>
    %112 = vector.extract_strided_slice %97 {offsets = [0, 0], sizes = [24, 32], strides = [1, 1]} : vector<48x32xf32> to vector<24x32xf32>
    %113 = vector.extract_strided_slice %104 {offsets = [0, 0], sizes = [24, 32], strides = [1, 1]} : vector<48x32xf32> to vector<24x32xf32>
    %114 = vector.extract_strided_slice %111 {offsets = [0, 0], sizes = [24, 32], strides = [1, 1]} : vector<48x32xf32> to vector<24x32xf32>
    %115 = vector.broadcast %8 : vector<1x32xf32> to vector<24x32xf32>
    %116 = arith.mulf %112, %115 : vector<24x32xf32>
    %117 = vector.broadcast %16 : vector<1x32xf32> to vector<24x32xf32>
    %118 = arith.mulf %112, %117 : vector<24x32xf32>
    %119 = vector.broadcast %24 : vector<1x32xf32> to vector<24x32xf32>
    %120 = arith.mulf %112, %119 : vector<24x32xf32>
    %121 = vector.broadcast %32 : vector<1x32xf32> to vector<24x32xf32>
    %122 = arith.mulf %112, %121 : vector<24x32xf32>
    %123 = tpu.concatenate %116, %118, %120, %122 in 0 : vector<24x32xf32>, vector<24x32xf32>, vector<24x32xf32>, vector<24x32xf32> -> vector<96x32xf32>
    %124 = arith.truncf %123 : vector<96x32xf32> to vector<96x32xbf16>
    %125 = arith.truncf %113 : vector<24x32xf32> to vector<24x32xbf16>
    %cst_41 = arith.constant dense<0.000000e+00> : vector<96x24xf32>
    %126 = tpu.matmul %124, %125, %cst_41 {dimension_numbers = #tpu.dot_dimension_numbers<[1], [1], [0], [0], [0, 0, 1, 0], [], []>} : vector<96x32xbf16>, vector<24x32xbf16>, vector<96x24xf32> -> vector<96x24xf32>
    %127 = arith.addf %126, %38 : vector<96x24xf32>
    %cst_42 = arith.constant dense<0xFF800000> : vector<96xf32>
    %128 = vector.multi_reduction <maximumf>, %127, %cst_42 [1] : vector<96x24xf32> to vector<96xf32>
    %129 = vector.shape_cast %128 : vector<96xf32> to vector<96x1xf32>
    %130 = vector.broadcast %129 : vector<96x1xf32> to vector<96x24xf32>
    %131 = arith.subf %127, %130 : vector<96x24xf32>
    %132 = math.exp %131 : vector<96x24xf32>
    %cst_43 = arith.constant dense<0.000000e+00> : vector<96xf32>
    %133 = vector.multi_reduction <add>, %132, %cst_43 [1] : vector<96x24xf32> to vector<96xf32>
    %134 = vector.shape_cast %133 : vector<96xf32> to vector<96x1xf32>
    %135 = vector.broadcast %134 : vector<96x1xf32> to vector<96x24xf32>
    %136 = arith.divf %132, %135 : vector<96x24xf32>
    %137 = arith.truncf %136 : vector<96x24xf32> to vector<96x24xbf16>
    %138 = arith.truncf %114 : vector<24x32xf32> to vector<24x32xbf16>
    %cst_44 = arith.constant dense<0.000000e+00> : vector<96x32xf32>
    %139 = tpu.matmul %137, %138, %cst_44 {dimension_numbers = #tpu.dot_dimension_numbers<[1], [0], [0], [1], [0, 0, 1, 1], [], []>} : vector<96x24xbf16>, vector<24x32xbf16>, vector<96x32xf32> -> vector<96x32xf32>
    %140 = vector.extract_strided_slice %139 {offsets = [0, 0], sizes = [24, 32], strides = [1, 1]} : vector<96x32xf32> to vector<24x32xf32>
    %141 = vector.broadcast %8 : vector<1x32xf32> to vector<24x32xf32>
    %142 = arith.mulf %140, %141 : vector<24x32xf32>
    %143 = vector.extract_strided_slice %139 {offsets = [24, 0], sizes = [24, 32], strides = [1, 1]} : vector<96x32xf32> to vector<24x32xf32>
    %144 = vector.broadcast %16 : vector<1x32xf32> to vector<24x32xf32>
    %145 = arith.mulf %143, %144 : vector<24x32xf32>
    %146 = arith.addf %142, %145 : vector<24x32xf32>
    %147 = vector.extract_strided_slice %139 {offsets = [48, 0], sizes = [24, 32], strides = [1, 1]} : vector<96x32xf32> to vector<24x32xf32>
    %148 = vector.broadcast %24 : vector<1x32xf32> to vector<24x32xf32>
    %149 = arith.mulf %147, %148 : vector<24x32xf32>
    %150 = arith.addf %146, %149 : vector<24x32xf32>
    %151 = vector.extract_strided_slice %139 {offsets = [72, 0], sizes = [24, 32], strides = [1, 1]} : vector<96x32xf32> to vector<24x32xf32>
    %152 = vector.broadcast %32 : vector<1x32xf32> to vector<24x32xf32>
    %153 = arith.mulf %151, %152 : vector<24x32xf32>
    %154 = arith.addf %150, %153 : vector<24x32xf32>
    %155 = vector.extract_strided_slice %97 {offsets = [24, 0], sizes = [24, 32], strides = [1, 1]} : vector<48x32xf32> to vector<24x32xf32>
    %156 = vector.extract_strided_slice %104 {offsets = [24, 0], sizes = [24, 32], strides = [1, 1]} : vector<48x32xf32> to vector<24x32xf32>
    %157 = vector.extract_strided_slice %111 {offsets = [24, 0], sizes = [24, 32], strides = [1, 1]} : vector<48x32xf32> to vector<24x32xf32>
    %158 = vector.broadcast %8 : vector<1x32xf32> to vector<24x32xf32>
    %159 = arith.mulf %155, %158 : vector<24x32xf32>
    %160 = vector.broadcast %16 : vector<1x32xf32> to vector<24x32xf32>
    %161 = arith.mulf %155, %160 : vector<24x32xf32>
    %162 = vector.broadcast %24 : vector<1x32xf32> to vector<24x32xf32>
    %163 = arith.mulf %155, %162 : vector<24x32xf32>
    %164 = vector.broadcast %32 : vector<1x32xf32> to vector<24x32xf32>
    %165 = arith.mulf %155, %164 : vector<24x32xf32>
    %166 = tpu.concatenate %159, %161, %163, %165 in 0 : vector<24x32xf32>, vector<24x32xf32>, vector<24x32xf32>, vector<24x32xf32> -> vector<96x32xf32>
    %167 = arith.truncf %166 : vector<96x32xf32> to vector<96x32xbf16>
    %168 = arith.truncf %156 : vector<24x32xf32> to vector<24x32xbf16>
    %cst_45 = arith.constant dense<0.000000e+00> : vector<96x24xf32>
    %169 = tpu.matmul %167, %168, %cst_45 {dimension_numbers = #tpu.dot_dimension_numbers<[1], [1], [0], [0], [0, 0, 1, 0], [], []>} : vector<96x32xbf16>, vector<24x32xbf16>, vector<96x24xf32> -> vector<96x24xf32>
    %170 = arith.addf %169, %38 : vector<96x24xf32>
    %cst_46 = arith.constant dense<0xFF800000> : vector<96xf32>
    %171 = vector.multi_reduction <maximumf>, %170, %cst_46 [1] : vector<96x24xf32> to vector<96xf32>
    %172 = vector.shape_cast %171 : vector<96xf32> to vector<96x1xf32>
    %173 = vector.broadcast %172 : vector<96x1xf32> to vector<96x24xf32>
    %174 = arith.subf %170, %173 : vector<96x24xf32>
    %175 = math.exp %174 : vector<96x24xf32>
    %cst_47 = arith.constant dense<0.000000e+00> : vector<96xf32>
    %176 = vector.multi_reduction <add>, %175, %cst_47 [1] : vector<96x24xf32> to vector<96xf32>
    %177 = vector.shape_cast %176 : vector<96xf32> to vector<96x1xf32>
    %178 = vector.broadcast %177 : vector<96x1xf32> to vector<96x24xf32>
    %179 = arith.divf %175, %178 : vector<96x24xf32>
    %180 = arith.truncf %179 : vector<96x24xf32> to vector<96x24xbf16>
    %181 = arith.truncf %157 : vector<24x32xf32> to vector<24x32xbf16>
    %cst_48 = arith.constant dense<0.000000e+00> : vector<96x32xf32>
    %182 = tpu.matmul %180, %181, %cst_48 {dimension_numbers = #tpu.dot_dimension_numbers<[1], [0], [0], [1], [0, 0, 1, 1], [], []>} : vector<96x24xbf16>, vector<24x32xbf16>, vector<96x32xf32> -> vector<96x32xf32>
    %183 = vector.extract_strided_slice %182 {offsets = [0, 0], sizes = [24, 32], strides = [1, 1]} : vector<96x32xf32> to vector<24x32xf32>
    %184 = vector.broadcast %8 : vector<1x32xf32> to vector<24x32xf32>
    %185 = arith.mulf %183, %184 : vector<24x32xf32>
    %186 = vector.extract_strided_slice %182 {offsets = [24, 0], sizes = [24, 32], strides = [1, 1]} : vector<96x32xf32> to vector<24x32xf32>
    %187 = vector.broadcast %16 : vector<1x32xf32> to vector<24x32xf32>
    %188 = arith.mulf %186, %187 : vector<24x32xf32>
    %189 = arith.addf %185, %188 : vector<24x32xf32>
    %190 = vector.extract_strided_slice %182 {offsets = [48, 0], sizes = [24, 32], strides = [1, 1]} : vector<96x32xf32> to vector<24x32xf32>
    %191 = vector.broadcast %24 : vector<1x32xf32> to vector<24x32xf32>
    %192 = arith.mulf %190, %191 : vector<24x32xf32>
    %193 = arith.addf %189, %192 : vector<24x32xf32>
    %194 = vector.extract_strided_slice %182 {offsets = [72, 0], sizes = [24, 32], strides = [1, 1]} : vector<96x32xf32> to vector<24x32xf32>
    %195 = vector.broadcast %32 : vector<1x32xf32> to vector<24x32xf32>
    %196 = arith.mulf %194, %195 : vector<24x32xf32>
    %197 = arith.addf %193, %196 : vector<24x32xf32>
    %198 = tpu.concatenate %154, %197 in 0 : vector<24x32xf32>, vector<24x32xf32> -> vector<48x32xf32>
    %c216 = arith.constant 216 : index
    %c0_49 = arith.constant 0 : index
    %199 = vector.load %arg2[%c216, %c0_49] : memref<760x128xf32, #tpu.memory_space<vmem>>, vector<32x32xf32>
    %200 = arith.truncf %198 : vector<48x32xf32> to vector<48x32xbf16>
    %201 = arith.truncf %199 : vector<32x32xf32> to vector<32x32xbf16>
    %cst_50 = arith.constant dense<0.000000e+00> : vector<48x32xf32>
    %202 = tpu.matmul %200, %201, %cst_50 {dimension_numbers = #tpu.dot_dimension_numbers<[1], [0], [0], [1], [0, 0, 1, 1], [], []>} : vector<48x32xbf16>, vector<32x32xbf16>, vector<48x32xf32> -> vector<48x32xf32>
    %203 = arith.addf %68, %202 : vector<48x32xf32>
    %c105 = arith.constant 105 : index
    %c0_51 = arith.constant 0 : index
    %204 = vector.load %arg2[%c105, %c0_51] : memref<760x128xf32, #tpu.memory_space<vmem>>, vector<1x32xf32>
    %205 = vector.broadcast %204 : vector<1x32xf32> to vector<48x32xf32>
    %206 = arith.addf %203, %205 : vector<48x32xf32>
    %c106 = arith.constant 106 : index
    %c0_52 = arith.constant 0 : index
    %207 = vector.load %arg2[%c106, %c0_52] : memref<760x128xf32, #tpu.memory_space<vmem>>, vector<1x32xf32>
    %c107 = arith.constant 107 : index
    %c0_53 = arith.constant 0 : index
    %208 = vector.load %arg2[%c107, %c0_53] : memref<760x128xf32, #tpu.memory_space<vmem>>, vector<1x32xf32>
    %cst_54 = arith.constant dense<0.000000e+00> : vector<48xf32>
    %209 = vector.multi_reduction <add>, %206, %cst_54 [1] : vector<48x32xf32> to vector<48xf32>
    %210 = vector.shape_cast %209 : vector<48xf32> to vector<48x1xf32>
    %cst_55 = arith.constant 3.200000e+01 : f32
    %211 = vector.broadcast %cst_55 : f32 to vector<48x1xf32>
    %212 = arith.divf %210, %211 : vector<48x1xf32>
    %213 = vector.broadcast %212 : vector<48x1xf32> to vector<48x32xf32>
    %214 = arith.subf %206, %213 : vector<48x32xf32>
    %215 = arith.mulf %214, %214 : vector<48x32xf32>
    %cst_56 = arith.constant dense<0.000000e+00> : vector<48xf32>
    %216 = vector.multi_reduction <add>, %215, %cst_56 [1] : vector<48x32xf32> to vector<48xf32>
    %217 = vector.shape_cast %216 : vector<48xf32> to vector<48x1xf32>
    %cst_57 = arith.constant 3.200000e+01 : f32
    %218 = vector.broadcast %cst_57 : f32 to vector<48x1xf32>
    %219 = arith.divf %217, %218 : vector<48x1xf32>
    %cst_58 = arith.constant 9.99999974E-6 : f32
    %220 = vector.broadcast %cst_58 : f32 to vector<48x1xf32>
    %221 = arith.addf %219, %220 : vector<48x1xf32>
    %222 = math.rsqrt %221 : vector<48x1xf32>
    %223 = vector.broadcast %222 : vector<48x1xf32> to vector<48x32xf32>
    %224 = arith.mulf %214, %223 : vector<48x32xf32>
    %225 = vector.broadcast %207 : vector<1x32xf32> to vector<48x32xf32>
    %226 = arith.mulf %224, %225 : vector<48x32xf32>
    %227 = vector.broadcast %208 : vector<1x32xf32> to vector<48x32xf32>
    %228 = arith.addf %226, %227 : vector<48x32xf32>
    %c248 = arith.constant 248 : index
    %c0_59 = arith.constant 0 : index
    %229 = vector.load %arg2[%c248, %c0_59] : memref<760x128xf32, #tpu.memory_space<vmem>>, vector<32x128xf32>
    %230 = arith.truncf %228 : vector<48x32xf32> to vector<48x32xbf16>
    %231 = arith.truncf %229 : vector<32x128xf32> to vector<32x128xbf16>
    %cst_60 = arith.constant dense<0.000000e+00> : vector<48x128xf32>
    %232 = tpu.matmul %230, %231, %cst_60 {dimension_numbers = #tpu.dot_dimension_numbers<[1], [0], [0], [1], [0, 0, 1, 1], [], []>} : vector<48x32xbf16>, vector<32x128xbf16>, vector<48x128xf32> -> vector<48x128xf32>
    %c108 = arith.constant 108 : index
    %c0_61 = arith.constant 0 : index
    %233 = vector.load %arg2[%c108, %c0_61] : memref<760x128xf32, #tpu.memory_space<vmem>>, vector<1x128xf32>
    %234 = vector.broadcast %233 : vector<1x128xf32> to vector<48x128xf32>
    %235 = arith.addf %232, %234 : vector<48x128xf32>
    %cst_62 = arith.constant 1.702000e+00 : f32
    %236 = vector.broadcast %cst_62 : f32 to vector<48x128xf32>
    %237 = arith.mulf %236, %235 : vector<48x128xf32>
    %238 = arith.negf %237 : vector<48x128xf32>
    %239 = math.exp %238 : vector<48x128xf32>
    %cst_63 = arith.constant 1.000000e+00 : f32
    %240 = vector.broadcast %cst_63 : f32 to vector<48x128xf32>
    %241 = arith.addf %240, %239 : vector<48x128xf32>
    %242 = arith.divf %240, %241 : vector<48x128xf32>
    %243 = arith.mulf %235, %242 : vector<48x128xf32>
    %c280 = arith.constant 280 : index
    %c0_64 = arith.constant 0 : index
    %244 = vector.load %arg2[%c280, %c0_64] : memref<760x128xf32, #tpu.memory_space<vmem>>, vector<128x32xf32>
    %245 = arith.truncf %243 : vector<48x128xf32> to vector<48x128xbf16>
    %246 = arith.truncf %244 : vector<128x32xf32> to vector<128x32xbf16>
    %cst_65 = arith.constant dense<0.000000e+00> : vector<48x32xf32>
    %247 = tpu.matmul %245, %246, %cst_65 {dimension_numbers = #tpu.dot_dimension_numbers<[1], [0], [0], [1], [0, 0, 1, 1], [], []>} : vector<48x128xbf16>, vector<128x32xbf16>, vector<48x32xf32> -> vector<48x32xf32>
    %248 = arith.addf %206, %247 : vector<48x32xf32>
    %c109 = arith.constant 109 : index
    %c0_66 = arith.constant 0 : index
    %249 = vector.load %arg2[%c109, %c0_66] : memref<760x128xf32, #tpu.memory_space<vmem>>, vector<1x32xf32>
    %250 = vector.broadcast %249 : vector<1x32xf32> to vector<48x32xf32>
    %251 = arith.addf %248, %250 : vector<48x32xf32>
    %c110 = arith.constant 110 : index
    %c0_67 = arith.constant 0 : index
    %252 = vector.load %arg2[%c110, %c0_67] : memref<760x128xf32, #tpu.memory_space<vmem>>, vector<1x32xf32>
    %c111 = arith.constant 111 : index
    %c0_68 = arith.constant 0 : index
    %253 = vector.load %arg2[%c111, %c0_68] : memref<760x128xf32, #tpu.memory_space<vmem>>, vector<1x32xf32>
    %cst_69 = arith.constant dense<0.000000e+00> : vector<48xf32>
    %254 = vector.multi_reduction <add>, %251, %cst_69 [1] : vector<48x32xf32> to vector<48xf32>
    %255 = vector.shape_cast %254 : vector<48xf32> to vector<48x1xf32>
    %cst_70 = arith.constant 3.200000e+01 : f32
    %256 = vector.broadcast %cst_70 : f32 to vector<48x1xf32>
    %257 = arith.divf %255, %256 : vector<48x1xf32>
    %258 = vector.broadcast %257 : vector<48x1xf32> to vector<48x32xf32>
    %259 = arith.subf %251, %258 : vector<48x32xf32>
    %260 = arith.mulf %259, %259 : vector<48x32xf32>
    %cst_71 = arith.constant dense<0.000000e+00> : vector<48xf32>
    %261 = vector.multi_reduction <add>, %260, %cst_71 [1] : vector<48x32xf32> to vector<48xf32>
    %262 = vector.shape_cast %261 : vector<48xf32> to vector<48x1xf32>
    %cst_72 = arith.constant 3.200000e+01 : f32
    %263 = vector.broadcast %cst_72 : f32 to vector<48x1xf32>
    %264 = arith.divf %262, %263 : vector<48x1xf32>
    %cst_73 = arith.constant 9.99999974E-6 : f32
    %265 = vector.broadcast %cst_73 : f32 to vector<48x1xf32>
    %266 = arith.addf %264, %265 : vector<48x1xf32>
    %267 = math.rsqrt %266 : vector<48x1xf32>
    %268 = vector.broadcast %267 : vector<48x1xf32> to vector<48x32xf32>
    %269 = arith.mulf %259, %268 : vector<48x32xf32>
    %270 = vector.broadcast %252 : vector<1x32xf32> to vector<48x32xf32>
    %271 = arith.mulf %269, %270 : vector<48x32xf32>
    %272 = vector.broadcast %253 : vector<1x32xf32> to vector<48x32xf32>
    %273 = arith.addf %271, %272 : vector<48x32xf32>
    %c408 = arith.constant 408 : index
    %c0_74 = arith.constant 0 : index
    %274 = vector.load %arg2[%c408, %c0_74] : memref<760x128xf32, #tpu.memory_space<vmem>>, vector<32x32xf32>
    %275 = arith.truncf %273 : vector<48x32xf32> to vector<48x32xbf16>
    %276 = arith.truncf %274 : vector<32x32xf32> to vector<32x32xbf16>
    %cst_75 = arith.constant dense<0.000000e+00> : vector<48x32xf32>
    %277 = tpu.matmul %275, %276, %cst_75 {dimension_numbers = #tpu.dot_dimension_numbers<[1], [0], [0], [1], [0, 0, 1, 1], [], []>} : vector<48x32xbf16>, vector<32x32xbf16>, vector<48x32xf32> -> vector<48x32xf32>
    %c112 = arith.constant 112 : index
    %c0_76 = arith.constant 0 : index
    %278 = vector.load %arg2[%c112, %c0_76] : memref<760x128xf32, #tpu.memory_space<vmem>>, vector<1x32xf32>
    %279 = vector.broadcast %278 : vector<1x32xf32> to vector<48x32xf32>
    %280 = arith.addf %277, %279 : vector<48x32xf32>
    %c440 = arith.constant 440 : index
    %c0_77 = arith.constant 0 : index
    %281 = vector.load %arg2[%c440, %c0_77] : memref<760x128xf32, #tpu.memory_space<vmem>>, vector<32x32xf32>
    %282 = arith.truncf %273 : vector<48x32xf32> to vector<48x32xbf16>
    %283 = arith.truncf %281 : vector<32x32xf32> to vector<32x32xbf16>
    %cst_78 = arith.constant dense<0.000000e+00> : vector<48x32xf32>
    %284 = tpu.matmul %282, %283, %cst_78 {dimension_numbers = #tpu.dot_dimension_numbers<[1], [0], [0], [1], [0, 0, 1, 1], [], []>} : vector<48x32xbf16>, vector<32x32xbf16>, vector<48x32xf32> -> vector<48x32xf32>
    %c113 = arith.constant 113 : index
    %c0_79 = arith.constant 0 : index
    %285 = vector.load %arg2[%c113, %c0_79] : memref<760x128xf32, #tpu.memory_space<vmem>>, vector<1x32xf32>
    %286 = vector.broadcast %285 : vector<1x32xf32> to vector<48x32xf32>
    %287 = arith.addf %284, %286 : vector<48x32xf32>
    %c472 = arith.constant 472 : index
    %c0_80 = arith.constant 0 : index
    %288 = vector.load %arg2[%c472, %c0_80] : memref<760x128xf32, #tpu.memory_space<vmem>>, vector<32x32xf32>
    %289 = arith.truncf %273 : vector<48x32xf32> to vector<48x32xbf16>
    %290 = arith.truncf %288 : vector<32x32xf32> to vector<32x32xbf16>
    %cst_81 = arith.constant dense<0.000000e+00> : vector<48x32xf32>
    %291 = tpu.matmul %289, %290, %cst_81 {dimension_numbers = #tpu.dot_dimension_numbers<[1], [0], [0], [1], [0, 0, 1, 1], [], []>} : vector<48x32xbf16>, vector<32x32xbf16>, vector<48x32xf32> -> vector<48x32xf32>
    %c114 = arith.constant 114 : index
    %c0_82 = arith.constant 0 : index
    %292 = vector.load %arg2[%c114, %c0_82] : memref<760x128xf32, #tpu.memory_space<vmem>>, vector<1x32xf32>
    %293 = vector.broadcast %292 : vector<1x32xf32> to vector<48x32xf32>
    %294 = arith.addf %291, %293 : vector<48x32xf32>
    %295 = vector.extract_strided_slice %280 {offsets = [0, 0], sizes = [24, 32], strides = [1, 1]} : vector<48x32xf32> to vector<24x32xf32>
    %296 = vector.extract_strided_slice %287 {offsets = [0, 0], sizes = [24, 32], strides = [1, 1]} : vector<48x32xf32> to vector<24x32xf32>
    %297 = vector.extract_strided_slice %294 {offsets = [0, 0], sizes = [24, 32], strides = [1, 1]} : vector<48x32xf32> to vector<24x32xf32>
    %298 = vector.broadcast %8 : vector<1x32xf32> to vector<24x32xf32>
    %299 = arith.mulf %295, %298 : vector<24x32xf32>
    %300 = vector.broadcast %16 : vector<1x32xf32> to vector<24x32xf32>
    %301 = arith.mulf %295, %300 : vector<24x32xf32>
    %302 = vector.broadcast %24 : vector<1x32xf32> to vector<24x32xf32>
    %303 = arith.mulf %295, %302 : vector<24x32xf32>
    %304 = vector.broadcast %32 : vector<1x32xf32> to vector<24x32xf32>
    %305 = arith.mulf %295, %304 : vector<24x32xf32>
    %306 = tpu.concatenate %299, %301, %303, %305 in 0 : vector<24x32xf32>, vector<24x32xf32>, vector<24x32xf32>, vector<24x32xf32> -> vector<96x32xf32>
    %307 = arith.truncf %306 : vector<96x32xf32> to vector<96x32xbf16>
    %308 = arith.truncf %296 : vector<24x32xf32> to vector<24x32xbf16>
    %cst_83 = arith.constant dense<0.000000e+00> : vector<96x24xf32>
    %309 = tpu.matmul %307, %308, %cst_83 {dimension_numbers = #tpu.dot_dimension_numbers<[1], [1], [0], [0], [0, 0, 1, 0], [], []>} : vector<96x32xbf16>, vector<24x32xbf16>, vector<96x24xf32> -> vector<96x24xf32>
    %310 = arith.addf %309, %38 : vector<96x24xf32>
    %cst_84 = arith.constant dense<0xFF800000> : vector<96xf32>
    %311 = vector.multi_reduction <maximumf>, %310, %cst_84 [1] : vector<96x24xf32> to vector<96xf32>
    %312 = vector.shape_cast %311 : vector<96xf32> to vector<96x1xf32>
    %313 = vector.broadcast %312 : vector<96x1xf32> to vector<96x24xf32>
    %314 = arith.subf %310, %313 : vector<96x24xf32>
    %315 = math.exp %314 : vector<96x24xf32>
    %cst_85 = arith.constant dense<0.000000e+00> : vector<96xf32>
    %316 = vector.multi_reduction <add>, %315, %cst_85 [1] : vector<96x24xf32> to vector<96xf32>
    %317 = vector.shape_cast %316 : vector<96xf32> to vector<96x1xf32>
    %318 = vector.broadcast %317 : vector<96x1xf32> to vector<96x24xf32>
    %319 = arith.divf %315, %318 : vector<96x24xf32>
    %320 = arith.truncf %319 : vector<96x24xf32> to vector<96x24xbf16>
    %321 = arith.truncf %297 : vector<24x32xf32> to vector<24x32xbf16>
    %cst_86 = arith.constant dense<0.000000e+00> : vector<96x32xf32>
    %322 = tpu.matmul %320, %321, %cst_86 {dimension_numbers = #tpu.dot_dimension_numbers<[1], [0], [0], [1], [0, 0, 1, 1], [], []>} : vector<96x24xbf16>, vector<24x32xbf16>, vector<96x32xf32> -> vector<96x32xf32>
    %323 = vector.extract_strided_slice %322 {offsets = [0, 0], sizes = [24, 32], strides = [1, 1]} : vector<96x32xf32> to vector<24x32xf32>
    %324 = vector.broadcast %8 : vector<1x32xf32> to vector<24x32xf32>
    %325 = arith.mulf %323, %324 : vector<24x32xf32>
    %326 = vector.extract_strided_slice %322 {offsets = [24, 0], sizes = [24, 32], strides = [1, 1]} : vector<96x32xf32> to vector<24x32xf32>
    %327 = vector.broadcast %16 : vector<1x32xf32> to vector<24x32xf32>
    %328 = arith.mulf %326, %327 : vector<24x32xf32>
    %329 = arith.addf %325, %328 : vector<24x32xf32>
    %330 = vector.extract_strided_slice %322 {offsets = [48, 0], sizes = [24, 32], strides = [1, 1]} : vector<96x32xf32> to vector<24x32xf32>
    %331 = vector.broadcast %24 : vector<1x32xf32> to vector<24x32xf32>
    %332 = arith.mulf %330, %331 : vector<24x32xf32>
    %333 = arith.addf %329, %332 : vector<24x32xf32>
    %334 = vector.extract_strided_slice %322 {offsets = [72, 0], sizes = [24, 32], strides = [1, 1]} : vector<96x32xf32> to vector<24x32xf32>
    %335 = vector.broadcast %32 : vector<1x32xf32> to vector<24x32xf32>
    %336 = arith.mulf %334, %335 : vector<24x32xf32>
    %337 = arith.addf %333, %336 : vector<24x32xf32>
    %338 = vector.extract_strided_slice %280 {offsets = [24, 0], sizes = [24, 32], strides = [1, 1]} : vector<48x32xf32> to vector<24x32xf32>
    %339 = vector.extract_strided_slice %287 {offsets = [24, 0], sizes = [24, 32], strides = [1, 1]} : vector<48x32xf32> to vector<24x32xf32>
    %340 = vector.extract_strided_slice %294 {offsets = [24, 0], sizes = [24, 32], strides = [1, 1]} : vector<48x32xf32> to vector<24x32xf32>
    %341 = vector.broadcast %8 : vector<1x32xf32> to vector<24x32xf32>
    %342 = arith.mulf %338, %341 : vector<24x32xf32>
    %343 = vector.broadcast %16 : vector<1x32xf32> to vector<24x32xf32>
    %344 = arith.mulf %338, %343 : vector<24x32xf32>
    %345 = vector.broadcast %24 : vector<1x32xf32> to vector<24x32xf32>
    %346 = arith.mulf %338, %345 : vector<24x32xf32>
    %347 = vector.broadcast %32 : vector<1x32xf32> to vector<24x32xf32>
    %348 = arith.mulf %338, %347 : vector<24x32xf32>
    %349 = tpu.concatenate %342, %344, %346, %348 in 0 : vector<24x32xf32>, vector<24x32xf32>, vector<24x32xf32>, vector<24x32xf32> -> vector<96x32xf32>
    %350 = arith.truncf %349 : vector<96x32xf32> to vector<96x32xbf16>
    %351 = arith.truncf %339 : vector<24x32xf32> to vector<24x32xbf16>
    %cst_87 = arith.constant dense<0.000000e+00> : vector<96x24xf32>
    %352 = tpu.matmul %350, %351, %cst_87 {dimension_numbers = #tpu.dot_dimension_numbers<[1], [1], [0], [0], [0, 0, 1, 0], [], []>} : vector<96x32xbf16>, vector<24x32xbf16>, vector<96x24xf32> -> vector<96x24xf32>
    %353 = arith.addf %352, %38 : vector<96x24xf32>
    %cst_88 = arith.constant dense<0xFF800000> : vector<96xf32>
    %354 = vector.multi_reduction <maximumf>, %353, %cst_88 [1] : vector<96x24xf32> to vector<96xf32>
    %355 = vector.shape_cast %354 : vector<96xf32> to vector<96x1xf32>
    %356 = vector.broadcast %355 : vector<96x1xf32> to vector<96x24xf32>
    %357 = arith.subf %353, %356 : vector<96x24xf32>
    %358 = math.exp %357 : vector<96x24xf32>
    %cst_89 = arith.constant dense<0.000000e+00> : vector<96xf32>
    %359 = vector.multi_reduction <add>, %358, %cst_89 [1] : vector<96x24xf32> to vector<96xf32>
    %360 = vector.shape_cast %359 : vector<96xf32> to vector<96x1xf32>
    %361 = vector.broadcast %360 : vector<96x1xf32> to vector<96x24xf32>
    %362 = arith.divf %358, %361 : vector<96x24xf32>
    %363 = arith.truncf %362 : vector<96x24xf32> to vector<96x24xbf16>
    %364 = arith.truncf %340 : vector<24x32xf32> to vector<24x32xbf16>
    %cst_90 = arith.constant dense<0.000000e+00> : vector<96x32xf32>
    %365 = tpu.matmul %363, %364, %cst_90 {dimension_numbers = #tpu.dot_dimension_numbers<[1], [0], [0], [1], [0, 0, 1, 1], [], []>} : vector<96x24xbf16>, vector<24x32xbf16>, vector<96x32xf32> -> vector<96x32xf32>
    %366 = vector.extract_strided_slice %365 {offsets = [0, 0], sizes = [24, 32], strides = [1, 1]} : vector<96x32xf32> to vector<24x32xf32>
    %367 = vector.broadcast %8 : vector<1x32xf32> to vector<24x32xf32>
    %368 = arith.mulf %366, %367 : vector<24x32xf32>
    %369 = vector.extract_strided_slice %365 {offsets = [24, 0], sizes = [24, 32], strides = [1, 1]} : vector<96x32xf32> to vector<24x32xf32>
    %370 = vector.broadcast %16 : vector<1x32xf32> to vector<24x32xf32>
    %371 = arith.mulf %369, %370 : vector<24x32xf32>
    %372 = arith.addf %368, %371 : vector<24x32xf32>
    %373 = vector.extract_strided_slice %365 {offsets = [48, 0], sizes = [24, 32], strides = [1, 1]} : vector<96x32xf32> to vector<24x32xf32>
    %374 = vector.broadcast %24 : vector<1x32xf32> to vector<24x32xf32>
    %375 = arith.mulf %373, %374 : vector<24x32xf32>
    %376 = arith.addf %372, %375 : vector<24x32xf32>
    %377 = vector.extract_strided_slice %365 {offsets = [72, 0], sizes = [24, 32], strides = [1, 1]} : vector<96x32xf32> to vector<24x32xf32>
    %378 = vector.broadcast %32 : vector<1x32xf32> to vector<24x32xf32>
    %379 = arith.mulf %377, %378 : vector<24x32xf32>
    %380 = arith.addf %376, %379 : vector<24x32xf32>
    %381 = tpu.concatenate %337, %380 in 0 : vector<24x32xf32>, vector<24x32xf32> -> vector<48x32xf32>
    %c504 = arith.constant 504 : index
    %c0_91 = arith.constant 0 : index
    %382 = vector.load %arg2[%c504, %c0_91] : memref<760x128xf32, #tpu.memory_space<vmem>>, vector<32x32xf32>
    %383 = arith.truncf %381 : vector<48x32xf32> to vector<48x32xbf16>
    %384 = arith.truncf %382 : vector<32x32xf32> to vector<32x32xbf16>
    %cst_92 = arith.constant dense<0.000000e+00> : vector<48x32xf32>
    %385 = tpu.matmul %383, %384, %cst_92 {dimension_numbers = #tpu.dot_dimension_numbers<[1], [0], [0], [1], [0, 0, 1, 1], [], []>} : vector<48x32xbf16>, vector<32x32xbf16>, vector<48x32xf32> -> vector<48x32xf32>
    %386 = arith.addf %251, %385 : vector<48x32xf32>
    %c115 = arith.constant 115 : index
    %c0_93 = arith.constant 0 : index
    %387 = vector.load %arg2[%c115, %c0_93] : memref<760x128xf32, #tpu.memory_space<vmem>>, vector<1x32xf32>
    %388 = vector.broadcast %387 : vector<1x32xf32> to vector<48x32xf32>
    %389 = arith.addf %386, %388 : vector<48x32xf32>
    %c116 = arith.constant 116 : index
    %c0_94 = arith.constant 0 : index
    %390 = vector.load %arg2[%c116, %c0_94] : memref<760x128xf32, #tpu.memory_space<vmem>>, vector<1x32xf32>
    %c117 = arith.constant 117 : index
    %c0_95 = arith.constant 0 : index
    %391 = vector.load %arg2[%c117, %c0_95] : memref<760x128xf32, #tpu.memory_space<vmem>>, vector<1x32xf32>
    %cst_96 = arith.constant dense<0.000000e+00> : vector<48xf32>
    %392 = vector.multi_reduction <add>, %389, %cst_96 [1] : vector<48x32xf32> to vector<48xf32>
    %393 = vector.shape_cast %392 : vector<48xf32> to vector<48x1xf32>
    %cst_97 = arith.constant 3.200000e+01 : f32
    %394 = vector.broadcast %cst_97 : f32 to vector<48x1xf32>
    %395 = arith.divf %393, %394 : vector<48x1xf32>
    %396 = vector.broadcast %395 : vector<48x1xf32> to vector<48x32xf32>
    %397 = arith.subf %389, %396 : vector<48x32xf32>
    %398 = arith.mulf %397, %397 : vector<48x32xf32>
    %cst_98 = arith.constant dense<0.000000e+00> : vector<48xf32>
    %399 = vector.multi_reduction <add>, %398, %cst_98 [1] : vector<48x32xf32> to vector<48xf32>
    %400 = vector.shape_cast %399 : vector<48xf32> to vector<48x1xf32>
    %cst_99 = arith.constant 3.200000e+01 : f32
    %401 = vector.broadcast %cst_99 : f32 to vector<48x1xf32>
    %402 = arith.divf %400, %401 : vector<48x1xf32>
    %cst_100 = arith.constant 9.99999974E-6 : f32
    %403 = vector.broadcast %cst_100 : f32 to vector<48x1xf32>
    %404 = arith.addf %402, %403 : vector<48x1xf32>
    %405 = math.rsqrt %404 : vector<48x1xf32>
    %406 = vector.broadcast %405 : vector<48x1xf32> to vector<48x32xf32>
    %407 = arith.mulf %397, %406 : vector<48x32xf32>
    %408 = vector.broadcast %390 : vector<1x32xf32> to vector<48x32xf32>
    %409 = arith.mulf %407, %408 : vector<48x32xf32>
    %410 = vector.broadcast %391 : vector<1x32xf32> to vector<48x32xf32>
    %411 = arith.addf %409, %410 : vector<48x32xf32>
    %c536 = arith.constant 536 : index
    %c0_101 = arith.constant 0 : index
    %412 = vector.load %arg2[%c536, %c0_101] : memref<760x128xf32, #tpu.memory_space<vmem>>, vector<32x128xf32>
    %413 = arith.truncf %411 : vector<48x32xf32> to vector<48x32xbf16>
    %414 = arith.truncf %412 : vector<32x128xf32> to vector<32x128xbf16>
    %cst_102 = arith.constant dense<0.000000e+00> : vector<48x128xf32>
    %415 = tpu.matmul %413, %414, %cst_102 {dimension_numbers = #tpu.dot_dimension_numbers<[1], [0], [0], [1], [0, 0, 1, 1], [], []>} : vector<48x32xbf16>, vector<32x128xbf16>, vector<48x128xf32> -> vector<48x128xf32>
    %c118 = arith.constant 118 : index
    %c0_103 = arith.constant 0 : index
    %416 = vector.load %arg2[%c118, %c0_103] : memref<760x128xf32, #tpu.memory_space<vmem>>, vector<1x128xf32>
    %417 = vector.broadcast %416 : vector<1x128xf32> to vector<48x128xf32>
    %418 = arith.addf %415, %417 : vector<48x128xf32>
    %cst_104 = arith.constant 1.702000e+00 : f32
    %419 = vector.broadcast %cst_104 : f32 to vector<48x128xf32>
    %420 = arith.mulf %419, %418 : vector<48x128xf32>
    %421 = arith.negf %420 : vector<48x128xf32>
    %422 = math.exp %421 : vector<48x128xf32>
    %cst_105 = arith.constant 1.000000e+00 : f32
    %423 = vector.broadcast %cst_105 : f32 to vector<48x128xf32>
    %424 = arith.addf %423, %422 : vector<48x128xf32>
    %425 = arith.divf %423, %424 : vector<48x128xf32>
    %426 = arith.mulf %418, %425 : vector<48x128xf32>
    %c568 = arith.constant 568 : index
    %c0_106 = arith.constant 0 : index
    %427 = vector.load %arg2[%c568, %c0_106] : memref<760x128xf32, #tpu.memory_space<vmem>>, vector<128x32xf32>
    %428 = arith.truncf %426 : vector<48x128xf32> to vector<48x128xbf16>
    %429 = arith.truncf %427 : vector<128x32xf32> to vector<128x32xbf16>
    %cst_107 = arith.constant dense<0.000000e+00> : vector<48x32xf32>
    %430 = tpu.matmul %428, %429, %cst_107 {dimension_numbers = #tpu.dot_dimension_numbers<[1], [0], [0], [1], [0, 0, 1, 1], [], []>} : vector<48x128xbf16>, vector<128x32xbf16>, vector<48x32xf32> -> vector<48x32xf32>
    %431 = arith.addf %389, %430 : vector<48x32xf32>
    %c119 = arith.constant 119 : index
    %c0_108 = arith.constant 0 : index
    %432 = vector.load %arg2[%c119, %c0_108] : memref<760x128xf32, #tpu.memory_space<vmem>>, vector<1x32xf32>
    %433 = vector.broadcast %432 : vector<1x32xf32> to vector<48x32xf32>
    %434 = arith.addf %431, %433 : vector<48x32xf32>
    %435 = vector.extract_strided_slice %434 {offsets = [0, 0], sizes = [1, 32], strides = [1, 1]} : vector<48x32xf32> to vector<1x32xf32>
    %436 = vector.extract_strided_slice %434 {offsets = [24, 0], sizes = [1, 32], strides = [1, 1]} : vector<48x32xf32> to vector<1x32xf32>
    %437 = tpu.concatenate %435, %436 in 0 : vector<1x32xf32>, vector<1x32xf32> -> vector<2x32xf32>
    %c98 = arith.constant 98 : index
    %c0_109 = arith.constant 0 : index
    %438 = vector.load %arg2[%c98, %c0_109] : memref<760x128xf32, #tpu.memory_space<vmem>>, vector<1x32xf32>
    %c99 = arith.constant 99 : index
    %c0_110 = arith.constant 0 : index
    %439 = vector.load %arg2[%c99, %c0_110] : memref<760x128xf32, #tpu.memory_space<vmem>>, vector<1x32xf32>
    %cst_111 = arith.constant dense<0.000000e+00> : vector<2xf32>
    %440 = vector.multi_reduction <add>, %437, %cst_111 [1] : vector<2x32xf32> to vector<2xf32>
    %441 = vector.shape_cast %440 : vector<2xf32> to vector<2x1xf32>
    %cst_112 = arith.constant 3.200000e+01 : f32
    %442 = vector.broadcast %cst_112 : f32 to vector<2x1xf32>
    %443 = arith.divf %441, %442 : vector<2x1xf32>
    %444 = vector.broadcast %443 : vector<2x1xf32> to vector<2x32xf32>
    %445 = arith.subf %437, %444 : vector<2x32xf32>
    %446 = arith.mulf %445, %445 : vector<2x32xf32>
    %cst_113 = arith.constant dense<0.000000e+00> : vector<2xf32>
    %447 = vector.multi_reduction <add>, %446, %cst_113 [1] : vector<2x32xf32> to vector<2xf32>
    %448 = vector.shape_cast %447 : vector<2xf32> to vector<2x1xf32>
    %cst_114 = arith.constant 3.200000e+01 : f32
    %449 = vector.broadcast %cst_114 : f32 to vector<2x1xf32>
    %450 = arith.divf %448, %449 : vector<2x1xf32>
    %cst_115 = arith.constant 9.99999974E-6 : f32
    %451 = vector.broadcast %cst_115 : f32 to vector<2x1xf32>
    %452 = arith.addf %450, %451 : vector<2x1xf32>
    %453 = math.rsqrt %452 : vector<2x1xf32>
    %454 = vector.broadcast %453 : vector<2x1xf32> to vector<2x32xf32>
    %455 = arith.mulf %445, %454 : vector<2x32xf32>
    %456 = vector.broadcast %438 : vector<1x32xf32> to vector<2x32xf32>
    %457 = arith.mulf %455, %456 : vector<2x32xf32>
    %458 = vector.broadcast %439 : vector<1x32xf32> to vector<2x32xf32>
    %459 = arith.addf %457, %458 : vector<2x32xf32>
    %c696 = arith.constant 696 : index
    %c0_116 = arith.constant 0 : index
    %460 = vector.load %arg2[%c696, %c0_116] : memref<760x128xf32, #tpu.memory_space<vmem>>, vector<32x32xf32>
    %461 = arith.truncf %459 : vector<2x32xf32> to vector<2x32xbf16>
    %462 = arith.truncf %460 : vector<32x32xf32> to vector<32x32xbf16>
    %cst_117 = arith.constant dense<0.000000e+00> : vector<2x32xf32>
    %463 = tpu.matmul %461, %462, %cst_117 {dimension_numbers = #tpu.dot_dimension_numbers<[1], [0], [0], [1], [0, 0, 1, 1], [], []>} : vector<2x32xbf16>, vector<32x32xbf16>, vector<2x32xf32> -> vector<2x32xf32>
    %c728 = arith.constant 728 : index
    %c0_118 = arith.constant 0 : index
    %464 = vector.load %arg2[%c728, %c0_118] : memref<760x128xf32, #tpu.memory_space<vmem>>, vector<32x64xf32>
    %465 = arith.truncf %463 : vector<2x32xf32> to vector<2x32xbf16>
    %466 = arith.truncf %464 : vector<32x64xf32> to vector<32x64xbf16>
    %cst_119 = arith.constant dense<0.000000e+00> : vector<2x64xf32>
    %467 = tpu.matmul %465, %466, %cst_119 {dimension_numbers = #tpu.dot_dimension_numbers<[1], [0], [0], [1], [0, 0, 1, 1], [], []>} : vector<2x32xbf16>, vector<32x64xbf16>, vector<2x64xf32> -> vector<2x64xf32>
    %c0_120 = arith.constant 0 : index
    %c0_121 = arith.constant 0 : index
    %c0_122 = arith.constant 0 : index
    %468 = vector.load %arg3[%c0_120, %c0_121, %c0_122] : memref<1x2x64xf32, #tpu.memory_space<vmem>>, vector<1x2x64xf32>
    %469 = vector.shape_cast %468 : vector<1x2x64xf32> to vector<2x64xf32>
    %470 = vector.shape_cast %467 : vector<2x64xf32> to vector<1x2x64xf32>
    tpu.vector_store %arg3[%c0_120, %c0_121, %c0_122], %470 {strides = array<i32>} : memref<1x2x64xf32, #tpu.memory_space<vmem>>, vector<1x2x64xf32>,
    return
  }
  func.func @transform_0(%arg0: i32) -> (i32, i32, i32) {
    %c0_i32 = arith.constant 0 : i32
    %c0_i32_0 = arith.constant 0 : i32
    %c0_i32_1 = arith.constant 0 : i32
    return %arg0, %c0_i32, %c0_i32_0 : i32, i32, i32
  }
  func.func @transform_1(%arg0: i32) -> (i32, i32) {
    %c0_i32 = arith.constant 0 : i32
    %c0_i32_0 = arith.constant 0 : i32
    %c0_i32_1 = arith.constant 0 : i32
    return %c0_i32, %c0_i32_0 : i32, i32
  }
  func.func @transform_2(%arg0: i32) -> (i32, i32, i32) {
    %c0_i32 = arith.constant 0 : i32
    %c0_i32_0 = arith.constant 0 : i32
    %c0_i32_1 = arith.constant 0 : i32
    return %arg0, %c0_i32, %c0_i32_0 : i32, i32, i32
  }
}

</mosaic_0001>

<llo_original>
// kernel: forward.1
$region0: #{forward.1}
  #allocation0 [shape = 'u32[]', space=smem, size = 0x4, offset = 0x4, fixed_abs, tag = 'smem constant byte address 0x4 - core index']
  #allocation1 [shape = 'u32[72,128]{1,0:T(1,128)}', space=vmem, size = 0x9000, scoped, tag = 'internal scratch']
  %s0 = inlined_call_operand.vmem [shape: f32[1,48,48], index: 0, kind: input, shape index: {}]
  %s1 = inlined_call_operand.vmem [shape: f32[760,128], index: 1, kind: input, shape index: {}]
  %s2 = inlined_call_operand.hbm [shape: f32[1,2,64], index: 2, kind: output, shape index: {}]
  %s3 = sld [smem:[#allocation0]]
  $region18: #{forward.1} parent=0
    _
  %s5 = ssub.s32 1, %s3
  %s6 = scalar_select 0, %s5, %s3
  $region1: #{forward.1} parent=0
    #allocation2 [shape = 'u8[1024]{0}', space=vmem, size = 0x400, scoped, tag = 'output window, operand 0, single buffered']
    #allocation3 [shape = 's32[1]{0}', space=sflag, size = 0x4, scoped, tag = 'scoped memory for forward.1']
    %7 = vsyncpa [#allocation3], 0
    // Predicated region
    $region2: #{forward.1} parent=1 // pred_check
      _
    $region3: #{forward.1} parent=1 // pred_check_branch
      %9 = sbr.rel (0) target = $region5
    $region4: #{forward.1} parent=1 // pred_region
      _
    $region5: #{forward.1} parent=1 // pred_fallthru
      _
    // Predicated region
    $region6: #{forward.1} parent=1 // pred_check
      _
    $region7: #{forward.1} parent=1 // pred_check_branch
      %11 = sbr.rel (0) target = $region9
    $region8: #{forward.1} parent=1 // pred_region
      _
    $region9: #{forward.1} parent=1 // pred_fallthru
      _
    %v13 = vlaneseq
    %v14 = vand.u32 %v13, 127
    %vm15 = vcmp.ge.s32.totalorder %v14, 0
    %vm16 = vcmp.lt.s32.totalorder %v14, 8
    %vm17 = vmand %vm15, %vm16
    %v18 = vsel %vm17, 1.0, 0.0
    %vm19 = vcmp.ge.s32.totalorder %v14, 8
    %vm20 = vcmp.lt.s32.totalorder %v14, 16
    %vm21 = vmand %vm19, %vm20
    %v22 = vsel %vm21, 1.0, 0.0
    %vm23 = vcmp.ge.s32.totalorder %v14, 16
    %vm24 = vcmp.lt.s32.totalorder %v14, 24
    %vm25 = vmand %vm23, %vm24
    %v26 = vsel %vm25, 1.0, 0.0
    %vm27 = vcmp.ge.s32.totalorder %v14, 24
    %vm28 = vcmp.lt.s32.totalorder %v14, 32
    %vm29 = vmand %vm27, %vm28
    %v30 = vsel %vm29, 1.0, 0.0
    %vm31 = vcmp.lt.s32.totalorder %v14, 17
    %v32 = vsel %vm31, 0.0, -1e+30
    %v33 = vld [vmem:[%s0] sm:$0xff]
    %v34 = vld [vmem:[%s0 + $0x8] sm:$0xff]
    %v35 = vld [vmem:[%s0 + $0x10] sm:$0xff]
    %v36 = vld [vmem:[%s0 + $0x18] sm:$0xff]
    %v37 = vld [vmem:[%s0 + $0x20] sm:$0xff]
    %v38 = vld [vmem:[%s0 + $0x28] sm:$0xff]
    %v39 = vld [vmem:[%s1] sm:$0xff]
    %v40 = vld [vmem:[%s1 + $0x8] sm:$0xff]
    %v41 = vld [vmem:[%s1 + $0x10] sm:$0xff]
    %v42 = vld [vmem:[%s1 + $0x18] sm:$0xff]
    %v43 = vld [vmem:[%s1 + $0x20] sm:$0xff]
    %v44 = vld [vmem:[%s1 + $0x28] sm:$0xff]
    %v45 = vpack.c.bf16 %v34, %v33
    %v46 = vpack.c.bf16 %v36, %v35
    %v47 = vpack.c.bf16 %v38, %v37
    %v48 = vpack.c.bf16 %v40, %v39
    %v49 = vpack.c.bf16 %v42, %v41
    %v50 = vpack.c.bf16 %v44, %v43
    %v51 = vld [vmem:[%s1 + $0x30] sm:$0xff]
    %v52 = vld [vmem:[%s1 + $0x38] sm:$0xff]
    %v53 = vld [vmem:[%s1 + $0x40] sm:$0xff]
    %v54 = vld [vmem:[%s1 + $0x48] sm:$0xff]
    %v55 = vld [vmem:[%s1 + $0x50] sm:$0xff]
    %v56 = vld [vmem:[%s1 + $0x58] sm:$0xff]
    %vm57 = vcmask 392192
    %v59 = vsel %vm57, %v45, 0
    %v62 = vsel %vm57, %v46, 0
    %v65 = vsel %vm57, %v47, 0
    %67 = vmatpush.bf16.msra.mxu0 0
    %68 = vmatpush.bf16.msra.mxu0 0
    %69 = vmatpush.bf16.msra.mxu0 0
    %70 = vmatpush.bf16.msra.mxu0 0
    %71 = vmatpush.bf16.msra.mxu0 0
    %72 = vmatpush.bf16.msra.mxu0 %v50
    %73 = vmatpush.bf16.msra.mxu0 %v49
    %74 = vmatpush.bf16.msra.mxu0 %v48
    %75 = vmatmul.bf16.gmra.mxu0 %v59
    %v76 = vpop.f32.mrf.mxu0
    %v77 = vadd.f32 %v51, %v76
    %v78 = vpop.f32.mrf.mxu0
    %v79 = vadd.f32 %v52, %v78
    %80 = vmatmul.bf16.gmra.mxu0 %v62
    %v81 = vpop.f32.mrf.mxu0
    %v82 = vadd.f32 %v53, %v81
    %v83 = vpop.f32.mrf.mxu0
    %v84 = vadd.f32 %v54, %v83
    %85 = vmatmul.bf16.gmra.mxu0 %v65
    %v86 = vpop.f32.mrf.mxu0
    %v87 = vadd.f32 %v55, %v86
    %v88 = vpop.f32.mrf.mxu0
    %v89 = vadd.f32 %v56, %v88
    %90 = vdwg.mxu0
    %v91 = vld [vmem:[%s1 + $0x60] sm:$0x1]
    %v92 = vld [vmem:[%s1 + $0x61] sm:$0x1]
    %vm93 = vcmask 261120
    %v94 = vsel %vm93, %v77, 0.0
    %95 = vadd.xlane.f32.xlu0 %v94
    %v96 = vpop.xlane.xlu0 %95
    %v97 = vsel %vm93, %v79, 0.0
    %98 = vadd.xlane.f32.xlu0 %v97
    %v99 = vpop.xlane.xlu0 %98
    %v100 = vsel %vm93, %v82, 0.0
    %101 = vadd.xlane.f32.xlu0 %v100
    %v102 = vpop.xlane.xlu0 %101
    %v103 = vsel %vm93, %v84, 0.0
    %104 = vadd.xlane.f32.xlu0 %v103
    %v105 = vpop.xlane.xlu0 %104
    %v106 = vsel %vm93, %v87, 0.0
    %107 = vadd.xlane.f32.xlu0 %v106
    %v108 = vpop.xlane.xlu0 %107
    %v109 = vsel %vm93, %v89, 0.0
    %110 = vadd.xlane.f32.xlu0 %v109
    %v111 = vpop.xlane.xlu0 %110
    %v112 = vrcp.pop 32.0
    %v113 = vmul.f32 32.0, %v112
    %v114 = vsub.f32 1.0, %v113
    %v115 = vmul.f32 %v112, %v114
    %v116 = vadd.f32 %v112, %v115
    %vm117 = vweird.f32 %v112
    %v118 = vsel %vm117, %v112, %v116
    %v119 = vmul.f32 %v96, %v118
    %v120 = vmul.f32 %v99, %v118
    %v121 = vmul.f32 %v102, %v118
    %v122 = vmul.f32 %v105, %v118
    %v123 = vmul.f32 %v108, %v118
    %v124 = vmul.f32 %v111, %v118
    %v125 = vsub.f32 %v77, %v119
    %v126 = vsub.f32 %v79, %v120
    %v127 = vsub.f32 %v82, %v121
    %v128 = vsub.f32 %v84, %v122
    %v129 = vsub.f32 %v87, %v123
    %v130 = vsub.f32 %v89, %v124
    %v131 = vmul.f32 %v125, %v125
    %v132 = vmul.f32 %v126, %v126
    %v133 = vmul.f32 %v127, %v127
    %v134 = vmul.f32 %v128, %v128
    %v135 = vmul.f32 %v129, %v129
    %v136 = vmul.f32 %v130, %v130
    %v137 = vsel %vm93, %v131, 0.0
    %138 = vadd.xlane.f32.xlu0 %v137
    %v139 = vpop.xlane.xlu0 %138
    %v140 = vsel %vm93, %v132, 0.0
    %141 = vadd.xlane.f32.xlu0 %v140
    %v142 = vpop.xlane.xlu0 %141
    %v143 = vsel %vm93, %v133, 0.0
    %144 = vadd.xlane.f32.xlu0 %v143
    %v145 = vpop.xlane.xlu0 %144
    %v146 = vsel %vm93, %v134, 0.0
    %147 = vadd.xlane.f32.xlu0 %v146
    %v148 = vpop.xlane.xlu0 %147
    %v149 = vsel %vm93, %v135, 0.0
    %150 = vadd.xlane.f32.xlu0 %v149
    %v151 = vpop.xlane.xlu0 %150
    %v152 = vsel %vm93, %v136, 0.0
    %153 = vadd.xlane.f32.xlu0 %v152
    %v154 = vpop.xlane.xlu0 %153
    %v155 = vmul.f32 %v139, %v118
    %v156 = vmul.f32 %v142, %v118
    %v157 = vmul.f32 %v145, %v118
    %v158 = vmul.f32 %v148, %v118
    %v159 = vmul.f32 %v151, %v118
    %v160 = vmul.f32 %v154, %v118
    %v161 = vadd.f32 %v155, 1e-05
    %v162 = vadd.f32 %v156, 1e-05
    %v163 = vadd.f32 %v157, 1e-05
    %v164 = vadd.f32 %v158, 1e-05
    %v165 = vadd.f32 %v159, 1e-05
    %v166 = vadd.f32 %v160, 1e-05
    %v167 = vrsqrt.pop %v161
    %v168 = vmul.f32 %v167, %v161
    %v169 = vmul.f32 %v168, %v167
    %v170 = vmul.f32 0.5, %v169
    %v171 = vsub.f32 1.5, %v170
    %v172 = vmul.f32 %v167, %v171
    %vm173 = vweird.f32 %v161
    %vm174 = vweird.f32 %v167
    %vm175 = vmor %vm173, %vm174
    %v176 = vsel %vm175, %v167, %v172
    %v177 = vrsqrt.pop %v162
    %v178 = vmul.f32 %v177, %v162
    %v179 = vmul.f32 %v178, %v177
    %v180 = vmul.f32 0.5, %v179
    %v181 = vsub.f32 1.5, %v180
    %v182 = vmul.f32 %v177, %v181
    %vm183 = vweird.f32 %v162
    %vm184 = vweird.f32 %v177
    %vm185 = vmor %vm183, %vm184
    %v186 = vsel %vm185, %v177, %v182
    %v187 = vrsqrt.pop %v163
    %v188 = vmul.f32 %v187, %v163
    %v189 = vmul.f32 %v188, %v187
    %v190 = vmul.f32 0.5, %v189
    %v191 = vsub.f32 1.5, %v190
    %v192 = vmul.f32 %v187, %v191
    %vm193 = vweird.f32 %v163
    %vm194 = vweird.f32 %v187
    %vm195 = vmor %vm193, %vm194
    %v196 = vsel %vm195, %v187, %v192
    %v197 = vrsqrt.pop %v164
    %v198 = vmul.f32 %v197, %v164
    %v199 = vmul.f32 %v198, %v197
    %v200 = vmul.f32 0.5, %v199
    %v201 = vsub.f32 1.5, %v200
    %v202 = vmul.f32 %v197, %v201
    %vm203 = vweird.f32 %v164
    %vm204 = vweird.f32 %v197
    %vm205 = vmor %vm203, %vm204
    %v206 = vsel %vm205, %v197, %v202
    %v207 = vrsqrt.pop %v165
    %v208 = vmul.f32 %v207, %v165
    %v209 = vmul.f32 %v208, %v207
    %v210 = vmul.f32 0.5, %v209
    %v211 = vsub.f32 1.5, %v210
    %v212 = vmul.f32 %v207, %v211
    %vm213 = vweird.f32 %v165
    %vm214 = vweird.f32 %v207
    %vm215 = vmor %vm213, %vm214
    %v216 = vsel %vm215, %v207, %v212
    %v217 = vrsqrt.pop %v166
    %v218 = vmul.f32 %v217, %v166
    %v219 = vmul.f32 %v218, %v217
    %v220 = vmul.f32 0.5, %v219
    %v221 = vsub.f32 1.5, %v220
    %v222 = vmul.f32 %v217, %v221
    %vm223 = vweird.f32 %v166
    %vm224 = vweird.f32 %v217
    %vm225 = vmor %vm223, %vm224
    %v226 = vsel %vm225, %v217, %v222
    %v227 = vmul.f32 %v125, %v176
    %v228 = vmul.f32 %v126, %v186
    %v229 = vmul.f32 %v127, %v196
    %v230 = vmul.f32 %v128, %v206
    %v231 = vmul.f32 %v129, %v216
    %v232 = vmul.f32 %v130, %v226
    %v233 = vperm.slane %v91, 0
    %v234 = vmul.f32 %v227, %v233
    %v235 = vmul.f32 %v228, %v233
    %v236 = vmul.f32 %v229, %v233
    %v237 = vmul.f32 %v230, %v233
    %v238 = vmul.f32 %v231, %v233
    %v239 = vmul.f32 %v232, %v233
    %v240 = vperm.slane %v92, 0
    %v241 = vadd.f32 %v234, %v240
    %v242 = vadd.f32 %v235, %v240
    %v243 = vadd.f32 %v236, %v240
    %v244 = vadd.f32 %v237, %v240
    %v245 = vadd.f32 %v238, %v240
    %v246 = vadd.f32 %v239, %v240
    %v247 = vld [vmem:[%s1 + $0x64] sm:$0x1]
    %v248 = vld [vmem:[%s1 + $0x65] sm:$0x1]
    %v249 = vsel %vm93, %v241, 0.0
    %250 = vadd.xlane.f32.xlu0 %v249
    %v251 = vpop.xlane.xlu0 %250
    %v252 = vsel %vm93, %v242, 0.0
    %253 = vadd.xlane.f32.xlu0 %v252
    %v254 = vpop.xlane.xlu0 %253
    %v255 = vsel %vm93, %v243, 0.0
    %256 = vadd.xlane.f32.xlu0 %v255
    %v257 = vpop.xlane.xlu0 %256
    %v258 = vsel %vm93, %v244, 0.0
    %259 = vadd.xlane.f32.xlu0 %v258
    %v260 = vpop.xlane.xlu0 %259
    %v261 = vsel %vm93, %v245, 0.0
    %262 = vadd.xlane.f32.xlu0 %v261
    %v263 = vpop.xlane.xlu0 %262
    %v264 = vsel %vm93, %v246, 0.0
    %265 = vadd.xlane.f32.xlu0 %v264
    %v266 = vpop.xlane.xlu0 %265
    %v267 = vmul.f32 %v251, %v118
    %v268 = vmul.f32 %v254, %v118
    %v269 = vmul.f32 %v257, %v118
    %v270 = vmul.f32 %v260, %v118
    %v271 = vmul.f32 %v263, %v118
    %v272 = vmul.f32 %v266, %v118
    %v273 = vsub.f32 %v241, %v267
    %v274 = vsub.f32 %v242, %v268
    %v275 = vsub.f32 %v243, %v269
    %v276 = vsub.f32 %v244, %v270
    %v277 = vsub.f32 %v245, %v271
    %v278 = vsub.f32 %v246, %v272
    %v279 = vmul.f32 %v273, %v273
    %v280 = vmul.f32 %v274, %v274
    %v281 = vmul.f32 %v275, %v275
    %v282 = vmul.f32 %v276, %v276
    %v283 = vmul.f32 %v277, %v277
    %v284 = vmul.f32 %v278, %v278
    %v285 = vsel %vm93, %v279, 0.0
    %286 = vadd.xlane.f32.xlu0 %v285
    %v287 = vpop.xlane.xlu0 %286
    %v288 = vsel %vm93, %v280, 0.0
    %289 = vadd.xlane.f32.xlu0 %v288
    %v290 = vpop.xlane.xlu0 %289
    %v291 = vsel %vm93, %v281, 0.0
    %292 = vadd.xlane.f32.xlu0 %v291
    %v293 = vpop.xlane.xlu0 %292
    %v294 = vsel %vm93, %v282, 0.0
    %295 = vadd.xlane.f32.xlu0 %v294
    %v296 = vpop.xlane.xlu0 %295
    %v297 = vsel %vm93, %v283, 0.0
    %298 = vadd.xlane.f32.xlu0 %v297
    %v299 = vpop.xlane.xlu0 %298
    %v300 = vsel %vm93, %v284, 0.0
    %301 = vadd.xlane.f32.xlu0 %v300
    %v302 = vpop.xlane.xlu0 %301
    %v303 = vmul.f32 %v287, %v118
    %v304 = vmul.f32 %v290, %v118
    %v305 = vmul.f32 %v293, %v118
    %v306 = vmul.f32 %v296, %v118
    %v307 = vmul.f32 %v299, %v118
    %v308 = vmul.f32 %v302, %v118
    %v309 = vadd.f32 %v303, 1e-05
    %v310 = vadd.f32 %v304, 1e-05
    %v311 = vadd.f32 %v305, 1e-05
    %v312 = vadd.f32 %v306, 1e-05
    %v313 = vadd.f32 %v307, 1e-05
    %v314 = vadd.f32 %v308, 1e-05
    %v315 = vrsqrt.pop %v309
    %v316 = vmul.f32 %v315, %v309
    %v317 = vmul.f32 %v316, %v315
    %v318 = vmul.f32 0.5, %v317
    %v319 = vsub.f32 1.5, %v318
    %v320 = vmul.f32 %v315, %v319
    %vm321 = vweird.f32 %v309
    %vm322 = vweird.f32 %v315
    %vm323 = vmor %vm321, %vm322
    %v324 = vsel %vm323, %v315, %v320
    %v325 = vrsqrt.pop %v310
    %v326 = vmul.f32 %v325, %v310
    %v327 = vmul.f32 %v326, %v325
    %v328 = vmul.f32 0.5, %v327
    %v329 = vsub.f32 1.5, %v328
    %v330 = vmul.f32 %v325, %v329
    %vm331 = vweird.f32 %v310
    %vm332 = vweird.f32 %v325
    %vm333 = vmor %vm331, %vm332
    %v334 = vsel %vm333, %v325, %v330
    %v335 = vrsqrt.pop %v311
    %v336 = vmul.f32 %v335, %v311
    %v337 = vmul.f32 %v336, %v335
    %v338 = vmul.f32 0.5, %v337
    %v339 = vsub.f32 1.5, %v338
    %v340 = vmul.f32 %v335, %v339
    %vm341 = vweird.f32 %v311
    %vm342 = vweird.f32 %v335
    %vm343 = vmor %vm341, %vm342
    %v344 = vsel %vm343, %v335, %v340
    %v345 = vrsqrt.pop %v312
    %v346 = vmul.f32 %v345, %v312
    %v347 = vmul.f32 %v346, %v345
    %v348 = vmul.f32 0.5, %v347
    %v349 = vsub.f32 1.5, %v348
    %v350 = vmul.f32 %v345, %v349
    %vm351 = vweird.f32 %v312
    %vm352 = vweird.f32 %v345
    %vm353 = vmor %vm351, %vm352
    %v354 = vsel %vm353, %v345, %v350
    %v355 = vrsqrt.pop %v313
    %v356 = vmul.f32 %v355, %v313
    %v357 = vmul.f32 %v356, %v355
    %v358 = vmul.f32 0.5, %v357
    %v359 = vsub.f32 1.5, %v358
    %v360 = vmul.f32 %v355, %v359
    %vm361 = vweird.f32 %v313
    %vm362 = vweird.f32 %v355
    %vm363 = vmor %vm361, %vm362
    %v364 = vsel %vm363, %v355, %v360
    %v365 = vrsqrt.pop %v314
    %v366 = vmul.f32 %v365, %v314
    %v367 = vmul.f32 %v366, %v365
    %v368 = vmul.f32 0.5, %v367
    %v369 = vsub.f32 1.5, %v368
    %v370 = vmul.f32 %v365, %v369
    %vm371 = vweird.f32 %v314
    %vm372 = vweird.f32 %v365
    %vm373 = vmor %vm371, %vm372
    %v374 = vsel %vm373, %v365, %v370
    %v375 = vmul.f32 %v273, %v324
    %v376 = vmul.f32 %v274, %v334
    %v377 = vmul.f32 %v275, %v344
    %v378 = vmul.f32 %v276, %v354
    %v379 = vmul.f32 %v277, %v364
    %v380 = vmul.f32 %v278, %v374
    %v381 = vperm.slane %v247, 0
    %v382 = vmul.f32 %v375, %v381
    %v383 = vmul.f32 %v376, %v381
    %v384 = vmul.f32 %v377, %v381
    %v385 = vmul.f32 %v378, %v381
    %v386 = vmul.f32 %v379, %v381
    %v387 = vmul.f32 %v380, %v381
    %v388 = vperm.slane %v248, 0
    %v389 = vadd.f32 %v382, %v388
    %v390 = vadd.f32 %v383, %v388
    %v391 = vadd.f32 %v384, %v388
    %v392 = vadd.f32 %v385, %v388
    %v393 = vadd.f32 %v386, %v388
    %v394 = vadd.f32 %v387, %v388
    %v395 = vld [vmem:[%s1 + $0x78] sm:$0xff]
    %v396 = vld [vmem:[%s1 + $0x80] sm:$0xff]
    %v397 = vld [vmem:[%s1 + $0x88] sm:$0xff]
    %v398 = vld [vmem:[%s1 + $0x90] sm:$0xff]
    %v399 = vpack.c.bf16 %v390, %v389
    %v400 = vpack.c.bf16 %v392, %v391
    %v401 = vpack.c.bf16 %v394, %v393
    %v402 = vpack.c.bf16 %v396, %v395
    %v403 = vpack.c.bf16 %v398, %v397
    %v404 = vld [vmem:[%s1 + $0x66] sm:$0x1]
    %v405 = vperm.slane %v404, 0
    %v407 = vsel %vm93, %v399, 0
    %v410 = vsel %vm93, %v400, 0
    %v413 = vsel %vm93, %v401, 0
    %415 = vmatpush.bf16.msra.mxu0 0
    %416 = vmatpush.bf16.msra.mxu0 0
    %417 = vmatpush.bf16.msra.mxu0 0
    %418 = vmatpush.bf16.msra.mxu0 0
    %419 = vmatpush.bf16.msra.mxu0 0
    %420 = vmatpush.bf16.msra.mxu0 0
    %421 = vmatpush.bf16.msra.mxu0 %v403
    %422 = vmatpush.bf16.msra.mxu0 %v402
    %423 = vmatmul.bf16.gmra.mxu0 %v407
    %v424 = vpop.f32.mrf.mxu0
    %v425 = vadd.f32 %v405, %v424
    %v426 = vpop.f32.mrf.mxu0
    %v427 = vadd.f32 %v405, %v426
    %428 = vmatmul.bf16.gmra.mxu0 %v410
    %v429 = vpop.f32.mrf.mxu0
    %v430 = vadd.f32 %v405, %v429
    %v431 = vpop.f32.mrf.mxu0
    %v432 = vadd.f32 %v405, %v431
    %433 = vmatmul.bf16.gmra.mxu0 %v413
    %v434 = vpop.f32.mrf.mxu0
    %v435 = vadd.f32 %v405, %v434
    %v436 = vpop.f32.mrf.mxu0
    %v437 = vadd.f32 %v405, %v436
    %438 = vdwg.mxu0
    %v439 = vld [vmem:[%s1 + $0x98] sm:$0xff]
    %v440 = vld [vmem:[%s1 + $0xa0] sm:$0xff]
    %v441 = vld [vmem:[%s1 + $0xa8] sm:$0xff]
    %v442 = vld [vmem:[%s1 + $0xb0] sm:$0xff]
    %v443 = vpack.c.bf16 %v440, %v439
    %v444 = vpack.c.bf16 %v442, %v441
    %v445 = vld [vmem:[%s1 + $0x67] sm:$0x1]
    %v446 = vperm.slane %v445, 0
    %447 = vmatpush.bf16.msra.mxu0 0
    %448 = vmatpush.bf16.msra.mxu0 0
    %449 = vmatpush.bf16.msra.mxu0 0
    %450 = vmatpush.bf16.msra.mxu0 0
    %451 = vmatpush.bf16.msra.mxu0 0
    %452 = vmatpush.bf16.msra.mxu0 0
    %453 = vmatpush.bf16.msra.mxu0 %v444
    %454 = vmatpush.bf16.msra.mxu0 %v443
    %455 = vmatmul.bf16.gmra.mxu0 %v407
    %v456 = vpop.f32.mrf.mxu0
    %v457 = vadd.f32 %v446, %v456
    %v458 = vpop.f32.mrf.mxu0
    %v459 = vadd.f32 %v446, %v458
    %460 = vmatmul.bf16.gmra.mxu0 %v410
    %v461 = vpop.f32.mrf.mxu0
    %v462 = vadd.f32 %v446, %v461
    %v463 = vpop.f32.mrf.mxu0
    %v464 = vadd.f32 %v446, %v463
    %465 = vmatmul.bf16.gmra.mxu0 %v413
    %v466 = vpop.f32.mrf.mxu0
    %v467 = vadd.f32 %v446, %v466
    %v468 = vpop.f32.mrf.mxu0
    %v469 = vadd.f32 %v446, %v468
    %470 = vdwg.mxu0
    %v471 = vld [vmem:[%s1 + $0xb8] sm:$0xff]
    %v472 = vld [vmem:[%s1 + $0xc0] sm:$0xff]
    %v473 = vld [vmem:[%s1 + $0xc8] sm:$0xff]
    %v474 = vld [vmem:[%s1 + $0xd0] sm:$0xff]
    %v475 = vpack.c.bf16 %v472, %v471
    %v476 = vpack.c.bf16 %v474, %v473
    %v477 = vld [vmem:[%s1 + $0x68] sm:$0x1]
    %v478 = vperm.slane %v477, 0
    %479 = vmatpush.bf16.msra.mxu0 0
    %480 = vmatpush.bf16.msra.mxu0 0
    %481 = vmatpush.bf16.msra.mxu0 0
    %482 = vmatpush.bf16.msra.mxu0 0
    %483 = vmatpush.bf16.msra.mxu0 0
    %484 = vmatpush.bf16.msra.mxu0 0
    %485 = vmatpush.bf16.msra.mxu0 %v476
    %486 = vmatpush.bf16.msra.mxu0 %v475
    %487 = vmatmul.bf16.gmra.mxu0 %v407
    %v488 = vpop.f32.mrf.mxu0
    %v489 = vadd.f32 %v478, %v488
    %v490 = vpop.f32.mrf.mxu0
    %v491 = vadd.f32 %v478, %v490
    %492 = vmatmul.bf16.gmra.mxu0 %v410
    %v493 = vpop.f32.mrf.mxu0
    %v494 = vadd.f32 %v478, %v493
    %v495 = vpop.f32.mrf.mxu0
    %v496 = vadd.f32 %v478, %v495
    %497 = vmatmul.bf16.gmra.mxu0 %v413
    %v498 = vpop.f32.mrf.mxu0
    %v499 = vadd.f32 %v478, %v498
    %v500 = vpop.f32.mrf.mxu0
    %v501 = vadd.f32 %v478, %v500
    %502 = vdwg.mxu0
    %v503 = vmul.f32 %v425, %v18
    %v504 = vmul.f32 %v427, %v18
    %v505 = vmul.f32 %v430, %v18
    %v506 = vmul.f32 %v425, %v22
    %v507 = vmul.f32 %v427, %v22
    %v508 = vmul.f32 %v430, %v22
    %v509 = vmul.f32 %v425, %v26
    %v510 = vmul.f32 %v427, %v26
    %v511 = vmul.f32 %v430, %v26
    %v512 = vmul.f32 %v425, %v30
    %v513 = vmul.f32 %v427, %v30
    %v514 = vmul.f32 %v430, %v30
    %v515 = vpack.c.bf16 %v504, %v503
    %v516 = vpack.c.bf16 %v506, %v505
    %v517 = vpack.c.bf16 %v508, %v507
    %v518 = vpack.c.bf16 %v510, %v509
    %v519 = vpack.c.bf16 %v512, %v511
    %v520 = vpack.c.bf16 %v514, %v513
    %v521 = vpack.c.bf16 %v459, %v457
    %v522 = vpack.c.bf16 %v462, %v462
    %v524 = vsel %vm93, %v515, 0
    %v527 = vsel %vm93, %v516, 0
    %v530 = vsel %vm93, %v517, 0
    %v533 = vsel %vm93, %v518, 0
    %v536 = vsel %vm93, %v519, 0
    %v539 = vsel %vm93, %v520, 0
    %v542 = vsel %vm93, %v521, 0
    %v545 = vsel %vm93, %v522, 0
    %547 = vmatpush.bf16.xpose.msra.mxu0 0
    %548 = vmatpush.bf16.xpose.msra.mxu0 0
    %549 = vmatpush.bf16.xpose.msra.mxu0 0
    %550 = vmatpush.bf16.xpose.msra.mxu0 0
    %551 = vmatpush.bf16.xpose.msra.mxu0 0
    %552 = vmatpush.bf16.xpose.msra.mxu0 0
    %553 = vmatpush.bf16.xpose.msra.mxu0 %v545
    %554 = vmatpush.bf16.xpose.msra.mxu0 %v542
    %555 = vmatmul.bf16.gmra.mxu0 %v524
    %v556 = vpop.f32.mrf.mxu0
    %v557 = vadd.f32 %v32, %v556
    %v558 = vpop.f32.mrf.mxu0
    %v559 = vadd.f32 %v32, %v558
    %560 = vmatmul.bf16.gmra.mxu0 %v527
    %v561 = vpop.f32.mrf.mxu0
    %v562 = vadd.f32 %v32, %v561
    %v563 = vpop.f32.mrf.mxu0
    %v564 = vadd.f32 %v32, %v563
    %565 = vmatmul.bf16.gmra.mxu0 %v530
    %v566 = vpop.f32.mrf.mxu0
    %v567 = vadd.f32 %v32, %v566
    %v568 = vpop.f32.mrf.mxu0
    %v569 = vadd.f32 %v32, %v568
    %570 = vmatmul.bf16.gmra.mxu0 %v533
    %v571 = vpop.f32.mrf.mxu0
    %v572 = vadd.f32 %v32, %v571
    %v573 = vpop.f32.mrf.mxu0
    %v574 = vadd.f32 %v32, %v573
    %575 = vmatmul.bf16.gmra.mxu0 %v536
    %v576 = vpop.f32.mrf.mxu0
    %v577 = vadd.f32 %v32, %v576
    %v578 = vpop.f32.mrf.mxu0
    %v579 = vadd.f32 %v32, %v578
    %580 = vmatmul.bf16.gmra.mxu0 %v539
    %v581 = vpop.f32.mrf.mxu0
    %v582 = vadd.f32 %v32, %v581
    %v583 = vpop.f32.mrf.mxu0
    %v584 = vadd.f32 %v32, %v583
    %585 = vdwg.mxu0
    %vm586 = vcmask 195584
    %v587 = vsel %vm586, %v557, -inf
    %588 = vmax.xlane.f32.xlu0 %v587
    %v589 = vpop.xlane.xlu0 %588
    %v590 = vsel %vm586, %v559, -inf
    %591 = vmax.xlane.f32.xlu0 %v590
    %v592 = vpop.xlane.xlu0 %591
    %v593 = vsel %vm586, %v562, -inf
    %594 = vmax.xlane.f32.xlu0 %v593
    %v595 = vpop.xlane.xlu0 %594
    %v596 = vsel %vm586, %v564, -inf
    %597 = vmax.xlane.f32.xlu0 %v596
    %v598 = vpop.xlane.xlu0 %597
    %v599 = vsel %vm586, %v567, -inf
    %600 = vmax.xlane.f32.xlu0 %v599
    %v601 = vpop.xlane.xlu0 %600
    %v602 = vsel %vm586, %v569, -inf
    %603 = vmax.xlane.f32.xlu0 %v602
    %v604 = vpop.xlane.xlu0 %603
    %v605 = vsel %vm586, %v572, -inf
    %606 = vmax.xlane.f32.xlu0 %v605
    %v607 = vpop.xlane.xlu0 %606
    %v608 = vsel %vm586, %v574, -inf
    %609 = vmax.xlane.f32.xlu0 %v608
    %v610 = vpop.xlane.xlu0 %609
    %v611 = vsel %vm586, %v577, -inf
    %612 = vmax.xlane.f32.xlu0 %v611
    %v613 = vpop.xlane.xlu0 %612
    %v614 = vsel %vm586, %v579, -inf
    %615 = vmax.xlane.f32.xlu0 %v614
    %v616 = vpop.xlane.xlu0 %615
    %v617 = vsel %vm586, %v582, -inf
    %618 = vmax.xlane.f32.xlu0 %v617
    %v619 = vpop.xlane.xlu0 %618
    %v620 = vsel %vm586, %v584, -inf
    %621 = vmax.xlane.f32.xlu0 %v620
    %v622 = vpop.xlane.xlu0 %621
    %v623 = vsub.f32 %v557, %v589
    %v624 = vsub.f32 %v559, %v592
    %v625 = vsub.f32 %v562, %v595
    %v626 = vsub.f32 %v564, %v598
    %v627 = vsub.f32 %v567, %v601
    %v628 = vsub.f32 %v569, %v604
    %v629 = vsub.f32 %v572, %v607
    %v630 = vsub.f32 %v574, %v610
    %v631 = vsub.f32 %v577, %v613
    %v632 = vsub.f32 %v579, %v616
    %v633 = vsub.f32 %v582, %v619
    %v634 = vsub.f32 %v584, %v622
    %v635 = vmul.f32 %v623, 1.442695
    %v636 = vpow.pop %v635
    %v637 = vmul.f32 %v624, 1.442695
    %v638 = vpow.pop %v637
    %v639 = vmul.f32 %v625, 1.442695
    %v640 = vpow.pop %v639
    %v641 = vmul.f32 %v626, 1.442695
    %v642 = vpow.pop %v641
    %v643 = vmul.f32 %v627, 1.442695
    %v644 = vpow.pop %v643
    %v645 = vmul.f32 %v628, 1.442695
    %v646 = vpow.pop %v645
    %v647 = vmul.f32 %v629, 1.442695
    %v648 = vpow.pop %v647
    %v649 = vmul.f32 %v630, 1.442695
    %v650 = vpow.pop %v649
    %v651 = vmul.f32 %v631, 1.442695
    %v652 = vpow.pop %v651
    %v653 = vmul.f32 %v632, 1.442695
    %v654 = vpow.pop %v653
    %v655 = vmul.f32 %v633, 1.442695
    %v656 = vpow.pop %v655
    %v657 = vmul.f32 %v634, 1.442695
    %v658 = vpow.pop %v657
    %v659 = vsel %vm586, %v636, 0.0
    %660 = vadd.xlane.f32.xlu0 %v659
    %v661 = vpop.xlane.xlu0 %660
    %v662 = vsel %vm586, %v638, 0.0
    %663 = vadd.xlane.f32.xlu0 %v662
    %v664 = vpop.xlane.xlu0 %663
    %v665 = vsel %vm586, %v640, 0.0
    %666 = vadd.xlane.f32.xlu0 %v665
    %v667 = vpop.xlane.xlu0 %666
    %v668 = vsel %vm586, %v642, 0.0
    %669 = vadd.xlane.f32.xlu0 %v668
    %v670 = vpop.xlane.xlu0 %669
    %v671 = vsel %vm586, %v644, 0.0
    %672 = vadd.xlane.f32.xlu0 %v671
    %v673 = vpop.xlane.xlu0 %672
    %v674 = vsel %vm586, %v646, 0.0
    %675 = vadd.xlane.f32.xlu0 %v674
    %v676 = vpop.xlane.xlu0 %675
    %v677 = vsel %vm586, %v648, 0.0
    %678 = vadd.xlane.f32.xlu0 %v677
    %v679 = vpop.xlane.xlu0 %678
    %v680 = vsel %vm586, %v650, 0.0
    %681 = vadd.xlane.f32.xlu0 %v680
    %v682 = vpop.xlane.xlu0 %681
    %v683 = vsel %vm586, %v652, 0.0
    %684 = vadd.xlane.f32.xlu0 %v683
    %v685 = vpop.xlane.xlu0 %684
    %v686 = vsel %vm586, %v654, 0.0
    %687 = vadd.xlane.f32.xlu0 %v686
    %v688 = vpop.xlane.xlu0 %687
    %v689 = vsel %vm586, %v656, 0.0
    %690 = vadd.xlane.f32.xlu0 %v689
    %v691 = vpop.xlane.xlu0 %690
    %v692 = vsel %vm586, %v658, 0.0
    %693 = vadd.xlane.f32.xlu0 %v692
    %v694 = vpop.xlane.xlu0 %693
    %v695 = vrcp.pop %v661
    %v696 = vmul.f32 %v661, %v695
    %v697 = vsub.f32 1.0, %v696
    %v698 = vmul.f32 %v695, %v697
    %v699 = vadd.f32 %v695, %v698
    %vm700 = vweird.f32 %v661
    %vm701 = vweird.f32 %v695
    %vm702 = vmor %vm700, %vm701
    %v703 = vsel %vm702, %v695, %v699
    %v704 = vand.u32 2147483647, %v661
    %vm705 = vcmp.eq.f32.partialorder %v704, 8.507059e+37
    %v706 = vand.u32 %v661, 2147483648
    %v707 = vor.u32 1.1754944e-38, %v706
    %v708 = vsel %vm705, %v707, %v703
    %v709 = vmul.f32 %v636, %v708
    %v710 = vrcp.pop %v664
    %v711 = vmul.f32 %v664, %v710
    %v712 = vsub.f32 1.0, %v711
    %v713 = vmul.f32 %v710, %v712
    %v714 = vadd.f32 %v710, %v713
    %vm715 = vweird.f32 %v664
    %vm716 = vweird.f32 %v710
    %vm717 = vmor %vm715, %vm716
    %v718 = vsel %vm717, %v710, %v714
    %v719 = vand.u32 2147483647, %v664
    %vm720 = vcmp.eq.f32.partialorder %v719, 8.507059e+37
    %v721 = vand.u32 %v664, 2147483648
    %v722 = vor.u32 1.1754944e-38, %v721
    %v723 = vsel %vm720, %v722, %v718
    %v724 = vmul.f32 %v638, %v723
    %v725 = vrcp.pop %v667
    %v726 = vmul.f32 %v667, %v725
    %v727 = vsub.f32 1.0, %v726
    %v728 = vmul.f32 %v725, %v727
    %v729 = vadd.f32 %v725, %v728
    %vm730 = vweird.f32 %v667
    %vm731 = vweird.f32 %v725
    %vm732 = vmor %vm730, %vm731
    %v733 = vsel %vm732, %v725, %v729
    %v734 = vand.u32 2147483647, %v667
    %vm735 = vcmp.eq.f32.partialorder %v734, 8.507059e+37
    %v736 = vand.u32 %v667, 2147483648
    %v737 = vor.u32 1.1754944e-38, %v736
    %v738 = vsel %vm735, %v737, %v733
    %v739 = vmul.f32 %v640, %v738
    %v740 = vrcp.pop %v670
    %v741 = vmul.f32 %v670, %v740
    %v742 = vsub.f32 1.0, %v741
    %v743 = vmul.f32 %v740, %v742
    %v744 = vadd.f32 %v740, %v743
    %vm745 = vweird.f32 %v670
    %vm746 = vweird.f32 %v740
    %vm747 = vmor %vm745, %vm746
    %v748 = vsel %vm747, %v740, %v744
    %v749 = vand.u32 2147483647, %v670
    %vm750 = vcmp.eq.f32.partialorder %v749, 8.507059e+37
    %v751 = vand.u32 %v670, 2147483648
    %v752 = vor.u32 1.1754944e-38, %v751
    %v753 = vsel %vm750, %v752, %v748
    %v754 = vmul.f32 %v642, %v753
    %v755 = vrcp.pop %v673
    %v756 = vmul.f32 %v673, %v755
    %v757 = vsub.f32 1.0, %v756
    %v758 = vmul.f32 %v755, %v757
    %v759 = vadd.f32 %v755, %v758
    %vm760 = vweird.f32 %v673
    %vm761 = vweird.f32 %v755
    %vm762 = vmor %vm760, %vm761
    %v763 = vsel %vm762, %v755, %v759
    %v764 = vand.u32 2147483647, %v673
    %vm765 = vcmp.eq.f32.partialorder %v764, 8.507059e+37
    %v766 = vand.u32 %v673, 2147483648
    %v767 = vor.u32 1.1754944e-38, %v766
    %v768 = vsel %vm765, %v767, %v763
    %v769 = vmul.f32 %v644, %v768
    %v770 = vrcp.pop %v676
    %v771 = vmul.f32 %v676, %v770
    %v772 = vsub.f32 1.0, %v771
    %v773 = vmul.f32 %v770, %v772
    %v774 = vadd.f32 %v770, %v773
    %vm775 = vweird.f32 %v676
    %vm776 = vweird.f32 %v770
    %vm777 = vmor %vm775, %vm776
    %v778 = vsel %vm777, %v770, %v774
    %v779 = vand.u32 2147483647, %v676
    %vm780 = vcmp.eq.f32.partialorder %v779, 8.507059e+37
    %v781 = vand.u32 %v676, 2147483648
    %v782 = vor.u32 1.1754944e-38, %v781
    %v783 = vsel %vm780, %v782, %v778
    %v784 = vmul.f32 %v646, %v783
    %v785 = vrcp.pop %v679
    %v786 = vmul.f32 %v679, %v785
    %v787 = vsub.f32 1.0, %v786
    %v788 = vmul.f32 %v785, %v787
    %v789 = vadd.f32 %v785, %v788
    %vm790 = vweird.f32 %v679
    %vm791 = vweird.f32 %v785
    %vm792 = vmor %vm790, %vm791
    %v793 = vsel %vm792, %v785, %v789
    %v794 = vand.u32 2147483647, %v679
    %vm795 = vcmp.eq.f32.partialorder %v794, 8.507059e+37
    %v796 = vand.u32 %v679, 2147483648
    %v797 = vor.u32 1.1754944e-38, %v796
    %v798 = vsel %vm795, %v797, %v793
    %v799 = vmul.f32 %v648, %v798
    %v800 = vrcp.pop %v682
    %v801 = vmul.f32 %v682, %v800
    %v802 = vsub.f32 1.0, %v801
    %v803 = vmul.f32 %v800, %v802
    %v804 = vadd.f32 %v800, %v803
    %vm805 = vweird.f32 %v682
    %vm806 = vweird.f32 %v800
    %vm807 = vmor %vm805, %vm806
    %v808 = vsel %vm807, %v800, %v804
    %v809 = vand.u32 2147483647, %v682
    %vm810 = vcmp.eq.f32.partialorder %v809, 8.507059e+37
    %v811 = vand.u32 %v682, 2147483648
    %v812 = vor.u32 1.1754944e-38, %v811
    %v813 = vsel %vm810, %v812, %v808
    %v814 = vmul.f32 %v650, %v813
    %v815 = vrcp.pop %v685
    %v816 = vmul.f32 %v685, %v815
    %v817 = vsub.f32 1.0, %v816
    %v818 = vmul.f32 %v815, %v817
    %v819 = vadd.f32 %v815, %v818
    %vm820 = vweird.f32 %v685
    %vm821 = vweird.f32 %v815
    %vm822 = vmor %vm820, %vm821
    %v823 = vsel %vm822, %v815, %v819
    %v824 = vand.u32 2147483647, %v685
    %vm825 = vcmp.eq.f32.partialorder %v824, 8.507059e+37
    %v826 = vand.u32 %v685, 2147483648
    %v827 = vor.u32 1.1754944e-38, %v826
    %v828 = vsel %vm825, %v827, %v823
    %v829 = vmul.f32 %v652, %v828
    %v830 = vrcp.pop %v688
    %v831 = vmul.f32 %v688, %v830
    %v832 = vsub.f32 1.0, %v831
    %v833 = vmul.f32 %v830, %v832
    %v834 = vadd.f32 %v830, %v833
    %vm835 = vweird.f32 %v688
    %vm836 = vweird.f32 %v830
    %vm837 = vmor %vm835, %vm836
    %v838 = vsel %vm837, %v830, %v834
    %v839 = vand.u32 2147483647, %v688
    %vm840 = vcmp.eq.f32.partialorder %v839, 8.507059e+37
    %v841 = vand.u32 %v688, 2147483648
    %v842 = vor.u32 1.1754944e-38, %v841
    %v843 = vsel %vm840, %v842, %v838
    %v844 = vmul.f32 %v654, %v843
    %v845 = vrcp.pop %v691
    %v846 = vmul.f32 %v691, %v845
    %v847 = vsub.f32 1.0, %v846
    %v848 = vmul.f32 %v845, %v847
    %v849 = vadd.f32 %v845, %v848
    %vm850 = vweird.f32 %v691
    %vm851 = vweird.f32 %v845
    %vm852 = vmor %vm850, %vm851
    %v853 = vsel %vm852, %v845, %v849
    %v854 = vand.u32 2147483647, %v691
    %vm855 = vcmp.eq.f32.partialorder %v854, 8.507059e+37
    %v856 = vand.u32 %v691, 2147483648
    %v857 = vor.u32 1.1754944e-38, %v856
    %v858 = vsel %vm855, %v857, %v853
    %v859 = vmul.f32 %v656, %v858
    %v860 = vrcp.pop %v694
    %v861 = vmul.f32 %v694, %v860
    %v862 = vsub.f32 1.0, %v861
    %v863 = vmul.f32 %v860, %v862
    %v864 = vadd.f32 %v860, %v863
    %vm865 = vweird.f32 %v694
    %vm866 = vweird.f32 %v860
    %vm867 = vmor %vm865, %vm866
    %v868 = vsel %vm867, %v860, %v864
    %v869 = vand.u32 2147483647, %v694
    %vm870 = vcmp.eq.f32.partialorder %v869, 8.507059e+37
    %v871 = vand.u32 %v694, 2147483648
    %v872 = vor.u32 1.1754944e-38, %v871
    %v873 = vsel %vm870, %v872, %v868
    %v874 = vmul.f32 %v658, %v873
    %v875 = vpack.c.bf16 %v724, %v709
    %v876 = vpack.c.bf16 %v754, %v739
    %v877 = vpack.c.bf16 %v784, %v769
    %v878 = vpack.c.bf16 %v814, %v799
    %v879 = vpack.c.bf16 %v844, %v829
    %v880 = vpack.c.bf16 %v874, %v859
    %v881 = vpack.c.bf16 %v491, %v489
    %v882 = vpack.c.bf16 %v494, %v494
    %v884 = vsel %vm586, %v875, 0
    %v887 = vsel %vm586, %v876, 0
    %v890 = vsel %vm586, %v877, 0
    %v893 = vsel %vm586, %v878, 0
    %v896 = vsel %vm586, %v879, 0
    %v899 = vsel %vm586, %v880, 0
    %vm901 = vcmask 1043456
    %v903 = vsel %vm901, %v882, 0
    %905 = vmatpush.bf16.msra.mxu0 0
    %906 = vmatpush.bf16.msra.mxu0 0
    %907 = vmatpush.bf16.msra.mxu0 0
    %908 = vmatpush.bf16.msra.mxu0 0
    %909 = vmatpush.bf16.msra.mxu0 0
    %910 = vmatpush.bf16.msra.mxu0 0
    %911 = vmatpush.bf16.msra.mxu0 %v903
    %912 = vmatpush.bf16.msra.mxu0 %v881
    %913 = vmatmul.bf16.gmra.mxu0 %v884
    %v914 = vpop.f32.mrf.mxu0
    %v915 = vadd.f32 0.0, %v914
    %v916 = vpop.f32.mrf.mxu0
    %v917 = vadd.f32 0.0, %v916
    %918 = vmatmul.bf16.gmra.mxu0 %v887
    %v919 = vpop.f32.mrf.mxu0
    %v920 = vadd.f32 0.0, %v919
    %v921 = vpop.f32.mrf.mxu0
    %v922 = vadd.f32 0.0, %v921
    %923 = vmatmul.bf16.gmra.mxu0 %v890
    %v924 = vpop.f32.mrf.mxu0
    %v925 = vadd.f32 0.0, %v924
    %v926 = vpop.f32.mrf.mxu0
    %v927 = vadd.f32 0.0, %v926
    %928 = vmatmul.bf16.gmra.mxu0 %v893
    %v929 = vpop.f32.mrf.mxu0
    %v930 = vadd.f32 0.0, %v929
    %v931 = vpop.f32.mrf.mxu0
    %v932 = vadd.f32 0.0, %v931
    %933 = vmatmul.bf16.gmra.mxu0 %v896
    %v934 = vpop.f32.mrf.mxu0
    %v935 = vadd.f32 0.0, %v934
    %v936 = vpop.f32.mrf.mxu0
    %v937 = vadd.f32 0.0, %v936
    %938 = vmatmul.bf16.gmra.mxu0 %v899
    %v939 = vpop.f32.mrf.mxu0
    %v940 = vadd.f32 0.0, %v939
    %v941 = vpop.f32.mrf.mxu0
    %v942 = vadd.f32 0.0, %v941
    %943 = vdwg.mxu0
    %v944 = vmul.f32 %v915, %v18
    %v945 = vmul.f32 %v917, %v18
    %v946 = vmul.f32 %v920, %v18
    %v947 = vmul.f32 %v922, %v22
    %v948 = vmul.f32 %v925, %v22
    %v949 = vmul.f32 %v927, %v22
    %v950 = vadd.f32 %v944, %v947
    %v951 = vadd.f32 %v945, %v948
    %v952 = vadd.f32 %v946, %v949
    %v953 = vmul.f32 %v930, %v26
    %v954 = vmul.f32 %v932, %v26
    %v955 = vmul.f32 %v935, %v26
    %v956 = vadd.f32 %v950, %v953
    %v957 = vadd.f32 %v951, %v954
    %v958 = vadd.f32 %v952, %v955
    %v959 = vmul.f32 %v937, %v30
    %v960 = vmul.f32 %v940, %v30
    %v961 = vmul.f32 %v942, %v30
    %v962 = vadd.f32 %v956, %v959
    %v963 = vadd.f32 %v957, %v960
    %v964 = vadd.f32 %v958, %v961
    %v965 = vmul.f32 %v432, %v18
    %v966 = vmul.f32 %v435, %v18
    %v967 = vmul.f32 %v437, %v18
    %v968 = vmul.f32 %v432, %v22
    %v969 = vmul.f32 %v435, %v22
    %v970 = vmul.f32 %v437, %v22
    %v971 = vmul.f32 %v432, %v26
    %v972 = vmul.f32 %v435, %v26
    %v973 = vmul.f32 %v437, %v26
    %v974 = vmul.f32 %v432, %v30
    %v975 = vmul.f32 %v435, %v30
    %v976 = vmul.f32 %v437, %v30
    %v977 = vpack.c.bf16 %v966, %v965
    %v978 = vpack.c.bf16 %v968, %v967
    %v979 = vpack.c.bf16 %v970, %v969
    %v980 = vpack.c.bf16 %v972, %v971
    %v981 = vpack.c.bf16 %v974, %v973
    %v982 = vpack.c.bf16 %v976, %v975
    %v983 = vpack.c.bf16 %v467, %v464
    %v984 = vpack.c.bf16 %v469, %v469
    %v986 = vsel %vm93, %v977, 0
    %v989 = vsel %vm93, %v978, 0
    %v992 = vsel %vm93, %v979, 0
    %v995 = vsel %vm93, %v980, 0
    %v998 = vsel %vm93, %v981, 0
    %v1001 = vsel %vm93, %v982, 0
    %v1004 = vsel %vm93, %v983, 0
    %v1007 = vsel %vm93, %v984, 0
    %1009 = vmatpush.bf16.xpose.msra.mxu0 0
    %1010 = vmatpush.bf16.xpose.msra.mxu0 0
    %1011 = vmatpush.bf16.xpose.msra.mxu0 0
    %1012 = vmatpush.bf16.xpose.msra.mxu0 0
    %1013 = vmatpush.bf16.xpose.msra.mxu0 0
    %1014 = vmatpush.bf16.xpose.msra.mxu0 0
    %1015 = vmatpush.bf16.xpose.msra.mxu0 %v1007
    %1016 = vmatpush.bf16.xpose.msra.mxu0 %v1004
    %1017 = vmatmul.bf16.gmra.mxu0 %v986
    %v1018 = vpop.f32.mrf.mxu0
    %v1019 = vadd.f32 %v32, %v1018
    %v1020 = vpop.f32.mrf.mxu0
    %v1021 = vadd.f32 %v32, %v1020
    %1022 = vmatmul.bf16.gmra.mxu0 %v989
    %v1023 = vpop.f32.mrf.mxu0
    %v1024 = vadd.f32 %v32, %v1023
    %v1025 = vpop.f32.mrf.mxu0
    %v1026 = vadd.f32 %v32, %v1025
    %1027 = vmatmul.bf16.gmra.mxu0 %v992
    %v1028 = vpop.f32.mrf.mxu0
    %v1029 = vadd.f32 %v32, %v1028
    %v1030 = vpop.f32.mrf.mxu0
    %v1031 = vadd.f32 %v32, %v1030
    %1032 = vmatmul.bf16.gmra.mxu0 %v995
    %v1033 = vpop.f32.mrf.mxu0
    %v1034 = vadd.f32 %v32, %v1033
    %v1035 = vpop.f32.mrf.mxu0
    %v1036 = vadd.f32 %v32, %v1035
    %1037 = vmatmul.bf16.gmra.mxu0 %v998
    %v1038 = vpop.f32.mrf.mxu0
    %v1039 = vadd.f32 %v32, %v1038
    %v1040 = vpop.f32.mrf.mxu0
    %v1041 = vadd.f32 %v32, %v1040
    %1042 = vmatmul.bf16.gmra.mxu0 %v1001
    %v1043 = vpop.f32.mrf.mxu0
    %v1044 = vadd.f32 %v32, %v1043
    %v1045 = vpop.f32.mrf.mxu0
    %v1046 = vadd.f32 %v32, %v1045
    %1047 = vdwg.mxu0
    %v1048 = vsel %vm586, %v1019, -inf
    %1049 = vmax.xlane.f32.xlu0 %v1048
    %v1050 = vpop.xlane.xlu0 %1049
    %v1051 = vsel %vm586, %v1021, -inf
    %1052 = vmax.xlane.f32.xlu0 %v1051
    %v1053 = vpop.xlane.xlu0 %1052
    %v1054 = vsel %vm586, %v1024, -inf
    %1055 = vmax.xlane.f32.xlu0 %v1054
    %v1056 = vpop.xlane.xlu0 %1055
    %v1057 = vsel %vm586, %v1026, -inf
    %1058 = vmax.xlane.f32.xlu0 %v1057
    %v1059 = vpop.xlane.xlu0 %1058
    %v1060 = vsel %vm586, %v1029, -inf
    %1061 = vmax.xlane.f32.xlu0 %v1060
    %v1062 = vpop.xlane.xlu0 %1061
    %v1063 = vsel %vm586, %v1031, -inf
    %1064 = vmax.xlane.f32.xlu0 %v1063
    %v1065 = vpop.xlane.xlu0 %1064
    %v1066 = vsel %vm586, %v1034, -inf
    %1067 = vmax.xlane.f32.xlu0 %v1066
    %v1068 = vpop.xlane.xlu0 %1067
    %v1069 = vsel %vm586, %v1036, -inf
    %1070 = vmax.xlane.f32.xlu0 %v1069
    %v1071 = vpop.xlane.xlu0 %1070
    %v1072 = vsel %vm586, %v1039, -inf
    %1073 = vmax.xlane.f32.xlu0 %v1072
    %v1074 = vpop.xlane.xlu0 %1073
    %v1075 = vsel %vm586, %v1041, -inf
    %1076 = vmax.xlane.f32.xlu0 %v1075
    %v1077 = vpop.xlane.xlu0 %1076
    %v1078 = vsel %vm586, %v1044, -inf
    %1079 = vmax.xlane.f32.xlu0 %v1078
    %v1080 = vpop.xlane.xlu0 %1079
    %v1081 = vsel %vm586, %v1046, -inf
    %1082 = vmax.xlane.f32.xlu0 %v1081
    %v1083 = vpop.xlane.xlu0 %1082
    %v1084 = vsub.f32 %v1019, %v1050
    %v1085 = vsub.f32 %v1021, %v1053
    %v1086 = vsub.f32 %v1024, %v1056
    %v1087 = vsub.f32 %v1026, %v1059
    %v1088 = vsub.f32 %v1029, %v1062
    %v1089 = vsub.f32 %v1031, %v1065
    %v1090 = vsub.f32 %v1034, %v1068
    %v1091 = vsub.f32 %v1036, %v1071
    %v1092 = vsub.f32 %v1039, %v1074
    %v1093 = vsub.f32 %v1041, %v1077
    %v1094 = vsub.f32 %v1044, %v1080
    %v1095 = vsub.f32 %v1046, %v1083
    %v1096 = vmul.f32 %v1084, 1.442695
    %v1097 = vpow.pop %v1096
    %v1098 = vmul.f32 %v1085, 1.442695
    %v1099 = vpow.pop %v1098
    %v1100 = vmul.f32 %v1086, 1.442695
    %v1101 = vpow.pop %v1100
    %v1102 = vmul.f32 %v1087, 1.442695
    %v1103 = vpow.pop %v1102
    %v1104 = vmul.f32 %v1088, 1.442695
    %v1105 = vpow.pop %v1104
    %v1106 = vmul.f32 %v1089, 1.442695
    %v1107 = vpow.pop %v1106
    %v1108 = vmul.f32 %v1090, 1.442695
    %v1109 = vpow.pop %v1108
    %v1110 = vmul.f32 %v1091, 1.442695
    %v1111 = vpow.pop %v1110
    %v1112 = vmul.f32 %v1092, 1.442695
    %v1113 = vpow.pop %v1112
    %v1114 = vmul.f32 %v1093, 1.442695
    %v1115 = vpow.pop %v1114
    %v1116 = vmul.f32 %v1094, 1.442695
    %v1117 = vpow.pop %v1116
    %v1118 = vmul.f32 %v1095, 1.442695
    %v1119 = vpow.pop %v1118
    %v1120 = vsel %vm586, %v1097, 0.0
    %1121 = vadd.xlane.f32.xlu0 %v1120
    %v1122 = vpop.xlane.xlu0 %1121
    %v1123 = vsel %vm586, %v1099, 0.0
    %1124 = vadd.xlane.f32.xlu0 %v1123
    %v1125 = vpop.xlane.xlu0 %1124
    %v1126 = vsel %vm586, %v1101, 0.0
    %1127 = vadd.xlane.f32.xlu0 %v1126
    %v1128 = vpop.xlane.xlu0 %1127
    %v1129 = vsel %vm586, %v1103, 0.0
    %1130 = vadd.xlane.f32.xlu0 %v1129
    %v1131 = vpop.xlane.xlu0 %1130
    %v1132 = vsel %vm586, %v1105, 0.0
    %1133 = vadd.xlane.f32.xlu0 %v1132
    %v1134 = vpop.xlane.xlu0 %1133
    %v1135 = vsel %vm586, %v1107, 0.0
    %1136 = vadd.xlane.f32.xlu0 %v1135
    %v1137 = vpop.xlane.xlu0 %1136
    %v1138 = vsel %vm586, %v1109, 0.0
    %1139 = vadd.xlane.f32.xlu0 %v1138
    %v1140 = vpop.xlane.xlu0 %1139
    %v1141 = vsel %vm586, %v1111, 0.0
    %1142 = vadd.xlane.f32.xlu0 %v1141
    %v1143 = vpop.xlane.xlu0 %1142
    %v1144 = vsel %vm586, %v1113, 0.0
    %1145 = vadd.xlane.f32.xlu0 %v1144
    %v1146 = vpop.xlane.xlu0 %1145
    %v1147 = vsel %vm586, %v1115, 0.0
    %1148 = vadd.xlane.f32.xlu0 %v1147
    %v1149 = vpop.xlane.xlu0 %1148
    %v1150 = vsel %vm586, %v1117, 0.0
    %1151 = vadd.xlane.f32.xlu0 %v1150
    %v1152 = vpop.xlane.xlu0 %1151
    %v1153 = vsel %vm586, %v1119, 0.0
    %1154 = vadd.xlane.f32.xlu0 %v1153
    %v1155 = vpop.xlane.xlu0 %1154
    %v1156 = vrcp.pop %v1122
    %v1157 = vmul.f32 %v1122, %v1156
    %v1158 = vsub.f32 1.0, %v1157
    %v1159 = vmul.f32 %v1156, %v1158
    %v1160 = vadd.f32 %v1156, %v1159
    %vm1161 = vweird.f32 %v1122
    %vm1162 = vweird.f32 %v1156
    %vm1163 = vmor %vm1161, %vm1162
    %v1164 = vsel %vm1163, %v1156, %v1160
    %v1165 = vand.u32 2147483647, %v1122
    %vm1166 = vcmp.eq.f32.partialorder %v1165, 8.507059e+37
    %v1167 = vand.u32 %v1122, 2147483648
    %v1168 = vor.u32 1.1754944e-38, %v1167
    %v1169 = vsel %vm1166, %v1168, %v1164
    %v1170 = vmul.f32 %v1097, %v1169
    %v1171 = vrcp.pop %v1125
    %v1172 = vmul.f32 %v1125, %v1171
    %v1173 = vsub.f32 1.0, %v1172
    %v1174 = vmul.f32 %v1171, %v1173
    %v1175 = vadd.f32 %v1171, %v1174
    %vm1176 = vweird.f32 %v1125
    %vm1177 = vweird.f32 %v1171
    %vm1178 = vmor %vm1176, %vm1177
    %v1179 = vsel %vm1178, %v1171, %v1175
    %v1180 = vand.u32 2147483647, %v1125
    %vm1181 = vcmp.eq.f32.partialorder %v1180, 8.507059e+37
    %v1182 = vand.u32 %v1125, 2147483648
    %v1183 = vor.u32 1.1754944e-38, %v1182
    %v1184 = vsel %vm1181, %v1183, %v1179
    %v1185 = vmul.f32 %v1099, %v1184
    %v1186 = vrcp.pop %v1128
    %v1187 = vmul.f32 %v1128, %v1186
    %v1188 = vsub.f32 1.0, %v1187
    %v1189 = vmul.f32 %v1186, %v1188
    %v1190 = vadd.f32 %v1186, %v1189
    %vm1191 = vweird.f32 %v1128
    %vm1192 = vweird.f32 %v1186
    %vm1193 = vmor %vm1191, %vm1192
    %v1194 = vsel %vm1193, %v1186, %v1190
    %v1195 = vand.u32 2147483647, %v1128
    %vm1196 = vcmp.eq.f32.partialorder %v1195, 8.507059e+37
    %v1197 = vand.u32 %v1128, 2147483648
    %v1198 = vor.u32 1.1754944e-38, %v1197
    %v1199 = vsel %vm1196, %v1198, %v1194
    %v1200 = vmul.f32 %v1101, %v1199
    %v1201 = vrcp.pop %v1131
    %v1202 = vmul.f32 %v1131, %v1201
    %v1203 = vsub.f32 1.0, %v1202
    %v1204 = vmul.f32 %v1201, %v1203
    %v1205 = vadd.f32 %v1201, %v1204
    %vm1206 = vweird.f32 %v1131
    %vm1207 = vweird.f32 %v1201
    %vm1208 = vmor %vm1206, %vm1207
    %v1209 = vsel %vm1208, %v1201, %v1205
    %v1210 = vand.u32 2147483647, %v1131
    %vm1211 = vcmp.eq.f32.partialorder %v1210, 8.507059e+37
    %v1212 = vand.u32 %v1131, 2147483648
    %v1213 = vor.u32 1.1754944e-38, %v1212
    %v1214 = vsel %vm1211, %v1213, %v1209
    %v1215 = vmul.f32 %v1103, %v1214
    %v1216 = vrcp.pop %v1134
    %v1217 = vmul.f32 %v1134, %v1216
    %v1218 = vsub.f32 1.0, %v1217
    %v1219 = vmul.f32 %v1216, %v1218
    %v1220 = vadd.f32 %v1216, %v1219
    %vm1221 = vweird.f32 %v1134
    %vm1222 = vweird.f32 %v1216
    %vm1223 = vmor %vm1221, %vm1222
    %v1224 = vsel %vm1223, %v1216, %v1220
    %v1225 = vand.u32 2147483647, %v1134
    %vm1226 = vcmp.eq.f32.partialorder %v1225, 8.507059e+37
    %v1227 = vand.u32 %v1134, 2147483648
    %v1228 = vor.u32 1.1754944e-38, %v1227
    %v1229 = vsel %vm1226, %v1228, %v1224
    %v1230 = vmul.f32 %v1105, %v1229
    %v1231 = vrcp.pop %v1137
    %v1232 = vmul.f32 %v1137, %v1231
    %v1233 = vsub.f32 1.0, %v1232
    %v1234 = vmul.f32 %v1231, %v1233
    %v1235 = vadd.f32 %v1231, %v1234
    %vm1236 = vweird.f32 %v1137
    %vm1237 = vweird.f32 %v1231
    %vm1238 = vmor %vm1236, %vm1237
    %v1239 = vsel %vm1238, %v1231, %v1235
    %v1240 = vand.u32 2147483647, %v1137
    %vm1241 = vcmp.eq.f32.partialorder %v1240, 8.507059e+37
    %v1242 = vand.u32 %v1137, 2147483648
    %v1243 = vor.u32 1.1754944e-38, %v1242
    %v1244 = vsel %vm1241, %v1243, %v1239
    %v1245 = vmul.f32 %v1107, %v1244
    %v1246 = vrcp.pop %v1140
    %v1247 = vmul.f32 %v1140, %v1246
    %v1248 = vsub.f32 1.0, %v1247
    %v1249 = vmul.f32 %v1246, %v1248
    %v1250 = vadd.f32 %v1246, %v1249
    %vm1251 = vweird.f32 %v1140
    %vm1252 = vweird.f32 %v1246
    %vm1253 = vmor %vm1251, %vm1252
    %v1254 = vsel %vm1253, %v1246, %v1250
    %v1255 = vand.u32 2147483647, %v1140
    %vm1256 = vcmp.eq.f32.partialorder %v1255, 8.507059e+37
    %v1257 = vand.u32 %v1140, 2147483648
    %v1258 = vor.u32 1.1754944e-38, %v1257
    %v1259 = vsel %vm1256, %v1258, %v1254
    %v1260 = vmul.f32 %v1109, %v1259
    %v1261 = vrcp.pop %v1143
    %v1262 = vmul.f32 %v1143, %v1261
    %v1263 = vsub.f32 1.0, %v1262
    %v1264 = vmul.f32 %v1261, %v1263
    %v1265 = vadd.f32 %v1261, %v1264
    %vm1266 = vweird.f32 %v1143
    %vm1267 = vweird.f32 %v1261
    %vm1268 = vmor %vm1266, %vm1267
    %v1269 = vsel %vm1268, %v1261, %v1265
    %v1270 = vand.u32 2147483647, %v1143
    %vm1271 = vcmp.eq.f32.partialorder %v1270, 8.507059e+37
    %v1272 = vand.u32 %v1143, 2147483648
    %v1273 = vor.u32 1.1754944e-38, %v1272
    %v1274 = vsel %vm1271, %v1273, %v1269
    %v1275 = vmul.f32 %v1111, %v1274
    %v1276 = vrcp.pop %v1146
    %v1277 = vmul.f32 %v1146, %v1276
    %v1278 = vsub.f32 1.0, %v1277
    %v1279 = vmul.f32 %v1276, %v1278
    %v1280 = vadd.f32 %v1276, %v1279
    %vm1281 = vweird.f32 %v1146
    %vm1282 = vweird.f32 %v1276
    %vm1283 = vmor %vm1281, %vm1282
    %v1284 = vsel %vm1283, %v1276, %v1280
    %v1285 = vand.u32 2147483647, %v1146
    %vm1286 = vcmp.eq.f32.partialorder %v1285, 8.507059e+37
    %v1287 = vand.u32 %v1146, 2147483648
    %v1288 = vor.u32 1.1754944e-38, %v1287
    %v1289 = vsel %vm1286, %v1288, %v1284
    %v1290 = vmul.f32 %v1113, %v1289
    %v1291 = vrcp.pop %v1149
    %v1292 = vmul.f32 %v1149, %v1291
    %v1293 = vsub.f32 1.0, %v1292
    %v1294 = vmul.f32 %v1291, %v1293
    %v1295 = vadd.f32 %v1291, %v1294
    %vm1296 = vweird.f32 %v1149
    %vm1297 = vweird.f32 %v1291
    %vm1298 = vmor %vm1296, %vm1297
    %v1299 = vsel %vm1298, %v1291, %v1295
    %v1300 = vand.u32 2147483647, %v1149
    %vm1301 = vcmp.eq.f32.partialorder %v1300, 8.507059e+37
    %v1302 = vand.u32 %v1149, 2147483648
    %v1303 = vor.u32 1.1754944e-38, %v1302
    %v1304 = vsel %vm1301, %v1303, %v1299
    %v1305 = vmul.f32 %v1115, %v1304
    %v1306 = vrcp.pop %v1152
    %v1307 = vmul.f32 %v1152, %v1306
    %v1308 = vsub.f32 1.0, %v1307
    %v1309 = vmul.f32 %v1306, %v1308
    %v1310 = vadd.f32 %v1306, %v1309
    %vm1311 = vweird.f32 %v1152
    %vm1312 = vweird.f32 %v1306
    %vm1313 = vmor %vm1311, %vm1312
    %v1314 = vsel %vm1313, %v1306, %v1310
    %v1315 = vand.u32 2147483647, %v1152
    %vm1316 = vcmp.eq.f32.partialorder %v1315, 8.507059e+37
    %v1317 = vand.u32 %v1152, 2147483648
    %v1318 = vor.u32 1.1754944e-38, %v1317
    %v1319 = vsel %vm1316, %v1318, %v1314
    %v1320 = vmul.f32 %v1117, %v1319
    %v1321 = vrcp.pop %v1155
    %v1322 = vmul.f32 %v1155, %v1321
    %v1323 = vsub.f32 1.0, %v1322
    %v1324 = vmul.f32 %v1321, %v1323
    %v1325 = vadd.f32 %v1321, %v1324
    %vm1326 = vweird.f32 %v1155
    %vm1327 = vweird.f32 %v1321
    %vm1328 = vmor %vm1326, %vm1327
    %v1329 = vsel %vm1328, %v1321, %v1325
    %v1330 = vand.u32 2147483647, %v1155
    %vm1331 = vcmp.eq.f32.partialorder %v1330, 8.507059e+37
    %v1332 = vand.u32 %v1155, 2147483648
    %v1333 = vor.u32 1.1754944e-38, %v1332
    %v1334 = vsel %vm1331, %v1333, %v1329
    %v1335 = vmul.f32 %v1119, %v1334
    %v1336 = vpack.c.bf16 %v1185, %v1170
    %v1337 = vpack.c.bf16 %v1215, %v1200
    %v1338 = vpack.c.bf16 %v1245, %v1230
    %v1339 = vpack.c.bf16 %v1275, %v1260
    %v1340 = vpack.c.bf16 %v1305, %v1290
    %v1341 = vpack.c.bf16 %v1335, %v1320
    %v1342 = vpack.c.bf16 %v499, %v496
    %v1343 = vpack.c.bf16 %v501, %v501
    %v1345 = vsel %vm586, %v1336, 0
    %v1348 = vsel %vm586, %v1337, 0
    %v1351 = vsel %vm586, %v1338, 0
    %v1354 = vsel %vm586, %v1339, 0
    %v1357 = vsel %vm586, %v1340, 0
    %v1360 = vsel %vm586, %v1341, 0
    %v1363 = vsel %vm901, %v1343, 0
    %1365 = vmatpush.bf16.msra.mxu0 0
    %1366 = vmatpush.bf16.msra.mxu0 0
    %1367 = vmatpush.bf16.msra.mxu0 0
    %1368 = vmatpush.bf16.msra.mxu0 0
    %1369 = vmatpush.bf16.msra.mxu0 0
    %1370 = vmatpush.bf16.msra.mxu0 0
    %1371 = vmatpush.bf16.msra.mxu0 %v1363
    %1372 = vmatpush.bf16.msra.mxu0 %v1342
    %1373 = vmatmul.bf16.gmra.mxu0 %v1345
    %v1374 = vpop.f32.mrf.mxu0
    %v1375 = vadd.f32 0.0, %v1374
    %v1376 = vpop.f32.mrf.mxu0
    %v1377 = vadd.f32 0.0, %v1376
    %1378 = vmatmul.bf16.gmra.mxu0 %v1348
    %v1379 = vpop.f32.mrf.mxu0
    %v1380 = vadd.f32 0.0, %v1379
    %v1381 = vpop.f32.mrf.mxu0
    %v1382 = vadd.f32 0.0, %v1381
    %1383 = vmatmul.bf16.gmra.mxu0 %v1351
    %v1384 = vpop.f32.mrf.mxu0
    %v1385 = vadd.f32 0.0, %v1384
    %v1386 = vpop.f32.mrf.mxu0
    %v1387 = vadd.f32 0.0, %v1386
    %1388 = vmatmul.bf16.gmra.mxu0 %v1354
    %v1389 = vpop.f32.mrf.mxu0
    %v1390 = vadd.f32 0.0, %v1389
    %v1391 = vpop.f32.mrf.mxu0
    %v1392 = vadd.f32 0.0, %v1391
    %1393 = vmatmul.bf16.gmra.mxu0 %v1357
    %v1394 = vpop.f32.mrf.mxu0
    %v1395 = vadd.f32 0.0, %v1394
    %v1396 = vpop.f32.mrf.mxu0
    %v1397 = vadd.f32 0.0, %v1396
    %1398 = vmatmul.bf16.gmra.mxu0 %v1360
    %v1399 = vpop.f32.mrf.mxu0
    %v1400 = vadd.f32 0.0, %v1399
    %v1401 = vpop.f32.mrf.mxu0
    %v1402 = vadd.f32 0.0, %v1401
    %1403 = vdwg.mxu0
    %v1404 = vmul.f32 %v1375, %v18
    %v1405 = vmul.f32 %v1377, %v18
    %v1406 = vmul.f32 %v1380, %v18
    %v1407 = vmul.f32 %v1382, %v22
    %v1408 = vmul.f32 %v1385, %v22
    %v1409 = vmul.f32 %v1387, %v22
    %v1410 = vadd.f32 %v1404, %v1407
    %v1411 = vadd.f32 %v1405, %v1408
    %v1412 = vadd.f32 %v1406, %v1409
    %v1413 = vmul.f32 %v1390, %v26
    %v1414 = vmul.f32 %v1392, %v26
    %v1415 = vmul.f32 %v1395, %v26
    %v1416 = vadd.f32 %v1410, %v1413
    %v1417 = vadd.f32 %v1411, %v1414
    %v1418 = vadd.f32 %v1412, %v1415
    %v1419 = vmul.f32 %v1397, %v30
    %v1420 = vmul.f32 %v1400, %v30
    %v1421 = vmul.f32 %v1402, %v30
    %v1422 = vadd.f32 %v1416, %v1419
    %v1423 = vadd.f32 %v1417, %v1420
    %v1424 = vadd.f32 %v1418, %v1421
    %v1425 = vld [vmem:[%s1 + $0xd8] sm:$0xff]
    %v1426 = vld [vmem:[%s1 + $0xe0] sm:$0xff]
    %v1427 = vld [vmem:[%s1 + $0xe8] sm:$0xff]
    %v1428 = vld [vmem:[%s1 + $0xf0] sm:$0xff]
    %v1429 = vpack.c.bf16 %v963, %v962
    %v1430 = vpack.c.bf16 %v1422, %v964
    %v1431 = vpack.c.bf16 %v1424, %v1423
    %v1432 = vpack.c.bf16 %v1426, %v1425
    %v1433 = vpack.c.bf16 %v1428, %v1427
    %v1435 = vsel %vm93, %v1429, 0
    %v1438 = vsel %vm93, %v1430, 0
    %v1441 = vsel %vm93, %v1431, 0
    %1443 = vmatpush.bf16.msra.mxu0 0
    %1444 = vmatpush.bf16.msra.mxu0 0
    %1445 = vmatpush.bf16.msra.mxu0 0
    %1446 = vmatpush.bf16.msra.mxu0 0
    %1447 = vmatpush.bf16.msra.mxu0 0
    %1448 = vmatpush.bf16.msra.mxu0 0
    %1449 = vmatpush.bf16.msra.mxu0 %v1433
    %1450 = vmatpush.bf16.msra.mxu0 %v1432
    %1451 = vmatmul.bf16.gmra.mxu0 %v1435
    %v1452 = vpop.f32.mrf.mxu0
    %v1453 = vadd.f32 0.0, %v1452
    %v1454 = vpop.f32.mrf.mxu0
    %v1455 = vadd.f32 0.0, %v1454
    %1456 = vmatmul.bf16.gmra.mxu0 %v1438
    %v1457 = vpop.f32.mrf.mxu0
    %v1458 = vadd.f32 0.0, %v1457
    %v1459 = vpop.f32.mrf.mxu0
    %v1460 = vadd.f32 0.0, %v1459
    %1461 = vmatmul.bf16.gmra.mxu0 %v1441
    %v1462 = vpop.f32.mrf.mxu0
    %v1463 = vadd.f32 0.0, %v1462
    %v1464 = vpop.f32.mrf.mxu0
    %v1465 = vadd.f32 0.0, %v1464
    %1466 = vdwg.mxu0
    %v1467 = vadd.f32 %v241, %v1453
    %v1468 = vadd.f32 %v242, %v1455
    %v1469 = vadd.f32 %v243, %v1458
    %v1470 = vadd.f32 %v244, %v1460
    %v1471 = vadd.f32 %v245, %v1463
    %v1472 = vadd.f32 %v246, %v1465
    %v1473 = vld [vmem:[%s1 + $0x69] sm:$0x1]
    %v1474 = vperm.slane %v1473, 0
    %v1475 = vadd.f32 %v1467, %v1474
    %v1476 = vadd.f32 %v1468, %v1474
    %v1477 = vadd.f32 %v1469, %v1474
    %v1478 = vadd.f32 %v1470, %v1474
    %v1479 = vadd.f32 %v1471, %v1474
    %v1480 = vadd.f32 %v1472, %v1474
    %v1481 = vld [vmem:[%s1 + $0x6a] sm:$0x1]
    %v1482 = vld [vmem:[%s1 + $0x6b] sm:$0x1]
    %v1483 = vsel %vm93, %v1475, 0.0
    %1484 = vadd.xlane.f32.xlu0 %v1483
    %v1485 = vpop.xlane.xlu0 %1484
    %v1486 = vsel %vm93, %v1476, 0.0
    %1487 = vadd.xlane.f32.xlu0 %v1486
    %v1488 = vpop.xlane.xlu0 %1487
    %v1489 = vsel %vm93, %v1477, 0.0
    %1490 = vadd.xlane.f32.xlu0 %v1489
    %v1491 = vpop.xlane.xlu0 %1490
    %v1492 = vsel %vm93, %v1478, 0.0
    %1493 = vadd.xlane.f32.xlu0 %v1492
    %v1494 = vpop.xlane.xlu0 %1493
    %v1495 = vsel %vm93, %v1479, 0.0
    %1496 = vadd.xlane.f32.xlu0 %v1495
    %v1497 = vpop.xlane.xlu0 %1496
    %v1498 = vsel %vm93, %v1480, 0.0
    %1499 = vadd.xlane.f32.xlu0 %v1498
    %v1500 = vpop.xlane.xlu0 %1499
    %v1501 = vmul.f32 %v1485, %v118
    %v1502 = vmul.f32 %v1488, %v118
    %v1503 = vmul.f32 %v1491, %v118
    %v1504 = vmul.f32 %v1494, %v118
    %v1505 = vmul.f32 %v1497, %v118
    %v1506 = vmul.f32 %v1500, %v118
    %v1507 = vsub.f32 %v1475, %v1501
    %v1508 = vsub.f32 %v1476, %v1502
    %v1509 = vsub.f32 %v1477, %v1503
    %v1510 = vsub.f32 %v1478, %v1504
    %v1511 = vsub.f32 %v1479, %v1505
    %v1512 = vsub.f32 %v1480, %v1506
    %v1513 = vmul.f32 %v1507, %v1507
    %v1514 = vmul.f32 %v1508, %v1508
    %v1515 = vmul.f32 %v1509, %v1509
    %v1516 = vmul.f32 %v1510, %v1510
    %v1517 = vmul.f32 %v1511, %v1511
    %v1518 = vmul.f32 %v1512, %v1512
    %v1519 = vsel %vm93, %v1513, 0.0
    %1520 = vadd.xlane.f32.xlu0 %v1519
    %v1521 = vpop.xlane.xlu0 %1520
    %v1522 = vsel %vm93, %v1514, 0.0
    %1523 = vadd.xlane.f32.xlu0 %v1522
    %v1524 = vpop.xlane.xlu0 %1523
    %v1525 = vsel %vm93, %v1515, 0.0
    %1526 = vadd.xlane.f32.xlu0 %v1525
    %v1527 = vpop.xlane.xlu0 %1526
    %v1528 = vsel %vm93, %v1516, 0.0
    %1529 = vadd.xlane.f32.xlu0 %v1528
    %v1530 = vpop.xlane.xlu0 %1529
    %v1531 = vsel %vm93, %v1517, 0.0
    %1532 = vadd.xlane.f32.xlu0 %v1531
    %v1533 = vpop.xlane.xlu0 %1532
    %v1534 = vsel %vm93, %v1518, 0.0
    %1535 = vadd.xlane.f32.xlu0 %v1534
    %v1536 = vpop.xlane.xlu0 %1535
    %v1537 = vmul.f32 %v1521, %v118
    %v1538 = vmul.f32 %v1524, %v118
    %v1539 = vmul.f32 %v1527, %v118
    %v1540 = vmul.f32 %v1530, %v118
    %v1541 = vmul.f32 %v1533, %v118
    %v1542 = vmul.f32 %v1536, %v118
    %v1543 = vadd.f32 %v1537, 1e-05
    %v1544 = vadd.f32 %v1538, 1e-05
    %v1545 = vadd.f32 %v1539, 1e-05
    %v1546 = vadd.f32 %v1540, 1e-05
    %v1547 = vadd.f32 %v1541, 1e-05
    %v1548 = vadd.f32 %v1542, 1e-05
    %v1549 = vrsqrt.pop %v1543
    %v1550 = vmul.f32 %v1549, %v1543
    %v1551 = vmul.f32 %v1550, %v1549
    %v1552 = vmul.f32 0.5, %v1551
    %v1553 = vsub.f32 1.5, %v1552
    %v1554 = vmul.f32 %v1549, %v1553
    %vm1555 = vweird.f32 %v1543
    %vm1556 = vweird.f32 %v1549
    %vm1557 = vmor %vm1555, %vm1556
    %v1558 = vsel %vm1557, %v1549, %v1554
    %v1559 = vrsqrt.pop %v1544
    %v1560 = vmul.f32 %v1559, %v1544
    %v1561 = vmul.f32 %v1560, %v1559
    %v1562 = vmul.f32 0.5, %v1561
    %v1563 = vsub.f32 1.5, %v1562
    %v1564 = vmul.f32 %v1559, %v1563
    %vm1565 = vweird.f32 %v1544
    %vm1566 = vweird.f32 %v1559
    %vm1567 = vmor %vm1565, %vm1566
    %v1568 = vsel %vm1567, %v1559, %v1564
    %v1569 = vrsqrt.pop %v1545
    %v1570 = vmul.f32 %v1569, %v1545
    %v1571 = vmul.f32 %v1570, %v1569
    %v1572 = vmul.f32 0.5, %v1571
    %v1573 = vsub.f32 1.5, %v1572
    %v1574 = vmul.f32 %v1569, %v1573
    %vm1575 = vweird.f32 %v1545
    %vm1576 = vweird.f32 %v1569
    %vm1577 = vmor %vm1575, %vm1576
    %v1578 = vsel %vm1577, %v1569, %v1574
    %v1579 = vrsqrt.pop %v1546
    %v1580 = vmul.f32 %v1579, %v1546
    %v1581 = vmul.f32 %v1580, %v1579
    %v1582 = vmul.f32 0.5, %v1581
    %v1583 = vsub.f32 1.5, %v1582
    %v1584 = vmul.f32 %v1579, %v1583
    %vm1585 = vweird.f32 %v1546
    %vm1586 = vweird.f32 %v1579
    %vm1587 = vmor %vm1585, %vm1586
    %v1588 = vsel %vm1587, %v1579, %v1584
    %v1589 = vrsqrt.pop %v1547
    %v1590 = vmul.f32 %v1589, %v1547
    %v1591 = vmul.f32 %v1590, %v1589
    %v1592 = vmul.f32 0.5, %v1591
    %v1593 = vsub.f32 1.5, %v1592
    %v1594 = vmul.f32 %v1589, %v1593
    %vm1595 = vweird.f32 %v1547
    %vm1596 = vweird.f32 %v1589
    %vm1597 = vmor %vm1595, %vm1596
    %v1598 = vsel %vm1597, %v1589, %v1594
    %v1599 = vrsqrt.pop %v1548
    %v1600 = vmul.f32 %v1599, %v1548
    %v1601 = vmul.f32 %v1600, %v1599
    %v1602 = vmul.f32 0.5, %v1601
    %v1603 = vsub.f32 1.5, %v1602
    %v1604 = vmul.f32 %v1599, %v1603
    %vm1605 = vweird.f32 %v1548
    %vm1606 = vweird.f32 %v1599
    %vm1607 = vmor %vm1605, %vm1606
    %v1608 = vsel %vm1607, %v1599, %v1604
    %v1609 = vmul.f32 %v1507, %v1558
    %v1610 = vmul.f32 %v1508, %v1568
    %v1611 = vmul.f32 %v1509, %v1578
    %v1612 = vmul.f32 %v1510, %v1588
    %v1613 = vmul.f32 %v1511, %v1598
    %v1614 = vmul.f32 %v1512, %v1608
    %v1615 = vperm.slane %v1481, 0
    %v1616 = vmul.f32 %v1609, %v1615
    %v1617 = vmul.f32 %v1610, %v1615
    %v1618 = vmul.f32 %v1611, %v1615
    %v1619 = vmul.f32 %v1612, %v1615
    %v1620 = vmul.f32 %v1613, %v1615
    %v1621 = vmul.f32 %v1614, %v1615
    %v1622 = vperm.slane %v1482, 0
    %v1623 = vadd.f32 %v1616, %v1622
    %v1624 = vadd.f32 %v1617, %v1622
    %v1625 = vadd.f32 %v1618, %v1622
    %v1626 = vadd.f32 %v1619, %v1622
    %v1627 = vadd.f32 %v1620, %v1622
    %v1628 = vadd.f32 %v1621, %v1622
    %v1629 = vld [vmem:[%s1 + $0xf8] sm:$0xff]
    %v1630 = vld [vmem:[%s1 + $0x100] sm:$0xff]
    %v1631 = vld [vmem:[%s1 + $0x108] sm:$0xff]
    %v1632 = vld [vmem:[%s1 + $0x110] sm:$0xff]
    %v1633 = vpack.c.bf16 %v1624, %v1623
    %v1634 = vpack.c.bf16 %v1626, %v1625
    %v1635 = vpack.c.bf16 %v1628, %v1627
    %v1636 = vpack.c.bf16 %v1630, %v1629
    %v1637 = vpack.c.bf16 %v1632, %v1631
    %v1638 = vld [vmem:[%s1 + $0x6c] sm:$0x1]
    %v1639 = vperm.slane %v1638, 0
    %v1641 = vsel %vm93, %v1633, 0
    %v1644 = vsel %vm93, %v1634, 0
    %v1647 = vsel %vm93, %v1635, 0
    %1649 = vmatpush.bf16.msra.mxu0 0
    %1650 = vmatpush.bf16.msra.mxu0 0
    %1651 = vmatpush.bf16.msra.mxu0 0
    %1652 = vmatpush.bf16.msra.mxu0 0
    %1653 = vmatpush.bf16.msra.mxu0 0
    %1654 = vmatpush.bf16.msra.mxu0 0
    %1655 = vmatpush.bf16.msra.mxu0 %v1637
    %1656 = vmatpush.bf16.msra.mxu0 %v1636
    %1657 = vmatmul.bf16.gmra.mxu0 %v1641
    %v1658 = vpop.f32.mrf.mxu0
    %v1659 = vadd.f32 %v1639, %v1658
    %v1660 = vpop.f32.mrf.mxu0
    %v1661 = vadd.f32 %v1639, %v1660
    %1662 = vmatmul.bf16.gmra.mxu0 %v1644
    %v1663 = vpop.f32.mrf.mxu0
    %v1664 = vadd.f32 %v1639, %v1663
    %v1665 = vpop.f32.mrf.mxu0
    %v1666 = vadd.f32 %v1639, %v1665
    %1667 = vmatmul.bf16.gmra.mxu0 %v1647
    %v1668 = vpop.f32.mrf.mxu0
    %v1669 = vadd.f32 %v1639, %v1668
    %v1670 = vpop.f32.mrf.mxu0
    %v1671 = vadd.f32 %v1639, %v1670
    %1672 = vdwg.mxu0
    %v1673 = vmul.f32 %v1659, 1.702
    %v1674 = vmul.f32 %v1661, 1.702
    %v1675 = vmul.f32 %v1664, 1.702
    %v1676 = vmul.f32 %v1666, 1.702
    %v1677 = vmul.f32 %v1669, 1.702
    %v1678 = vmul.f32 %v1671, 1.702
    %v1679 = vxor.u32 %v1673, 2147483648
    %v1680 = vxor.u32 %v1674, 2147483648
    %v1681 = vxor.u32 %v1675, 2147483648
    %v1682 = vxor.u32 %v1676, 2147483648
    %v1683 = vxor.u32 %v1677, 2147483648
    %v1684 = vxor.u32 %v1678, 2147483648
    %v1685 = vmul.f32 %v1679, 1.442695
    %v1686 = vpow.pop %v1685
    %v1687 = vmul.f32 %v1680, 1.442695
    %v1688 = vpow.pop %v1687
    %v1689 = vmul.f32 %v1681, 1.442695
    %v1690 = vpow.pop %v1689
    %v1691 = vmul.f32 %v1682, 1.442695
    %v1692 = vpow.pop %v1691
    %v1693 = vmul.f32 %v1683, 1.442695
    %v1694 = vpow.pop %v1693
    %v1695 = vmul.f32 %v1684, 1.442695
    %v1696 = vpow.pop %v1695
    %v1697 = vadd.f32 %v1686, 1.0
    %v1698 = vadd.f32 %v1688, 1.0
    %v1699 = vadd.f32 %v1690, 1.0
    %v1700 = vadd.f32 %v1692, 1.0
    %v1701 = vadd.f32 %v1694, 1.0
    %v1702 = vadd.f32 %v1696, 1.0
    %v1703 = vrcp.pop %v1697
    %v1704 = vmul.f32 %v1697, %v1703
    %v1705 = vsub.f32 1.0, %v1704
    %v1706 = vmul.f32 %v1703, %v1705
    %v1707 = vadd.f32 %v1703, %v1706
    %vm1708 = vweird.f32 %v1697
    %vm1709 = vweird.f32 %v1703
    %vm1710 = vmor %vm1708, %vm1709
    %v1711 = vsel %vm1710, %v1703, %v1707
    %v1712 = vand.u32 2147483647, %v1697
    %vm1713 = vcmp.eq.f32.partialorder %v1712, 8.507059e+37
    %v1714 = vand.u32 %v1697, 2147483648
    %v1715 = vor.u32 1.1754944e-38, %v1714
    %v1716 = vsel %vm1713, %v1715, %v1711
    %v1717 = vmul.f32 1.0, %v1716
    %v1718 = vrcp.pop %v1698
    %v1719 = vmul.f32 %v1698, %v1718
    %v1720 = vsub.f32 1.0, %v1719
    %v1721 = vmul.f32 %v1718, %v1720
    %v1722 = vadd.f32 %v1718, %v1721
    %vm1723 = vweird.f32 %v1698
    %vm1724 = vweird.f32 %v1718
    %vm1725 = vmor %vm1723, %vm1724
    %v1726 = vsel %vm1725, %v1718, %v1722
    %v1727 = vand.u32 2147483647, %v1698
    %vm1728 = vcmp.eq.f32.partialorder %v1727, 8.507059e+37
    %v1729 = vand.u32 %v1698, 2147483648
    %v1730 = vor.u32 1.1754944e-38, %v1729
    %v1731 = vsel %vm1728, %v1730, %v1726
    %v1732 = vmul.f32 1.0, %v1731
    %v1733 = vrcp.pop %v1699
    %v1734 = vmul.f32 %v1699, %v1733
    %v1735 = vsub.f32 1.0, %v1734
    %v1736 = vmul.f32 %v1733, %v1735
    %v1737 = vadd.f32 %v1733, %v1736
    %vm1738 = vweird.f32 %v1699
    %vm1739 = vweird.f32 %v1733
    %vm1740 = vmor %vm1738, %vm1739
    %v1741 = vsel %vm1740, %v1733, %v1737
    %v1742 = vand.u32 2147483647, %v1699
    %vm1743 = vcmp.eq.f32.partialorder %v1742, 8.507059e+37
    %v1744 = vand.u32 %v1699, 2147483648
    %v1745 = vor.u32 1.1754944e-38, %v1744
    %v1746 = vsel %vm1743, %v1745, %v1741
    %v1747 = vmul.f32 1.0, %v1746
    %v1748 = vrcp.pop %v1700
    %v1749 = vmul.f32 %v1700, %v1748
    %v1750 = vsub.f32 1.0, %v1749
    %v1751 = vmul.f32 %v1748, %v1750
    %v1752 = vadd.f32 %v1748, %v1751
    %vm1753 = vweird.f32 %v1700
    %vm1754 = vweird.f32 %v1748
    %vm1755 = vmor %vm1753, %vm1754
    %v1756 = vsel %vm1755, %v1748, %v1752
    %v1757 = vand.u32 2147483647, %v1700
    %vm1758 = vcmp.eq.f32.partialorder %v1757, 8.507059e+37
    %v1759 = vand.u32 %v1700, 2147483648
    %v1760 = vor.u32 1.1754944e-38, %v1759
    %v1761 = vsel %vm1758, %v1760, %v1756
    %v1762 = vmul.f32 1.0, %v1761
    %v1763 = vrcp.pop %v1701
    %v1764 = vmul.f32 %v1701, %v1763
    %v1765 = vsub.f32 1.0, %v1764
    %v1766 = vmul.f32 %v1763, %v1765
    %v1767 = vadd.f32 %v1763, %v1766
    %vm1768 = vweird.f32 %v1701
    %vm1769 = vweird.f32 %v1763
    %vm1770 = vmor %vm1768, %vm1769
    %v1771 = vsel %vm1770, %v1763, %v1767
    %v1772 = vand.u32 2147483647, %v1701
    %vm1773 = vcmp.eq.f32.partialorder %v1772, 8.507059e+37
    %v1774 = vand.u32 %v1701, 2147483648
    %v1775 = vor.u32 1.1754944e-38, %v1774
    %v1776 = vsel %vm1773, %v1775, %v1771
    %v1777 = vmul.f32 1.0, %v1776
    %v1778 = vrcp.pop %v1702
    %v1779 = vmul.f32 %v1702, %v1778
    %v1780 = vsub.f32 1.0, %v1779
    %v1781 = vmul.f32 %v1778, %v1780
    %v1782 = vadd.f32 %v1778, %v1781
    %vm1783 = vweird.f32 %v1702
    %vm1784 = vweird.f32 %v1778
    %vm1785 = vmor %vm1783, %vm1784
    %v1786 = vsel %vm1785, %v1778, %v1782
    %v1787 = vand.u32 2147483647, %v1702
    %vm1788 = vcmp.eq.f32.partialorder %v1787, 8.507059e+37
    %v1789 = vand.u32 %v1702, 2147483648
    %v1790 = vor.u32 1.1754944e-38, %v1789
    %v1791 = vsel %vm1788, %v1790, %v1786
    %v1792 = vmul.f32 1.0, %v1791
    %v1793 = vmul.f32 %v1659, %v1717
    %v1794 = vmul.f32 %v1661, %v1732
    %v1795 = vmul.f32 %v1664, %v1747
    %v1796 = vmul.f32 %v1666, %v1762
    %v1797 = vmul.f32 %v1669, %v1777
    %v1798 = vmul.f32 %v1671, %v1792
    %v1799 = vld [vmem:[%s1 + $0x118] sm:$0xff]
    %v1800 = vld [vmem:[%s1 + $0x120] sm:$0xff]
    %v1801 = vld [vmem:[%s1 + $0x128] sm:$0xff]
    %v1802 = vld [vmem:[%s1 + $0x130] sm:$0xff]
    %v1803 = vld [vmem:[%s1 + $0x138] sm:$0xff]
    %v1804 = vld [vmem:[%s1 + $0x140] sm:$0xff]
    %v1805 = vld [vmem:[%s1 + $0x148] sm:$0xff]
    %v1806 = vld [vmem:[%s1 + $0x150] sm:$0xff]
    %v1807 = vld [vmem:[%s1 + $0x158] sm:$0xff]
    %v1808 = vld [vmem:[%s1 + $0x160] sm:$0xff]
    %v1809 = vld [vmem:[%s1 + $0x168] sm:$0xff]
    %v1810 = vld [vmem:[%s1 + $0x170] sm:$0xff]
    %v1811 = vld [vmem:[%s1 + $0x178] sm:$0xff]
    %v1812 = vld [vmem:[%s1 + $0x180] sm:$0xff]
    %v1813 = vld [vmem:[%s1 + $0x188] sm:$0xff]
    %v1814 = vld [vmem:[%s1 + $0x190] sm:$0xff]
    %v1815 = vpack.c.bf16 %v1794, %v1793
    %v1816 = vpack.c.bf16 %v1796, %v1795
    %v1817 = vpack.c.bf16 %v1798, %v1797
    %v1818 = vpack.c.bf16 %v1800, %v1799
    %v1819 = vpack.c.bf16 %v1802, %v1801
    %v1820 = vpack.c.bf16 %v1804, %v1803
    %v1821 = vpack.c.bf16 %v1806, %v1805
    %v1822 = vpack.c.bf16 %v1808, %v1807
    %v1823 = vpack.c.bf16 %v1810, %v1809
    %v1824 = vpack.c.bf16 %v1812, %v1811
    %v1825 = vpack.c.bf16 %v1814, %v1813
    %1826 = vmatpush.bf16.msra.mxu0 %v1825
    %1827 = vmatpush.bf16.msra.mxu0 %v1824
    %1828 = vmatpush.bf16.msra.mxu0 %v1823
    %1829 = vmatpush.bf16.msra.mxu0 %v1822
    %1830 = vmatpush.bf16.msra.mxu0 %v1821
    %1831 = vmatpush.bf16.msra.mxu0 %v1820
    %1832 = vmatpush.bf16.msra.mxu0 %v1819
    %1833 = vmatpush.bf16.msra.mxu0 %v1818
    %1834 = vmatmul.bf16.gmra.mxu0 %v1815
    %v1835 = vpop.f32.mrf.mxu0
    %v1836 = vadd.f32 0.0, %v1835
    %v1837 = vpop.f32.mrf.mxu0
    %v1838 = vadd.f32 0.0, %v1837
    %1839 = vmatmul.bf16.gmra.mxu0 %v1816
    %v1840 = vpop.f32.mrf.mxu0
    %v1841 = vadd.f32 0.0, %v1840
    %v1842 = vpop.f32.mrf.mxu0
    %v1843 = vadd.f32 0.0, %v1842
    %1844 = vmatmul.bf16.gmra.mxu0 %v1817
    %v1845 = vpop.f32.mrf.mxu0
    %v1846 = vadd.f32 0.0, %v1845
    %v1847 = vpop.f32.mrf.mxu0
    %v1848 = vadd.f32 0.0, %v1847
    %1849 = vdwg.mxu0
    %v1850 = vadd.f32 %v1475, %v1836
    %v1851 = vadd.f32 %v1476, %v1838
    %v1852 = vadd.f32 %v1477, %v1841
    %v1853 = vadd.f32 %v1478, %v1843
    %v1854 = vadd.f32 %v1479, %v1846
    %v1855 = vadd.f32 %v1480, %v1848
    %v1856 = vld [vmem:[%s1 + $0x6d] sm:$0x1]
    %v1857 = vperm.slane %v1856, 0
    %v1858 = vadd.f32 %v1850, %v1857
    %v1859 = vadd.f32 %v1851, %v1857
    %v1860 = vadd.f32 %v1852, %v1857
    %v1861 = vadd.f32 %v1853, %v1857
    %v1862 = vadd.f32 %v1854, %v1857
    %v1863 = vadd.f32 %v1855, %v1857
    %v1864 = vld [vmem:[%s1 + $0x6e] sm:$0x1]
    %v1865 = vld [vmem:[%s1 + $0x6f] sm:$0x1]
    %v1866 = vsel %vm93, %v1858, 0.0
    %1867 = vadd.xlane.f32.xlu0 %v1866
    %v1868 = vpop.xlane.xlu0 %1867
    %v1869 = vsel %vm93, %v1859, 0.0
    %1870 = vadd.xlane.f32.xlu0 %v1869
    %v1871 = vpop.xlane.xlu0 %1870
    %v1872 = vsel %vm93, %v1860, 0.0
    %1873 = vadd.xlane.f32.xlu0 %v1872
    %v1874 = vpop.xlane.xlu0 %1873
    %v1875 = vsel %vm93, %v1861, 0.0
    %1876 = vadd.xlane.f32.xlu0 %v1875
    %v1877 = vpop.xlane.xlu0 %1876
    %v1878 = vsel %vm93, %v1862, 0.0
    %1879 = vadd.xlane.f32.xlu0 %v1878
    %v1880 = vpop.xlane.xlu0 %1879
    %v1881 = vsel %vm93, %v1863, 0.0
    %1882 = vadd.xlane.f32.xlu0 %v1881
    %v1883 = vpop.xlane.xlu0 %1882
    %v1884 = vmul.f32 %v1868, %v118
    %v1885 = vmul.f32 %v1871, %v118
    %v1886 = vmul.f32 %v1874, %v118
    %v1887 = vmul.f32 %v1877, %v118
    %v1888 = vmul.f32 %v1880, %v118
    %v1889 = vmul.f32 %v1883, %v118
    %v1890 = vsub.f32 %v1858, %v1884
    %v1891 = vsub.f32 %v1859, %v1885
    %v1892 = vsub.f32 %v1860, %v1886
    %v1893 = vsub.f32 %v1861, %v1887
    %v1894 = vsub.f32 %v1862, %v1888
    %v1895 = vsub.f32 %v1863, %v1889
    %v1896 = vmul.f32 %v1890, %v1890
    %v1897 = vmul.f32 %v1891, %v1891
    %v1898 = vmul.f32 %v1892, %v1892
    %v1899 = vmul.f32 %v1893, %v1893
    %v1900 = vmul.f32 %v1894, %v1894
    %v1901 = vmul.f32 %v1895, %v1895
    %v1902 = vsel %vm93, %v1896, 0.0
    %1903 = vadd.xlane.f32.xlu0 %v1902
    %v1904 = vpop.xlane.xlu0 %1903
    %v1905 = vsel %vm93, %v1897, 0.0
    %1906 = vadd.xlane.f32.xlu0 %v1905
    %v1907 = vpop.xlane.xlu0 %1906
    %v1908 = vsel %vm93, %v1898, 0.0
    %1909 = vadd.xlane.f32.xlu0 %v1908
    %v1910 = vpop.xlane.xlu0 %1909
    %v1911 = vsel %vm93, %v1899, 0.0
    %1912 = vadd.xlane.f32.xlu0 %v1911
    %v1913 = vpop.xlane.xlu0 %1912
    %v1914 = vsel %vm93, %v1900, 0.0
    %1915 = vadd.xlane.f32.xlu0 %v1914
    %v1916 = vpop.xlane.xlu0 %1915
    %v1917 = vsel %vm93, %v1901, 0.0
    %1918 = vadd.xlane.f32.xlu0 %v1917
    %v1919 = vpop.xlane.xlu0 %1918
    %v1920 = vmul.f32 %v1904, %v118
    %v1921 = vmul.f32 %v1907, %v118
    %v1922 = vmul.f32 %v1910, %v118
    %v1923 = vmul.f32 %v1913, %v118
    %v1924 = vmul.f32 %v1916, %v118
    %v1925 = vmul.f32 %v1919, %v118
    %v1926 = vadd.f32 %v1920, 1e-05
    %v1927 = vadd.f32 %v1921, 1e-05
    %v1928 = vadd.f32 %v1922, 1e-05
    %v1929 = vadd.f32 %v1923, 1e-05
    %v1930 = vadd.f32 %v1924, 1e-05
    %v1931 = vadd.f32 %v1925, 1e-05
    %v1932 = vrsqrt.pop %v1926
    %v1933 = vmul.f32 %v1932, %v1926
    %v1934 = vmul.f32 %v1933, %v1932
    %v1935 = vmul.f32 0.5, %v1934
    %v1936 = vsub.f32 1.5, %v1935
    %v1937 = vmul.f32 %v1932, %v1936
    %vm1938 = vweird.f32 %v1926
    %vm1939 = vweird.f32 %v1932
    %vm1940 = vmor %vm1938, %vm1939
    %v1941 = vsel %vm1940, %v1932, %v1937
    %v1942 = vrsqrt.pop %v1927
    %v1943 = vmul.f32 %v1942, %v1927
    %v1944 = vmul.f32 %v1943, %v1942
    %v1945 = vmul.f32 0.5, %v1944
    %v1946 = vsub.f32 1.5, %v1945
    %v1947 = vmul.f32 %v1942, %v1946
    %vm1948 = vweird.f32 %v1927
    %vm1949 = vweird.f32 %v1942
    %vm1950 = vmor %vm1948, %vm1949
    %v1951 = vsel %vm1950, %v1942, %v1947
    %v1952 = vrsqrt.pop %v1928
    %v1953 = vmul.f32 %v1952, %v1928
    %v1954 = vmul.f32 %v1953, %v1952
    %v1955 = vmul.f32 0.5, %v1954
    %v1956 = vsub.f32 1.5, %v1955
    %v1957 = vmul.f32 %v1952, %v1956
    %vm1958 = vweird.f32 %v1928
    %vm1959 = vweird.f32 %v1952
    %vm1960 = vmor %vm1958, %vm1959
    %v1961 = vsel %vm1960, %v1952, %v1957
    %v1962 = vrsqrt.pop %v1929
    %v1963 = vmul.f32 %v1962, %v1929
    %v1964 = vmul.f32 %v1963, %v1962
    %v1965 = vmul.f32 0.5, %v1964
    %v1966 = vsub.f32 1.5, %v1965
    %v1967 = vmul.f32 %v1962, %v1966
    %vm1968 = vweird.f32 %v1929
    %vm1969 = vweird.f32 %v1962
    %vm1970 = vmor %vm1968, %vm1969
    %v1971 = vsel %vm1970, %v1962, %v1967
    %v1972 = vrsqrt.pop %v1930
    %v1973 = vmul.f32 %v1972, %v1930
    %v1974 = vmul.f32 %v1973, %v1972
    %v1975 = vmul.f32 0.5, %v1974
    %v1976 = vsub.f32 1.5, %v1975
    %v1977 = vmul.f32 %v1972, %v1976
    %vm1978 = vweird.f32 %v1930
    %vm1979 = vweird.f32 %v1972
    %vm1980 = vmor %vm1978, %vm1979
    %v1981 = vsel %vm1980, %v1972, %v1977
    %v1982 = vrsqrt.pop %v1931
    %v1983 = vmul.f32 %v1982, %v1931
    %v1984 = vmul.f32 %v1983, %v1982
    %v1985 = vmul.f32 0.5, %v1984
    %v1986 = vsub.f32 1.5, %v1985
    %v1987 = vmul.f32 %v1982, %v1986
    %vm1988 = vweird.f32 %v1931
    %vm1989 = vweird.f32 %v1982
    %vm1990 = vmor %vm1988, %vm1989
    %v1991 = vsel %vm1990, %v1982, %v1987
    %v1992 = vmul.f32 %v1890, %v1941
    %v1993 = vmul.f32 %v1891, %v1951
    %v1994 = vmul.f32 %v1892, %v1961
    %v1995 = vmul.f32 %v1893, %v1971
    %v1996 = vmul.f32 %v1894, %v1981
    %v1997 = vmul.f32 %v1895, %v1991
    %v1998 = vperm.slane %v1864, 0
    %v1999 = vmul.f32 %v1992, %v1998
    %v2000 = vmul.f32 %v1993, %v1998
    %v2001 = vmul.f32 %v1994, %v1998
    %v2002 = vmul.f32 %v1995, %v1998
    %v2003 = vmul.f32 %v1996, %v1998
    %v2004 = vmul.f32 %v1997, %v1998
    %v2005 = vperm.slane %v1865, 0
    %v2006 = vadd.f32 %v1999, %v2005
    %v2007 = vadd.f32 %v2000, %v2005
    %v2008 = vadd.f32 %v2001, %v2005
    %v2009 = vadd.f32 %v2002, %v2005
    %v2010 = vadd.f32 %v2003, %v2005
    %v2011 = vadd.f32 %v2004, %v2005
    %v2012 = vld [vmem:[%s1 + $0x198] sm:$0xff]
    %v2013 = vld [vmem:[%s1 + $0x1a0] sm:$0xff]
    %v2014 = vld [vmem:[%s1 + $0x1a8] sm:$0xff]
    %v2015 = vld [vmem:[%s1 + $0x1b0] sm:$0xff]
    %v2016 = vpack.c.bf16 %v2007, %v2006
    %v2017 = vpack.c.bf16 %v2009, %v2008
    %v2018 = vpack.c.bf16 %v2011, %v2010
    %v2019 = vpack.c.bf16 %v2013, %v2012
    %v2020 = vpack.c.bf16 %v2015, %v2014
    %v2021 = vld [vmem:[%s1 + $0x70] sm:$0x1]
    %v2022 = vperm.slane %v2021, 0
    %v2024 = vsel %vm93, %v2016, 0
    %v2027 = vsel %vm93, %v2017, 0
    %v2030 = vsel %vm93, %v2018, 0
    %2032 = vmatpush.bf16.msra.mxu0 0
    %2033 = vmatpush.bf16.msra.mxu0 0
    %2034 = vmatpush.bf16.msra.mxu0 0
    %2035 = vmatpush.bf16.msra.mxu0 0
    %2036 = vmatpush.bf16.msra.mxu0 0
    %2037 = vmatpush.bf16.msra.mxu0 0
    %2038 = vmatpush.bf16.msra.mxu0 %v2020
    %2039 = vmatpush.bf16.msra.mxu0 %v2019
    %2040 = vmatmul.bf16.gmra.mxu0 %v2024
    %v2041 = vpop.f32.mrf.mxu0
    %v2042 = vadd.f32 %v2022, %v2041
    %v2043 = vpop.f32.mrf.mxu0
    %v2044 = vadd.f32 %v2022, %v2043
    %2045 = vmatmul.bf16.gmra.mxu0 %v2027
    %v2046 = vpop.f32.mrf.mxu0
    %v2047 = vadd.f32 %v2022, %v2046
    %v2048 = vpop.f32.mrf.mxu0
    %v2049 = vadd.f32 %v2022, %v2048
    %2050 = vmatmul.bf16.gmra.mxu0 %v2030
    %v2051 = vpop.f32.mrf.mxu0
    %v2052 = vadd.f32 %v2022, %v2051
    %v2053 = vpop.f32.mrf.mxu0
    %v2054 = vadd.f32 %v2022, %v2053
    %2055 = vdwg.mxu0
    %v2056 = vld [vmem:[%s1 + $0x1b8] sm:$0xff]
    %v2057 = vld [vmem:[%s1 + $0x1c0] sm:$0xff]
    %v2058 = vld [vmem:[%s1 + $0x1c8] sm:$0xff]
    %v2059 = vld [vmem:[%s1 + $0x1d0] sm:$0xff]
    %v2060 = vpack.c.bf16 %v2057, %v2056
    %v2061 = vpack.c.bf16 %v2059, %v2058
    %v2062 = vld [vmem:[%s1 + $0x71] sm:$0x1]
    %v2063 = vperm.slane %v2062, 0
    %2064 = vmatpush.bf16.msra.mxu0 0
    %2065 = vmatpush.bf16.msra.mxu0 0
    %2066 = vmatpush.bf16.msra.mxu0 0
    %2067 = vmatpush.bf16.msra.mxu0 0
    %2068 = vmatpush.bf16.msra.mxu0 0
    %2069 = vmatpush.bf16.msra.mxu0 0
    %2070 = vmatpush.bf16.msra.mxu0 %v2061
    %2071 = vmatpush.bf16.msra.mxu0 %v2060
    %2072 = vmatmul.bf16.gmra.mxu0 %v2024
    %v2073 = vpop.f32.mrf.mxu0
    %v2074 = vadd.f32 %v2063, %v2073
    %v2075 = vpop.f32.mrf.mxu0
    %v2076 = vadd.f32 %v2063, %v2075
    %2077 = vmatmul.bf16.gmra.mxu0 %v2027
    %v2078 = vpop.f32.mrf.mxu0
    %v2079 = vadd.f32 %v2063, %v2078
    %v2080 = vpop.f32.mrf.mxu0
    %v2081 = vadd.f32 %v2063, %v2080
    %2082 = vmatmul.bf16.gmra.mxu0 %v2030
    %v2083 = vpop.f32.mrf.mxu0
    %v2084 = vadd.f32 %v2063, %v2083
    %v2085 = vpop.f32.mrf.mxu0
    %v2086 = vadd.f32 %v2063, %v2085
    %2087 = vdwg.mxu0
    %v2088 = vld [vmem:[%s1 + $0x1d8] sm:$0xff]
    %v2089 = vld [vmem:[%s1 + $0x1e0] sm:$0xff]
    %v2090 = vld [vmem:[%s1 + $0x1e8] sm:$0xff]
    %v2091 = vld [vmem:[%s1 + $0x1f0] sm:$0xff]
    %v2092 = vpack.c.bf16 %v2089, %v2088
    %v2093 = vpack.c.bf16 %v2091, %v2090
    %v2094 = vld [vmem:[%s1 + $0x72] sm:$0x1]
    %v2095 = vperm.slane %v2094, 0
    %2096 = vmatpush.bf16.msra.mxu0 0
    %2097 = vmatpush.bf16.msra.mxu0 0
    %2098 = vmatpush.bf16.msra.mxu0 0
    %2099 = vmatpush.bf16.msra.mxu0 0
    %2100 = vmatpush.bf16.msra.mxu0 0
    %2101 = vmatpush.bf16.msra.mxu0 0
    %2102 = vmatpush.bf16.msra.mxu0 %v2093
    %2103 = vmatpush.bf16.msra.mxu0 %v2092
    %2104 = vmatmul.bf16.gmra.mxu0 %v2024
    %v2105 = vpop.f32.mrf.mxu0
    %v2106 = vadd.f32 %v2095, %v2105
    %v2107 = vpop.f32.mrf.mxu0
    %v2108 = vadd.f32 %v2095, %v2107
    %2109 = vmatmul.bf16.gmra.mxu0 %v2027
    %v2110 = vpop.f32.mrf.mxu0
    %v2111 = vadd.f32 %v2095, %v2110
    %v2112 = vpop.f32.mrf.mxu0
    %v2113 = vadd.f32 %v2095, %v2112
    %2114 = vmatmul.bf16.gmra.mxu0 %v2030
    %v2115 = vpop.f32.mrf.mxu0
    %v2116 = vadd.f32 %v2095, %v2115
    %v2117 = vpop.f32.mrf.mxu0
    %v2118 = vadd.f32 %v2095, %v2117
    %2119 = vdwg.mxu0
    %v2120 = vmul.f32 %v2042, %v18
    %v2121 = vmul.f32 %v2044, %v18
    %v2122 = vmul.f32 %v2047, %v18
    %v2123 = vmul.f32 %v2042, %v22
    %v2124 = vmul.f32 %v2044, %v22
    %v2125 = vmul.f32 %v2047, %v22
    %v2126 = vmul.f32 %v2042, %v26
    %v2127 = vmul.f32 %v2044, %v26
    %v2128 = vmul.f32 %v2047, %v26
    %v2129 = vmul.f32 %v2042, %v30
    %v2130 = vmul.f32 %v2044, %v30
    %v2131 = vmul.f32 %v2047, %v30
    %v2132 = vpack.c.bf16 %v2121, %v2120
    %v2133 = vpack.c.bf16 %v2123, %v2122
    %v2134 = vpack.c.bf16 %v2125, %v2124
    %v2135 = vpack.c.bf16 %v2127, %v2126
    %v2136 = vpack.c.bf16 %v2129, %v2128
    %v2137 = vpack.c.bf16 %v2131, %v2130
    %v2138 = vpack.c.bf16 %v2076, %v2074
    %v2139 = vpack.c.bf16 %v2079, %v2079
    %v2141 = vsel %vm93, %v2132, 0
    %v2144 = vsel %vm93, %v2133, 0
    %v2147 = vsel %vm93, %v2134, 0
    %v2150 = vsel %vm93, %v2135, 0
    %v2153 = vsel %vm93, %v2136, 0
    %v2156 = vsel %vm93, %v2137, 0
    %v2159 = vsel %vm93, %v2138, 0
    %v2162 = vsel %vm93, %v2139, 0
    %2164 = vmatpush.bf16.xpose.msra.mxu0 0
    %2165 = vmatpush.bf16.xpose.msra.mxu0 0
    %2166 = vmatpush.bf16.xpose.msra.mxu0 0
    %2167 = vmatpush.bf16.xpose.msra.mxu0 0
    %2168 = vmatpush.bf16.xpose.msra.mxu0 0
    %2169 = vmatpush.bf16.xpose.msra.mxu0 0
    %2170 = vmatpush.bf16.xpose.msra.mxu0 %v2162
    %2171 = vmatpush.bf16.xpose.msra.mxu0 %v2159
    %2172 = vmatmul.bf16.gmra.mxu0 %v2141
    %v2173 = vpop.f32.mrf.mxu0
    %v2174 = vadd.f32 %v32, %v2173
    %v2175 = vpop.f32.mrf.mxu0
    %v2176 = vadd.f32 %v32, %v2175
    %2177 = vmatmul.bf16.gmra.mxu0 %v2144
    %v2178 = vpop.f32.mrf.mxu0
    %v2179 = vadd.f32 %v32, %v2178
    %v2180 = vpop.f32.mrf.mxu0
    %v2181 = vadd.f32 %v32, %v2180
    %2182 = vmatmul.bf16.gmra.mxu0 %v2147
    %v2183 = vpop.f32.mrf.mxu0
    %v2184 = vadd.f32 %v32, %v2183
    %v2185 = vpop.f32.mrf.mxu0
    %v2186 = vadd.f32 %v32, %v2185
    %2187 = vmatmul.bf16.gmra.mxu0 %v2150
    %v2188 = vpop.f32.mrf.mxu0
    %v2189 = vadd.f32 %v32, %v2188
    %v2190 = vpop.f32.mrf.mxu0
    %v2191 = vadd.f32 %v32, %v2190
    %2192 = vmatmul.bf16.gmra.mxu0 %v2153
    %v2193 = vpop.f32.mrf.mxu0
    %v2194 = vadd.f32 %v32, %v2193
    %v2195 = vpop.f32.mrf.mxu0
    %v2196 = vadd.f32 %v32, %v2195
    %2197 = vmatmul.bf16.gmra.mxu0 %v2156
    %v2198 = vpop.f32.mrf.mxu0
    %v2199 = vadd.f32 %v32, %v2198
    %v2200 = vpop.f32.mrf.mxu0
    %v2201 = vadd.f32 %v32, %v2200
    %2202 = vdwg.mxu0
    %v2203 = vsel %vm586, %v2174, -inf
    %2204 = vmax.xlane.f32.xlu0 %v2203
    %v2205 = vpop.xlane.xlu0 %2204
    %v2206 = vsel %vm586, %v2176, -inf
    %2207 = vmax.xlane.f32.xlu0 %v2206
    %v2208 = vpop.xlane.xlu0 %2207
    %v2209 = vsel %vm586, %v2179, -inf
    %2210 = vmax.xlane.f32.xlu0 %v2209
    %v2211 = vpop.xlane.xlu0 %2210
    %v2212 = vsel %vm586, %v2181, -inf
    %2213 = vmax.xlane.f32.xlu0 %v2212
    %v2214 = vpop.xlane.xlu0 %2213
    %v2215 = vsel %vm586, %v2184, -inf
    %2216 = vmax.xlane.f32.xlu0 %v2215
    %v2217 = vpop.xlane.xlu0 %2216
    %v2218 = vsel %vm586, %v2186, -inf
    %2219 = vmax.xlane.f32.xlu0 %v2218
    %v2220 = vpop.xlane.xlu0 %2219
    %v2221 = vsel %vm586, %v2189, -inf
    %2222 = vmax.xlane.f32.xlu0 %v2221
    %v2223 = vpop.xlane.xlu0 %2222
    %v2224 = vsel %vm586, %v2191, -inf
    %2225 = vmax.xlane.f32.xlu0 %v2224
    %v2226 = vpop.xlane.xlu0 %2225
    %v2227 = vsel %vm586, %v2194, -inf
    %2228 = vmax.xlane.f32.xlu0 %v2227
    %v2229 = vpop.xlane.xlu0 %2228
    %v2230 = vsel %vm586, %v2196, -inf
    %2231 = vmax.xlane.f32.xlu0 %v2230
    %v2232 = vpop.xlane.xlu0 %2231
    %v2233 = vsel %vm586, %v2199, -inf
    %2234 = vmax.xlane.f32.xlu0 %v2233
    %v2235 = vpop.xlane.xlu0 %2234
    %v2236 = vsel %vm586, %v2201, -inf
    %2237 = vmax.xlane.f32.xlu0 %v2236
    %v2238 = vpop.xlane.xlu0 %2237
    %v2239 = vsub.f32 %v2174, %v2205
    %v2240 = vsub.f32 %v2176, %v2208
    %v2241 = vsub.f32 %v2179, %v2211
    %v2242 = vsub.f32 %v2181, %v2214
    %v2243 = vsub.f32 %v2184, %v2217
    %v2244 = vsub.f32 %v2186, %v2220
    %v2245 = vsub.f32 %v2189, %v2223
    %v2246 = vsub.f32 %v2191, %v2226
    %v2247 = vsub.f32 %v2194, %v2229
    %v2248 = vsub.f32 %v2196, %v2232
    %v2249 = vsub.f32 %v2199, %v2235
    %v2250 = vsub.f32 %v2201, %v2238
    %v2251 = vmul.f32 %v2239, 1.442695
    %v2252 = vpow.pop %v2251
    %v2253 = vmul.f32 %v2240, 1.442695
    %v2254 = vpow.pop %v2253
    %v2255 = vmul.f32 %v2241, 1.442695
    %v2256 = vpow.pop %v2255
    %v2257 = vmul.f32 %v2242, 1.442695
    %v2258 = vpow.pop %v2257
    %v2259 = vmul.f32 %v2243, 1.442695
    %v2260 = vpow.pop %v2259
    %v2261 = vmul.f32 %v2244, 1.442695
    %v2262 = vpow.pop %v2261
    %v2263 = vmul.f32 %v2245, 1.442695
    %v2264 = vpow.pop %v2263
    %v2265 = vmul.f32 %v2246, 1.442695
    %v2266 = vpow.pop %v2265
    %v2267 = vmul.f32 %v2247, 1.442695
    %v2268 = vpow.pop %v2267
    %v2269 = vmul.f32 %v2248, 1.442695
    %v2270 = vpow.pop %v2269
    %v2271 = vmul.f32 %v2249, 1.442695
    %v2272 = vpow.pop %v2271
    %v2273 = vmul.f32 %v2250, 1.442695
    %v2274 = vpow.pop %v2273
    %v2275 = vsel %vm586, %v2252, 0.0
    %2276 = vadd.xlane.f32.xlu0 %v2275
    %v2277 = vpop.xlane.xlu0 %2276
    %v2278 = vsel %vm586, %v2254, 0.0
    %2279 = vadd.xlane.f32.xlu0 %v2278
    %v2280 = vpop.xlane.xlu0 %2279
    %v2281 = vsel %vm586, %v2256, 0.0
    %2282 = vadd.xlane.f32.xlu0 %v2281
    %v2283 = vpop.xlane.xlu0 %2282
    %v2284 = vsel %vm586, %v2258, 0.0
    %2285 = vadd.xlane.f32.xlu0 %v2284
    %v2286 = vpop.xlane.xlu0 %2285
    %v2287 = vsel %vm586, %v2260, 0.0
    %2288 = vadd.xlane.f32.xlu0 %v2287
    %v2289 = vpop.xlane.xlu0 %2288
    %v2290 = vsel %vm586, %v2262, 0.0
    %2291 = vadd.xlane.f32.xlu0 %v2290
    %v2292 = vpop.xlane.xlu0 %2291
    %v2293 = vsel %vm586, %v2264, 0.0
    %2294 = vadd.xlane.f32.xlu0 %v2293
    %v2295 = vpop.xlane.xlu0 %2294
    %v2296 = vsel %vm586, %v2266, 0.0
    %2297 = vadd.xlane.f32.xlu0 %v2296
    %v2298 = vpop.xlane.xlu0 %2297
    %v2299 = vsel %vm586, %v2268, 0.0
    %2300 = vadd.xlane.f32.xlu0 %v2299
    %v2301 = vpop.xlane.xlu0 %2300
    %v2302 = vsel %vm586, %v2270, 0.0
    %2303 = vadd.xlane.f32.xlu0 %v2302
    %v2304 = vpop.xlane.xlu0 %2303
    %v2305 = vsel %vm586, %v2272, 0.0
    %2306 = vadd.xlane.f32.xlu0 %v2305
    %v2307 = vpop.xlane.xlu0 %2306
    %v2308 = vsel %vm586, %v2274, 0.0
    %2309 = vadd.xlane.f32.xlu0 %v2308
    %v2310 = vpop.xlane.xlu0 %2309
    %v2311 = vrcp.pop %v2277
    %v2312 = vmul.f32 %v2277, %v2311
    %v2313 = vsub.f32 1.0, %v2312
    %v2314 = vmul.f32 %v2311, %v2313
    %v2315 = vadd.f32 %v2311, %v2314
    %vm2316 = vweird.f32 %v2277
    %vm2317 = vweird.f32 %v2311
    %vm2318 = vmor %vm2316, %vm2317
    %v2319 = vsel %vm2318, %v2311, %v2315
    %v2320 = vand.u32 2147483647, %v2277
    %vm2321 = vcmp.eq.f32.partialorder %v2320, 8.507059e+37
    %v2322 = vand.u32 %v2277, 2147483648
    %v2323 = vor.u32 1.1754944e-38, %v2322
    %v2324 = vsel %vm2321, %v2323, %v2319
    %v2325 = vmul.f32 %v2252, %v2324
    %v2326 = vrcp.pop %v2280
    %v2327 = vmul.f32 %v2280, %v2326
    %v2328 = vsub.f32 1.0, %v2327
    %v2329 = vmul.f32 %v2326, %v2328
    %v2330 = vadd.f32 %v2326, %v2329
    %vm2331 = vweird.f32 %v2280
    %vm2332 = vweird.f32 %v2326
    %vm2333 = vmor %vm2331, %vm2332
    %v2334 = vsel %vm2333, %v2326, %v2330
    %v2335 = vand.u32 2147483647, %v2280
    %vm2336 = vcmp.eq.f32.partialorder %v2335, 8.507059e+37
    %v2337 = vand.u32 %v2280, 2147483648
    %v2338 = vor.u32 1.1754944e-38, %v2337
    %v2339 = vsel %vm2336, %v2338, %v2334
    %v2340 = vmul.f32 %v2254, %v2339
    %v2341 = vrcp.pop %v2283
    %v2342 = vmul.f32 %v2283, %v2341
    %v2343 = vsub.f32 1.0, %v2342
    %v2344 = vmul.f32 %v2341, %v2343
    %v2345 = vadd.f32 %v2341, %v2344
    %vm2346 = vweird.f32 %v2283
    %vm2347 = vweird.f32 %v2341
    %vm2348 = vmor %vm2346, %vm2347
    %v2349 = vsel %vm2348, %v2341, %v2345
    %v2350 = vand.u32 2147483647, %v2283
    %vm2351 = vcmp.eq.f32.partialorder %v2350, 8.507059e+37
    %v2352 = vand.u32 %v2283, 2147483648
    %v2353 = vor.u32 1.1754944e-38, %v2352
    %v2354 = vsel %vm2351, %v2353, %v2349
    %v2355 = vmul.f32 %v2256, %v2354
    %v2356 = vrcp.pop %v2286
    %v2357 = vmul.f32 %v2286, %v2356
    %v2358 = vsub.f32 1.0, %v2357
    %v2359 = vmul.f32 %v2356, %v2358
    %v2360 = vadd.f32 %v2356, %v2359
    %vm2361 = vweird.f32 %v2286
    %vm2362 = vweird.f32 %v2356
    %vm2363 = vmor %vm2361, %vm2362
    %v2364 = vsel %vm2363, %v2356, %v2360
    %v2365 = vand.u32 2147483647, %v2286
    %vm2366 = vcmp.eq.f32.partialorder %v2365, 8.507059e+37
    %v2367 = vand.u32 %v2286, 2147483648
    %v2368 = vor.u32 1.1754944e-38, %v2367
    %v2369 = vsel %vm2366, %v2368, %v2364
    %v2370 = vmul.f32 %v2258, %v2369
    %v2371 = vrcp.pop %v2289
    %v2372 = vmul.f32 %v2289, %v2371
    %v2373 = vsub.f32 1.0, %v2372
    %v2374 = vmul.f32 %v2371, %v2373
    %v2375 = vadd.f32 %v2371, %v2374
    %vm2376 = vweird.f32 %v2289
    %vm2377 = vweird.f32 %v2371
    %vm2378 = vmor %vm2376, %vm2377
    %v2379 = vsel %vm2378, %v2371, %v2375
    %v2380 = vand.u32 2147483647, %v2289
    %vm2381 = vcmp.eq.f32.partialorder %v2380, 8.507059e+37
    %v2382 = vand.u32 %v2289, 2147483648
    %v2383 = vor.u32 1.1754944e-38, %v2382
    %v2384 = vsel %vm2381, %v2383, %v2379
    %v2385 = vmul.f32 %v2260, %v2384
    %v2386 = vrcp.pop %v2292
    %v2387 = vmul.f32 %v2292, %v2386
    %v2388 = vsub.f32 1.0, %v2387
    %v2389 = vmul.f32 %v2386, %v2388
    %v2390 = vadd.f32 %v2386, %v2389
    %vm2391 = vweird.f32 %v2292
    %vm2392 = vweird.f32 %v2386
    %vm2393 = vmor %vm2391, %vm2392
    %v2394 = vsel %vm2393, %v2386, %v2390
    %v2395 = vand.u32 2147483647, %v2292
    %vm2396 = vcmp.eq.f32.partialorder %v2395, 8.507059e+37
    %v2397 = vand.u32 %v2292, 2147483648
    %v2398 = vor.u32 1.1754944e-38, %v2397
    %v2399 = vsel %vm2396, %v2398, %v2394
    %v2400 = vmul.f32 %v2262, %v2399
    %v2401 = vrcp.pop %v2295
    %v2402 = vmul.f32 %v2295, %v2401
    %v2403 = vsub.f32 1.0, %v2402
    %v2404 = vmul.f32 %v2401, %v2403
    %v2405 = vadd.f32 %v2401, %v2404
    %vm2406 = vweird.f32 %v2295
    %vm2407 = vweird.f32 %v2401
    %vm2408 = vmor %vm2406, %vm2407
    %v2409 = vsel %vm2408, %v2401, %v2405
    %v2410 = vand.u32 2147483647, %v2295
    %vm2411 = vcmp.eq.f32.partialorder %v2410, 8.507059e+37
    %v2412 = vand.u32 %v2295, 2147483648
    %v2413 = vor.u32 1.1754944e-38, %v2412
    %v2414 = vsel %vm2411, %v2413, %v2409
    %v2415 = vmul.f32 %v2264, %v2414
    %v2416 = vrcp.pop %v2298
    %v2417 = vmul.f32 %v2298, %v2416
    %v2418 = vsub.f32 1.0, %v2417
    %v2419 = vmul.f32 %v2416, %v2418
    %v2420 = vadd.f32 %v2416, %v2419
    %vm2421 = vweird.f32 %v2298
    %vm2422 = vweird.f32 %v2416
    %vm2423 = vmor %vm2421, %vm2422
    %v2424 = vsel %vm2423, %v2416, %v2420
    %v2425 = vand.u32 2147483647, %v2298
    %vm2426 = vcmp.eq.f32.partialorder %v2425, 8.507059e+37
    %v2427 = vand.u32 %v2298, 2147483648
    %v2428 = vor.u32 1.1754944e-38, %v2427
    %v2429 = vsel %vm2426, %v2428, %v2424
    %v2430 = vmul.f32 %v2266, %v2429
    %v2431 = vrcp.pop %v2301
    %v2432 = vmul.f32 %v2301, %v2431
    %v2433 = vsub.f32 1.0, %v2432
    %v2434 = vmul.f32 %v2431, %v2433
    %v2435 = vadd.f32 %v2431, %v2434
    %vm2436 = vweird.f32 %v2301
    %vm2437 = vweird.f32 %v2431
    %vm2438 = vmor %vm2436, %vm2437
    %v2439 = vsel %vm2438, %v2431, %v2435
    %v2440 = vand.u32 2147483647, %v2301
    %vm2441 = vcmp.eq.f32.partialorder %v2440, 8.507059e+37
    %v2442 = vand.u32 %v2301, 2147483648
    %v2443 = vor.u32 1.1754944e-38, %v2442
    %v2444 = vsel %vm2441, %v2443, %v2439
    %v2445 = vmul.f32 %v2268, %v2444
    %v2446 = vrcp.pop %v2304
    %v2447 = vmul.f32 %v2304, %v2446
    %v2448 = vsub.f32 1.0, %v2447
    %v2449 = vmul.f32 %v2446, %v2448
    %v2450 = vadd.f32 %v2446, %v2449
    %vm2451 = vweird.f32 %v2304
    %vm2452 = vweird.f32 %v2446
    %vm2453 = vmor %vm2451, %vm2452
    %v2454 = vsel %vm2453, %v2446, %v2450
    %v2455 = vand.u32 2147483647, %v2304
    %vm2456 = vcmp.eq.f32.partialorder %v2455, 8.507059e+37
    %v2457 = vand.u32 %v2304, 2147483648
    %v2458 = vor.u32 1.1754944e-38, %v2457
    %v2459 = vsel %vm2456, %v2458, %v2454
    %v2460 = vmul.f32 %v2270, %v2459
    %v2461 = vrcp.pop %v2307
    %v2462 = vmul.f32 %v2307, %v2461
    %v2463 = vsub.f32 1.0, %v2462
    %v2464 = vmul.f32 %v2461, %v2463
    %v2465 = vadd.f32 %v2461, %v2464
    %vm2466 = vweird.f32 %v2307
    %vm2467 = vweird.f32 %v2461
    %vm2468 = vmor %vm2466, %vm2467
    %v2469 = vsel %vm2468, %v2461, %v2465
    %v2470 = vand.u32 2147483647, %v2307
    %vm2471 = vcmp.eq.f32.partialorder %v2470, 8.507059e+37
    %v2472 = vand.u32 %v2307, 2147483648
    %v2473 = vor.u32 1.1754944e-38, %v2472
    %v2474 = vsel %vm2471, %v2473, %v2469
    %v2475 = vmul.f32 %v2272, %v2474
    %v2476 = vrcp.pop %v2310
    %v2477 = vmul.f32 %v2310, %v2476
    %v2478 = vsub.f32 1.0, %v2477
    %v2479 = vmul.f32 %v2476, %v2478
    %v2480 = vadd.f32 %v2476, %v2479
    %vm2481 = vweird.f32 %v2310
    %vm2482 = vweird.f32 %v2476
    %vm2483 = vmor %vm2481, %vm2482
    %v2484 = vsel %vm2483, %v2476, %v2480
    %v2485 = vand.u32 2147483647, %v2310
    %vm2486 = vcmp.eq.f32.partialorder %v2485, 8.507059e+37
    %v2487 = vand.u32 %v2310, 2147483648
    %v2488 = vor.u32 1.1754944e-38, %v2487
    %v2489 = vsel %vm2486, %v2488, %v2484
    %v2490 = vmul.f32 %v2274, %v2489
    %v2491 = vpack.c.bf16 %v2340, %v2325
    %v2492 = vpack.c.bf16 %v2370, %v2355
    %v2493 = vpack.c.bf16 %v2400, %v2385
    %v2494 = vpack.c.bf16 %v2430, %v2415
    %v2495 = vpack.c.bf16 %v2460, %v2445
    %v2496 = vpack.c.bf16 %v2490, %v2475
    %v2497 = vpack.c.bf16 %v2108, %v2106
    %v2498 = vpack.c.bf16 %v2111, %v2111
    %v2500 = vsel %vm586, %v2491, 0
    %v2503 = vsel %vm586, %v2492, 0
    %v2506 = vsel %vm586, %v2493, 0
    %v2509 = vsel %vm586, %v2494, 0
    %v2512 = vsel %vm586, %v2495, 0
    %v2515 = vsel %vm586, %v2496, 0
    %v2518 = vsel %vm901, %v2498, 0
    %2520 = vmatpush.bf16.msra.mxu0 0
    %2521 = vmatpush.bf16.msra.mxu0 0
    %2522 = vmatpush.bf16.msra.mxu0 0
    %2523 = vmatpush.bf16.msra.mxu0 0
    %2524 = vmatpush.bf16.msra.mxu0 0
    %2525 = vmatpush.bf16.msra.mxu0 0
    %2526 = vmatpush.bf16.msra.mxu0 %v2518
    %2527 = vmatpush.bf16.msra.mxu0 %v2497
    %2528 = vmatmul.bf16.gmra.mxu0 %v2500
    %v2529 = vpop.f32.mrf.mxu0
    %v2530 = vadd.f32 0.0, %v2529
    %v2531 = vpop.f32.mrf.mxu0
    %v2532 = vadd.f32 0.0, %v2531
    %2533 = vmatmul.bf16.gmra.mxu0 %v2503
    %v2534 = vpop.f32.mrf.mxu0
    %v2535 = vadd.f32 0.0, %v2534
    %v2536 = vpop.f32.mrf.mxu0
    %v2537 = vadd.f32 0.0, %v2536
    %2538 = vmatmul.bf16.gmra.mxu0 %v2506
    %v2539 = vpop.f32.mrf.mxu0
    %v2540 = vadd.f32 0.0, %v2539
    %v2541 = vpop.f32.mrf.mxu0
    %v2542 = vadd.f32 0.0, %v2541
    %2543 = vmatmul.bf16.gmra.mxu0 %v2509
    %v2544 = vpop.f32.mrf.mxu0
    %v2545 = vadd.f32 0.0, %v2544
    %v2546 = vpop.f32.mrf.mxu0
    %v2547 = vadd.f32 0.0, %v2546
    %2548 = vmatmul.bf16.gmra.mxu0 %v2512
    %v2549 = vpop.f32.mrf.mxu0
    %v2550 = vadd.f32 0.0, %v2549
    %v2551 = vpop.f32.mrf.mxu0
    %v2552 = vadd.f32 0.0, %v2551
    %2553 = vmatmul.bf16.gmra.mxu0 %v2515
    %v2554 = vpop.f32.mrf.mxu0
    %v2555 = vadd.f32 0.0, %v2554
    %v2556 = vpop.f32.mrf.mxu0
    %v2557 = vadd.f32 0.0, %v2556
    %2558 = vdwg.mxu0
    %v2559 = vmul.f32 %v2530, %v18
    %v2560 = vmul.f32 %v2532, %v18
    %v2561 = vmul.f32 %v2535, %v18
    %v2562 = vmul.f32 %v2537, %v22
    %v2563 = vmul.f32 %v2540, %v22
    %v2564 = vmul.f32 %v2542, %v22
    %v2565 = vadd.f32 %v2559, %v2562
    %v2566 = vadd.f32 %v2560, %v2563
    %v2567 = vadd.f32 %v2561, %v2564
    %v2568 = vmul.f32 %v2545, %v26
    %v2569 = vmul.f32 %v2547, %v26
    %v2570 = vmul.f32 %v2550, %v26
    %v2571 = vadd.f32 %v2565, %v2568
    %v2572 = vadd.f32 %v2566, %v2569
    %v2573 = vadd.f32 %v2567, %v2570
    %v2574 = vmul.f32 %v2552, %v30
    %v2575 = vmul.f32 %v2555, %v30
    %v2576 = vmul.f32 %v2557, %v30
    %v2577 = vadd.f32 %v2571, %v2574
    %v2578 = vadd.f32 %v2572, %v2575
    %v2579 = vadd.f32 %v2573, %v2576
    %v2580 = vmul.f32 %v2049, %v18
    %v2581 = vmul.f32 %v2052, %v18
    %v2582 = vmul.f32 %v2054, %v18
    %v2583 = vmul.f32 %v2049, %v22
    %v2584 = vmul.f32 %v2052, %v22
    %v2585 = vmul.f32 %v2054, %v22
    %v2586 = vmul.f32 %v2049, %v26
    %v2587 = vmul.f32 %v2052, %v26
    %v2588 = vmul.f32 %v2054, %v26
    %v2589 = vmul.f32 %v2049, %v30
    %v2590 = vmul.f32 %v2052, %v30
    %v2591 = vmul.f32 %v2054, %v30
    %v2592 = vpack.c.bf16 %v2581, %v2580
    %v2593 = vpack.c.bf16 %v2583, %v2582
    %v2594 = vpack.c.bf16 %v2585, %v2584
    %v2595 = vpack.c.bf16 %v2587, %v2586
    %v2596 = vpack.c.bf16 %v2589, %v2588
    %v2597 = vpack.c.bf16 %v2591, %v2590
    %v2598 = vpack.c.bf16 %v2084, %v2081
    %v2599 = vpack.c.bf16 %v2086, %v2086
    %v2601 = vsel %vm93, %v2592, 0
    %v2604 = vsel %vm93, %v2593, 0
    %v2607 = vsel %vm93, %v2594, 0
    %v2610 = vsel %vm93, %v2595, 0
    %v2613 = vsel %vm93, %v2596, 0
    %v2616 = vsel %vm93, %v2597, 0
    %v2619 = vsel %vm93, %v2598, 0
    %v2622 = vsel %vm93, %v2599, 0
    %2624 = vmatpush.bf16.xpose.msra.mxu0 0
    %2625 = vmatpush.bf16.xpose.msra.mxu0 0
    %2626 = vmatpush.bf16.xpose.msra.mxu0 0
    %2627 = vmatpush.bf16.xpose.msra.mxu0 0
    %2628 = vmatpush.bf16.xpose.msra.mxu0 0
    %2629 = vmatpush.bf16.xpose.msra.mxu0 0
    %2630 = vmatpush.bf16.xpose.msra.mxu0 %v2622
    %2631 = vmatpush.bf16.xpose.msra.mxu0 %v2619
    %2632 = vmatmul.bf16.gmra.mxu0 %v2601
    %v2633 = vpop.f32.mrf.mxu0
    %v2634 = vadd.f32 %v32, %v2633
    %v2635 = vpop.f32.mrf.mxu0
    %v2636 = vadd.f32 %v32, %v2635
    %2637 = vmatmul.bf16.gmra.mxu0 %v2604
    %v2638 = vpop.f32.mrf.mxu0
    %v2639 = vadd.f32 %v32, %v2638
    %v2640 = vpop.f32.mrf.mxu0
    %v2641 = vadd.f32 %v32, %v2640
    %2642 = vmatmul.bf16.gmra.mxu0 %v2607
    %v2643 = vpop.f32.mrf.mxu0
    %v2644 = vadd.f32 %v32, %v2643
    %v2645 = vpop.f32.mrf.mxu0
    %v2646 = vadd.f32 %v32, %v2645
    %2647 = vmatmul.bf16.gmra.mxu0 %v2610
    %v2648 = vpop.f32.mrf.mxu0
    %v2649 = vadd.f32 %v32, %v2648
    %v2650 = vpop.f32.mrf.mxu0
    %v2651 = vadd.f32 %v32, %v2650
    %2652 = vmatmul.bf16.gmra.mxu0 %v2613
    %v2653 = vpop.f32.mrf.mxu0
    %v2654 = vadd.f32 %v32, %v2653
    %v2655 = vpop.f32.mrf.mxu0
    %v2656 = vadd.f32 %v32, %v2655
    %2657 = vmatmul.bf16.gmra.mxu0 %v2616
    %v2658 = vpop.f32.mrf.mxu0
    %v2659 = vadd.f32 %v32, %v2658
    %v2660 = vpop.f32.mrf.mxu0
    %v2661 = vadd.f32 %v32, %v2660
    %2662 = vdwg.mxu0
    %v2663 = vsel %vm586, %v2634, -inf
    %2664 = vmax.xlane.f32.xlu0 %v2663
    %v2665 = vpop.xlane.xlu0 %2664
    %v2666 = vsel %vm586, %v2636, -inf
    %2667 = vmax.xlane.f32.xlu0 %v2666
    %v2668 = vpop.xlane.xlu0 %2667
    %v2669 = vsel %vm586, %v2639, -inf
    %2670 = vmax.xlane.f32.xlu0 %v2669
    %v2671 = vpop.xlane.xlu0 %2670
    %v2672 = vsel %vm586, %v2641, -inf
    %2673 = vmax.xlane.f32.xlu0 %v2672
    %v2674 = vpop.xlane.xlu0 %2673
    %v2675 = vsel %vm586, %v2644, -inf
    %2676 = vmax.xlane.f32.xlu0 %v2675
    %v2677 = vpop.xlane.xlu0 %2676
    %v2678 = vsel %vm586, %v2646, -inf
    %2679 = vmax.xlane.f32.xlu0 %v2678
    %v2680 = vpop.xlane.xlu0 %2679
    %v2681 = vsel %vm586, %v2649, -inf
    %2682 = vmax.xlane.f32.xlu0 %v2681
    %v2683 = vpop.xlane.xlu0 %2682
    %v2684 = vsel %vm586, %v2651, -inf
    %2685 = vmax.xlane.f32.xlu0 %v2684
    %v2686 = vpop.xlane.xlu0 %2685
    %v2687 = vsel %vm586, %v2654, -inf
    %2688 = vmax.xlane.f32.xlu0 %v2687
    %v2689 = vpop.xlane.xlu0 %2688
    %v2690 = vsel %vm586, %v2656, -inf
    %2691 = vmax.xlane.f32.xlu0 %v2690
    %v2692 = vpop.xlane.xlu0 %2691
    %v2693 = vsel %vm586, %v2659, -inf
    %2694 = vmax.xlane.f32.xlu0 %v2693
    %v2695 = vpop.xlane.xlu0 %2694
    %v2696 = vsel %vm586, %v2661, -inf
    %2697 = vmax.xlane.f32.xlu0 %v2696
    %v2698 = vpop.xlane.xlu0 %2697
    %v2699 = vsub.f32 %v2634, %v2665
    %v2700 = vsub.f32 %v2636, %v2668
    %v2701 = vsub.f32 %v2639, %v2671
    %v2702 = vsub.f32 %v2641, %v2674
    %v2703 = vsub.f32 %v2644, %v2677
    %v2704 = vsub.f32 %v2646, %v2680
    %v2705 = vsub.f32 %v2649, %v2683
    %v2706 = vsub.f32 %v2651, %v2686
    %v2707 = vsub.f32 %v2654, %v2689
    %v2708 = vsub.f32 %v2656, %v2692
    %v2709 = vsub.f32 %v2659, %v2695
    %v2710 = vsub.f32 %v2661, %v2698
    %v2711 = vmul.f32 %v2699, 1.442695
    %v2712 = vpow.pop %v2711
    %v2713 = vmul.f32 %v2700, 1.442695
    %v2714 = vpow.pop %v2713
    %v2715 = vmul.f32 %v2701, 1.442695
    %v2716 = vpow.pop %v2715
    %v2717 = vmul.f32 %v2702, 1.442695
    %v2718 = vpow.pop %v2717
    %v2719 = vmul.f32 %v2703, 1.442695
    %v2720 = vpow.pop %v2719
    %v2721 = vmul.f32 %v2704, 1.442695
    %v2722 = vpow.pop %v2721
    %v2723 = vmul.f32 %v2705, 1.442695
    %v2724 = vpow.pop %v2723
    %v2725 = vmul.f32 %v2706, 1.442695
    %v2726 = vpow.pop %v2725
    %v2727 = vmul.f32 %v2707, 1.442695
    %v2728 = vpow.pop %v2727
    %v2729 = vmul.f32 %v2708, 1.442695
    %v2730 = vpow.pop %v2729
    %v2731 = vmul.f32 %v2709, 1.442695
    %v2732 = vpow.pop %v2731
    %v2733 = vmul.f32 %v2710, 1.442695
    %v2734 = vpow.pop %v2733
    %v2735 = vsel %vm586, %v2712, 0.0
    %2736 = vadd.xlane.f32.xlu0 %v2735
    %v2737 = vpop.xlane.xlu0 %2736
    %v2738 = vsel %vm586, %v2714, 0.0
    %2739 = vadd.xlane.f32.xlu0 %v2738
    %v2740 = vpop.xlane.xlu0 %2739
    %v2741 = vsel %vm586, %v2716, 0.0
    %2742 = vadd.xlane.f32.xlu0 %v2741
    %v2743 = vpop.xlane.xlu0 %2742
    %v2744 = vsel %vm586, %v2718, 0.0
    %2745 = vadd.xlane.f32.xlu0 %v2744
    %v2746 = vpop.xlane.xlu0 %2745
    %v2747 = vsel %vm586, %v2720, 0.0
    %2748 = vadd.xlane.f32.xlu0 %v2747
    %v2749 = vpop.xlane.xlu0 %2748
    %v2750 = vsel %vm586, %v2722, 0.0
    %2751 = vadd.xlane.f32.xlu0 %v2750
    %v2752 = vpop.xlane.xlu0 %2751
    %v2753 = vsel %vm586, %v2724, 0.0
    %2754 = vadd.xlane.f32.xlu0 %v2753
    %v2755 = vpop.xlane.xlu0 %2754
    %v2756 = vsel %vm586, %v2726, 0.0
    %2757 = vadd.xlane.f32.xlu0 %v2756
    %v2758 = vpop.xlane.xlu0 %2757
    %v2759 = vsel %vm586, %v2728, 0.0
    %2760 = vadd.xlane.f32.xlu0 %v2759
    %v2761 = vpop.xlane.xlu0 %2760
    %v2762 = vsel %vm586, %v2730, 0.0
    %2763 = vadd.xlane.f32.xlu0 %v2762
    %v2764 = vpop.xlane.xlu0 %2763
    %v2765 = vsel %vm586, %v2732, 0.0
    %2766 = vadd.xlane.f32.xlu0 %v2765
    %v2767 = vpop.xlane.xlu0 %2766
    %v2768 = vsel %vm586, %v2734, 0.0
    %2769 = vadd.xlane.f32.xlu0 %v2768
    %v2770 = vpop.xlane.xlu0 %2769
    %v2771 = vrcp.pop %v2737
    %v2772 = vmul.f32 %v2737, %v2771
    %v2773 = vsub.f32 1.0, %v2772
    %v2774 = vmul.f32 %v2771, %v2773
    %v2775 = vadd.f32 %v2771, %v2774
    %vm2776 = vweird.f32 %v2737
    %vm2777 = vweird.f32 %v2771
    %vm2778 = vmor %vm2776, %vm2777
    %v2779 = vsel %vm2778, %v2771, %v2775
    %v2780 = vand.u32 2147483647, %v2737
    %vm2781 = vcmp.eq.f32.partialorder %v2780, 8.507059e+37
    %v2782 = vand.u32 %v2737, 2147483648
    %v2783 = vor.u32 1.1754944e-38, %v2782
    %v2784 = vsel %vm2781, %v2783, %v2779
    %v2785 = vmul.f32 %v2712, %v2784
    %v2786 = vrcp.pop %v2740
    %v2787 = vmul.f32 %v2740, %v2786
    %v2788 = vsub.f32 1.0, %v2787
    %v2789 = vmul.f32 %v2786, %v2788
    %v2790 = vadd.f32 %v2786, %v2789
    %vm2791 = vweird.f32 %v2740
    %vm2792 = vweird.f32 %v2786
    %vm2793 = vmor %vm2791, %vm2792
    %v2794 = vsel %vm2793, %v2786, %v2790
    %v2795 = vand.u32 2147483647, %v2740
    %vm2796 = vcmp.eq.f32.partialorder %v2795, 8.507059e+37
    %v2797 = vand.u32 %v2740, 2147483648
    %v2798 = vor.u32 1.1754944e-38, %v2797
    %v2799 = vsel %vm2796, %v2798, %v2794
    %v2800 = vmul.f32 %v2714, %v2799
    %v2801 = vrcp.pop %v2743
    %v2802 = vmul.f32 %v2743, %v2801
    %v2803 = vsub.f32 1.0, %v2802
    %v2804 = vmul.f32 %v2801, %v2803
    %v2805 = vadd.f32 %v2801, %v2804
    %vm2806 = vweird.f32 %v2743
    %vm2807 = vweird.f32 %v2801
    %vm2808 = vmor %vm2806, %vm2807
    %v2809 = vsel %vm2808, %v2801, %v2805
    %v2810 = vand.u32 2147483647, %v2743
    %vm2811 = vcmp.eq.f32.partialorder %v2810, 8.507059e+37
    %v2812 = vand.u32 %v2743, 2147483648
    %v2813 = vor.u32 1.1754944e-38, %v2812
    %v2814 = vsel %vm2811, %v2813, %v2809
    %v2815 = vmul.f32 %v2716, %v2814
    %v2816 = vrcp.pop %v2746
    %v2817 = vmul.f32 %v2746, %v2816
    %v2818 = vsub.f32 1.0, %v2817
    %v2819 = vmul.f32 %v2816, %v2818
    %v2820 = vadd.f32 %v2816, %v2819
    %vm2821 = vweird.f32 %v2746
    %vm2822 = vweird.f32 %v2816
    %vm2823 = vmor %vm2821, %vm2822
    %v2824 = vsel %vm2823, %v2816, %v2820
    %v2825 = vand.u32 2147483647, %v2746
    %vm2826 = vcmp.eq.f32.partialorder %v2825, 8.507059e+37
    %v2827 = vand.u32 %v2746, 2147483648
    %v2828 = vor.u32 1.1754944e-38, %v2827
    %v2829 = vsel %vm2826, %v2828, %v2824
    %v2830 = vmul.f32 %v2718, %v2829
    %v2831 = vrcp.pop %v2749
    %v2832 = vmul.f32 %v2749, %v2831
    %v2833 = vsub.f32 1.0, %v2832
    %v2834 = vmul.f32 %v2831, %v2833
    %v2835 = vadd.f32 %v2831, %v2834
    %vm2836 = vweird.f32 %v2749
    %vm2837 = vweird.f32 %v2831
    %vm2838 = vmor %vm2836, %vm2837
    %v2839 = vsel %vm2838, %v2831, %v2835
    %v2840 = vand.u32 2147483647, %v2749
    %vm2841 = vcmp.eq.f32.partialorder %v2840, 8.507059e+37
    %v2842 = vand.u32 %v2749, 2147483648
    %v2843 = vor.u32 1.1754944e-38, %v2842
    %v2844 = vsel %vm2841, %v2843, %v2839
    %v2845 = vmul.f32 %v2720, %v2844
    %v2846 = vrcp.pop %v2752
    %v2847 = vmul.f32 %v2752, %v2846
    %v2848 = vsub.f32 1.0, %v2847
    %v2849 = vmul.f32 %v2846, %v2848
    %v2850 = vadd.f32 %v2846, %v2849
    %vm2851 = vweird.f32 %v2752
    %vm2852 = vweird.f32 %v2846
    %vm2853 = vmor %vm2851, %vm2852
    %v2854 = vsel %vm2853, %v2846, %v2850
    %v2855 = vand.u32 2147483647, %v2752
    %vm2856 = vcmp.eq.f32.partialorder %v2855, 8.507059e+37
    %v2857 = vand.u32 %v2752, 2147483648
    %v2858 = vor.u32 1.1754944e-38, %v2857
    %v2859 = vsel %vm2856, %v2858, %v2854
    %v2860 = vmul.f32 %v2722, %v2859
    %v2861 = vrcp.pop %v2755
    %v2862 = vmul.f32 %v2755, %v2861
    %v2863 = vsub.f32 1.0, %v2862
    %v2864 = vmul.f32 %v2861, %v2863
    %v2865 = vadd.f32 %v2861, %v2864
    %vm2866 = vweird.f32 %v2755
    %vm2867 = vweird.f32 %v2861
    %vm2868 = vmor %vm2866, %vm2867
    %v2869 = vsel %vm2868, %v2861, %v2865
    %v2870 = vand.u32 2147483647, %v2755
    %vm2871 = vcmp.eq.f32.partialorder %v2870, 8.507059e+37
    %v2872 = vand.u32 %v2755, 2147483648
    %v2873 = vor.u32 1.1754944e-38, %v2872
    %v2874 = vsel %vm2871, %v2873, %v2869
    %v2875 = vmul.f32 %v2724, %v2874
    %v2876 = vrcp.pop %v2758
    %v2877 = vmul.f32 %v2758, %v2876
    %v2878 = vsub.f32 1.0, %v2877
    %v2879 = vmul.f32 %v2876, %v2878
    %v2880 = vadd.f32 %v2876, %v2879
    %vm2881 = vweird.f32 %v2758
    %vm2882 = vweird.f32 %v2876
    %vm2883 = vmor %vm2881, %vm2882
    %v2884 = vsel %vm2883, %v2876, %v2880
    %v2885 = vand.u32 2147483647, %v2758
    %vm2886 = vcmp.eq.f32.partialorder %v2885, 8.507059e+37
    %v2887 = vand.u32 %v2758, 2147483648
    %v2888 = vor.u32 1.1754944e-38, %v2887
    %v2889 = vsel %vm2886, %v2888, %v2884
    %v2890 = vmul.f32 %v2726, %v2889
    %v2891 = vrcp.pop %v2761
    %v2892 = vmul.f32 %v2761, %v2891
    %v2893 = vsub.f32 1.0, %v2892
    %v2894 = vmul.f32 %v2891, %v2893
    %v2895 = vadd.f32 %v2891, %v2894
    %vm2896 = vweird.f32 %v2761
    %vm2897 = vweird.f32 %v2891
    %vm2898 = vmor %vm2896, %vm2897
    %v2899 = vsel %vm2898, %v2891, %v2895
    %v2900 = vand.u32 2147483647, %v2761
    %vm2901 = vcmp.eq.f32.partialorder %v2900, 8.507059e+37
    %v2902 = vand.u32 %v2761, 2147483648
    %v2903 = vor.u32 1.1754944e-38, %v2902
    %v2904 = vsel %vm2901, %v2903, %v2899
    %v2905 = vmul.f32 %v2728, %v2904
    %v2906 = vrcp.pop %v2764
    %v2907 = vmul.f32 %v2764, %v2906
    %v2908 = vsub.f32 1.0, %v2907
    %v2909 = vmul.f32 %v2906, %v2908
    %v2910 = vadd.f32 %v2906, %v2909
    %vm2911 = vweird.f32 %v2764
    %vm2912 = vweird.f32 %v2906
    %vm2913 = vmor %vm2911, %vm2912
    %v2914 = vsel %vm2913, %v2906, %v2910
    %v2915 = vand.u32 2147483647, %v2764
    %vm2916 = vcmp.eq.f32.partialorder %v2915, 8.507059e+37
    %v2917 = vand.u32 %v2764, 2147483648
    %v2918 = vor.u32 1.1754944e-38, %v2917
    %v2919 = vsel %vm2916, %v2918, %v2914
    %v2920 = vmul.f32 %v2730, %v2919
    %v2921 = vrcp.pop %v2767
    %v2922 = vmul.f32 %v2767, %v2921
    %v2923 = vsub.f32 1.0, %v2922
    %v2924 = vmul.f32 %v2921, %v2923
    %v2925 = vadd.f32 %v2921, %v2924
    %vm2926 = vweird.f32 %v2767
    %vm2927 = vweird.f32 %v2921
    %vm2928 = vmor %vm2926, %vm2927
    %v2929 = vsel %vm2928, %v2921, %v2925
    %v2930 = vand.u32 2147483647, %v2767
    %vm2931 = vcmp.eq.f32.partialorder %v2930, 8.507059e+37
    %v2932 = vand.u32 %v2767, 2147483648
    %v2933 = vor.u32 1.1754944e-38, %v2932
    %v2934 = vsel %vm2931, %v2933, %v2929
    %v2935 = vmul.f32 %v2732, %v2934
    %v2936 = vrcp.pop %v2770
    %v2937 = vmul.f32 %v2770, %v2936
    %v2938 = vsub.f32 1.0, %v2937
    %v2939 = vmul.f32 %v2936, %v2938
    %v2940 = vadd.f32 %v2936, %v2939
    %vm2941 = vweird.f32 %v2770
    %vm2942 = vweird.f32 %v2936
    %vm2943 = vmor %vm2941, %vm2942
    %v2944 = vsel %vm2943, %v2936, %v2940
    %v2945 = vand.u32 2147483647, %v2770
    %vm2946 = vcmp.eq.f32.partialorder %v2945, 8.507059e+37
    %v2947 = vand.u32 %v2770, 2147483648
    %v2948 = vor.u32 1.1754944e-38, %v2947
    %v2949 = vsel %vm2946, %v2948, %v2944
    %v2950 = vmul.f32 %v2734, %v2949
    %v2951 = vpack.c.bf16 %v2800, %v2785
    %v2952 = vpack.c.bf16 %v2830, %v2815
    %v2953 = vpack.c.bf16 %v2860, %v2845
    %v2954 = vpack.c.bf16 %v2890, %v2875
    %v2955 = vpack.c.bf16 %v2920, %v2905
    %v2956 = vpack.c.bf16 %v2950, %v2935
    %v2957 = vpack.c.bf16 %v2116, %v2113
    %v2958 = vpack.c.bf16 %v2118, %v2118
    %v2960 = vsel %vm586, %v2951, 0
    %v2963 = vsel %vm586, %v2952, 0
    %v2966 = vsel %vm586, %v2953, 0
    %v2969 = vsel %vm586, %v2954, 0
    %v2972 = vsel %vm586, %v2955, 0
    %v2975 = vsel %vm586, %v2956, 0
    %v2978 = vsel %vm901, %v2958, 0
    %2980 = vmatpush.bf16.msra.mxu0 0
    %2981 = vmatpush.bf16.msra.mxu0 0
    %2982 = vmatpush.bf16.msra.mxu0 0
    %2983 = vmatpush.bf16.msra.mxu0 0
    %2984 = vmatpush.bf16.msra.mxu0 0
    %2985 = vmatpush.bf16.msra.mxu0 0
    %2986 = vmatpush.bf16.msra.mxu0 %v2978
    %2987 = vmatpush.bf16.msra.mxu0 %v2957
    %2988 = vmatmul.bf16.gmra.mxu0 %v2960
    %v2989 = vpop.f32.mrf.mxu0
    %v2990 = vadd.f32 0.0, %v2989
    %v2991 = vpop.f32.mrf.mxu0
    %v2992 = vadd.f32 0.0, %v2991
    %2993 = vmatmul.bf16.gmra.mxu0 %v2963
    %v2994 = vpop.f32.mrf.mxu0
    %v2995 = vadd.f32 0.0, %v2994
    %v2996 = vpop.f32.mrf.mxu0
    %v2997 = vadd.f32 0.0, %v2996
    %2998 = vmatmul.bf16.gmra.mxu0 %v2966
    %v2999 = vpop.f32.mrf.mxu0
    %v3000 = vadd.f32 0.0, %v2999
    %v3001 = vpop.f32.mrf.mxu0
    %v3002 = vadd.f32 0.0, %v3001
    %3003 = vmatmul.bf16.gmra.mxu0 %v2969
    %v3004 = vpop.f32.mrf.mxu0
    %v3005 = vadd.f32 0.0, %v3004
    %v3006 = vpop.f32.mrf.mxu0
    %v3007 = vadd.f32 0.0, %v3006
    %3008 = vmatmul.bf16.gmra.mxu0 %v2972
    %v3009 = vpop.f32.mrf.mxu0
    %v3010 = vadd.f32 0.0, %v3009
    %v3011 = vpop.f32.mrf.mxu0
    %v3012 = vadd.f32 0.0, %v3011
    %3013 = vmatmul.bf16.gmra.mxu0 %v2975
    %v3014 = vpop.f32.mrf.mxu0
    %v3015 = vadd.f32 0.0, %v3014
    %v3016 = vpop.f32.mrf.mxu0
    %v3017 = vadd.f32 0.0, %v3016
    %3018 = vdwg.mxu0
    %v3019 = vmul.f32 %v2990, %v18
    %v3020 = vmul.f32 %v2992, %v18
    %v3021 = vmul.f32 %v2995, %v18
    %v3022 = vmul.f32 %v2997, %v22
    %v3023 = vmul.f32 %v3000, %v22
    %v3024 = vmul.f32 %v3002, %v22
    %v3025 = vadd.f32 %v3019, %v3022
    %v3026 = vadd.f32 %v3020, %v3023
    %v3027 = vadd.f32 %v3021, %v3024
    %v3028 = vmul.f32 %v3005, %v26
    %v3029 = vmul.f32 %v3007, %v26
    %v3030 = vmul.f32 %v3010, %v26
    %v3031 = vadd.f32 %v3025, %v3028
    %v3032 = vadd.f32 %v3026, %v3029
    %v3033 = vadd.f32 %v3027, %v3030
    %v3034 = vmul.f32 %v3012, %v30
    %v3035 = vmul.f32 %v3015, %v30
    %v3036 = vmul.f32 %v3017, %v30
    %v3037 = vadd.f32 %v3031, %v3034
    %v3038 = vadd.f32 %v3032, %v3035
    %v3039 = vadd.f32 %v3033, %v3036
    %v3040 = vld [vmem:[%s1 + $0x1f8] sm:$0xff]
    %v3041 = vld [vmem:[%s1 + $0x200] sm:$0xff]
    %v3042 = vld [vmem:[%s1 + $0x208] sm:$0xff]
    %v3043 = vld [vmem:[%s1 + $0x210] sm:$0xff]
    %v3044 = vpack.c.bf16 %v2578, %v2577
    %v3045 = vpack.c.bf16 %v3037, %v2579
    %v3046 = vpack.c.bf16 %v3039, %v3038
    %v3047 = vpack.c.bf16 %v3041, %v3040
    %v3048 = vpack.c.bf16 %v3043, %v3042
    %v3050 = vsel %vm93, %v3044, 0
    %v3053 = vsel %vm93, %v3045, 0
    %v3056 = vsel %vm93, %v3046, 0
    %3058 = vmatpush.bf16.msra.mxu0 0
    %3059 = vmatpush.bf16.msra.mxu0 0
    %3060 = vmatpush.bf16.msra.mxu0 0
    %3061 = vmatpush.bf16.msra.mxu0 0
    %3062 = vmatpush.bf16.msra.mxu0 0
    %3063 = vmatpush.bf16.msra.mxu0 0
    %3064 = vmatpush.bf16.msra.mxu0 %v3048
    %3065 = vmatpush.bf16.msra.mxu0 %v3047
    %3066 = vmatmul.bf16.gmra.mxu0 %v3050
    %v3067 = vpop.f32.mrf.mxu0
    %v3068 = vadd.f32 0.0, %v3067
    %v3069 = vpop.f32.mrf.mxu0
    %v3070 = vadd.f32 0.0, %v3069
    %3071 = vmatmul.bf16.gmra.mxu0 %v3053
    %v3072 = vpop.f32.mrf.mxu0
    %v3073 = vadd.f32 0.0, %v3072
    %v3074 = vpop.f32.mrf.mxu0
    %v3075 = vadd.f32 0.0, %v3074
    %3076 = vmatmul.bf16.gmra.mxu0 %v3056
    %v3077 = vpop.f32.mrf.mxu0
    %v3078 = vadd.f32 0.0, %v3077
    %v3079 = vpop.f32.mrf.mxu0
    %v3080 = vadd.f32 0.0, %v3079
    %3081 = vdwg.mxu0
    %v3082 = vadd.f32 %v1858, %v3068
    %v3083 = vadd.f32 %v1859, %v3070
    %v3084 = vadd.f32 %v1860, %v3073
    %v3085 = vadd.f32 %v1861, %v3075
    %v3086 = vadd.f32 %v1862, %v3078
    %v3087 = vadd.f32 %v1863, %v3080
    %v3088 = vld [vmem:[%s1 + $0x73] sm:$0x1]
    %v3089 = vperm.slane %v3088, 0
    %v3090 = vadd.f32 %v3082, %v3089
    %v3091 = vadd.f32 %v3083, %v3089
    %v3092 = vadd.f32 %v3084, %v3089
    %v3093 = vadd.f32 %v3085, %v3089
    %v3094 = vadd.f32 %v3086, %v3089
    %v3095 = vadd.f32 %v3087, %v3089
    %v3096 = vld [vmem:[%s1 + $0x74] sm:$0x1]
    %v3097 = vld [vmem:[%s1 + $0x75] sm:$0x1]
    %v3098 = vsel %vm93, %v3090, 0.0
    %3099 = vadd.xlane.f32.xlu0 %v3098
    %v3100 = vpop.xlane.xlu0 %3099
    %v3101 = vsel %vm93, %v3091, 0.0
    %3102 = vadd.xlane.f32.xlu0 %v3101
    %v3103 = vpop.xlane.xlu0 %3102
    %v3104 = vsel %vm93, %v3092, 0.0
    %3105 = vadd.xlane.f32.xlu0 %v3104
    %v3106 = vpop.xlane.xlu0 %3105
    %v3107 = vsel %vm93, %v3093, 0.0
    %3108 = vadd.xlane.f32.xlu0 %v3107
    %v3109 = vpop.xlane.xlu0 %3108
    %v3110 = vsel %vm93, %v3094, 0.0
    %3111 = vadd.xlane.f32.xlu0 %v3110
    %v3112 = vpop.xlane.xlu0 %3111
    %v3113 = vsel %vm93, %v3095, 0.0
    %3114 = vadd.xlane.f32.xlu0 %v3113
    %v3115 = vpop.xlane.xlu0 %3114
    %v3116 = vmul.f32 %v3100, %v118
    %v3117 = vmul.f32 %v3103, %v118
    %v3118 = vmul.f32 %v3106, %v118
    %v3119 = vmul.f32 %v3109, %v118
    %v3120 = vmul.f32 %v3112, %v118
    %v3121 = vmul.f32 %v3115, %v118
    %v3122 = vsub.f32 %v3090, %v3116
    %v3123 = vsub.f32 %v3091, %v3117
    %v3124 = vsub.f32 %v3092, %v3118
    %v3125 = vsub.f32 %v3093, %v3119
    %v3126 = vsub.f32 %v3094, %v3120
    %v3127 = vsub.f32 %v3095, %v3121
    %v3128 = vmul.f32 %v3122, %v3122
    %v3129 = vmul.f32 %v3123, %v3123
    %v3130 = vmul.f32 %v3124, %v3124
    %v3131 = vmul.f32 %v3125, %v3125
    %v3132 = vmul.f32 %v3126, %v3126
    %v3133 = vmul.f32 %v3127, %v3127
    %v3134 = vsel %vm93, %v3128, 0.0
    %3135 = vadd.xlane.f32.xlu0 %v3134
    %v3136 = vpop.xlane.xlu0 %3135
    %v3137 = vsel %vm93, %v3129, 0.0
    %3138 = vadd.xlane.f32.xlu0 %v3137
    %v3139 = vpop.xlane.xlu0 %3138
    %v3140 = vsel %vm93, %v3130, 0.0
    %3141 = vadd.xlane.f32.xlu0 %v3140
    %v3142 = vpop.xlane.xlu0 %3141
    %v3143 = vsel %vm93, %v3131, 0.0
    %3144 = vadd.xlane.f32.xlu0 %v3143
    %v3145 = vpop.xlane.xlu0 %3144
    %v3146 = vsel %vm93, %v3132, 0.0
    %3147 = vadd.xlane.f32.xlu0 %v3146
    %v3148 = vpop.xlane.xlu0 %3147
    %v3149 = vsel %vm93, %v3133, 0.0
    %3150 = vadd.xlane.f32.xlu0 %v3149
    %v3151 = vpop.xlane.xlu0 %3150
    %v3152 = vmul.f32 %v3136, %v118
    %v3153 = vmul.f32 %v3139, %v118
    %v3154 = vmul.f32 %v3142, %v118
    %v3155 = vmul.f32 %v3145, %v118
    %v3156 = vmul.f32 %v3148, %v118
    %v3157 = vmul.f32 %v3151, %v118
    %v3158 = vadd.f32 %v3152, 1e-05
    %v3159 = vadd.f32 %v3153, 1e-05
    %v3160 = vadd.f32 %v3154, 1e-05
    %v3161 = vadd.f32 %v3155, 1e-05
    %v3162 = vadd.f32 %v3156, 1e-05
    %v3163 = vadd.f32 %v3157, 1e-05
    %v3164 = vrsqrt.pop %v3158
    %v3165 = vmul.f32 %v3164, %v3158
    %v3166 = vmul.f32 %v3165, %v3164
    %v3167 = vmul.f32 0.5, %v3166
    %v3168 = vsub.f32 1.5, %v3167
    %v3169 = vmul.f32 %v3164, %v3168
    %vm3170 = vweird.f32 %v3158
    %vm3171 = vweird.f32 %v3164
    %vm3172 = vmor %vm3170, %vm3171
    %v3173 = vsel %vm3172, %v3164, %v3169
    %v3174 = vrsqrt.pop %v3159
    %v3175 = vmul.f32 %v3174, %v3159
    %v3176 = vmul.f32 %v3175, %v3174
    %v3177 = vmul.f32 0.5, %v3176
    %v3178 = vsub.f32 1.5, %v3177
    %v3179 = vmul.f32 %v3174, %v3178
    %vm3180 = vweird.f32 %v3159
    %vm3181 = vweird.f32 %v3174
    %vm3182 = vmor %vm3180, %vm3181
    %v3183 = vsel %vm3182, %v3174, %v3179
    %v3184 = vrsqrt.pop %v3160
    %v3185 = vmul.f32 %v3184, %v3160
    %v3186 = vmul.f32 %v3185, %v3184
    %v3187 = vmul.f32 0.5, %v3186
    %v3188 = vsub.f32 1.5, %v3187
    %v3189 = vmul.f32 %v3184, %v3188
    %vm3190 = vweird.f32 %v3160
    %vm3191 = vweird.f32 %v3184
    %vm3192 = vmor %vm3190, %vm3191
    %v3193 = vsel %vm3192, %v3184, %v3189
    %v3194 = vrsqrt.pop %v3161
    %v3195 = vmul.f32 %v3194, %v3161
    %v3196 = vmul.f32 %v3195, %v3194
    %v3197 = vmul.f32 0.5, %v3196
    %v3198 = vsub.f32 1.5, %v3197
    %v3199 = vmul.f32 %v3194, %v3198
    %vm3200 = vweird.f32 %v3161
    %vm3201 = vweird.f32 %v3194
    %vm3202 = vmor %vm3200, %vm3201
    %v3203 = vsel %vm3202, %v3194, %v3199
    %v3204 = vrsqrt.pop %v3162
    %v3205 = vmul.f32 %v3204, %v3162
    %v3206 = vmul.f32 %v3205, %v3204
    %v3207 = vmul.f32 0.5, %v3206
    %v3208 = vsub.f32 1.5, %v3207
    %v3209 = vmul.f32 %v3204, %v3208
    %vm3210 = vweird.f32 %v3162
    %vm3211 = vweird.f32 %v3204
    %vm3212 = vmor %vm3210, %vm3211
    %v3213 = vsel %vm3212, %v3204, %v3209
    %v3214 = vrsqrt.pop %v3163
    %v3215 = vmul.f32 %v3214, %v3163
    %v3216 = vmul.f32 %v3215, %v3214
    %v3217 = vmul.f32 0.5, %v3216
    %v3218 = vsub.f32 1.5, %v3217
    %v3219 = vmul.f32 %v3214, %v3218
    %vm3220 = vweird.f32 %v3163
    %vm3221 = vweird.f32 %v3214
    %vm3222 = vmor %vm3220, %vm3221
    %v3223 = vsel %vm3222, %v3214, %v3219
    %v3224 = vmul.f32 %v3122, %v3173
    %v3225 = vmul.f32 %v3123, %v3183
    %v3226 = vmul.f32 %v3124, %v3193
    %v3227 = vmul.f32 %v3125, %v3203
    %v3228 = vmul.f32 %v3126, %v3213
    %v3229 = vmul.f32 %v3127, %v3223
    %v3230 = vperm.slane %v3096, 0
    %v3231 = vmul.f32 %v3224, %v3230
    %v3232 = vmul.f32 %v3225, %v3230
    %v3233 = vmul.f32 %v3226, %v3230
    %v3234 = vmul.f32 %v3227, %v3230
    %v3235 = vmul.f32 %v3228, %v3230
    %v3236 = vmul.f32 %v3229, %v3230
    %v3237 = vperm.slane %v3097, 0
    %v3238 = vadd.f32 %v3231, %v3237
    %v3239 = vadd.f32 %v3232, %v3237
    %v3240 = vadd.f32 %v3233, %v3237
    %v3241 = vadd.f32 %v3234, %v3237
    %v3242 = vadd.f32 %v3235, %v3237
    %v3243 = vadd.f32 %v3236, %v3237
    %v3244 = vld [vmem:[%s1 + $0x218] sm:$0xff]
    %v3245 = vld [vmem:[%s1 + $0x220] sm:$0xff]
    %v3246 = vld [vmem:[%s1 + $0x228] sm:$0xff]
    %v3247 = vld [vmem:[%s1 + $0x230] sm:$0xff]
    %v3248 = vpack.c.bf16 %v3239, %v3238
    %v3249 = vpack.c.bf16 %v3241, %v3240
    %v3250 = vpack.c.bf16 %v3243, %v3242
    %v3251 = vpack.c.bf16 %v3245, %v3244
    %v3252 = vpack.c.bf16 %v3247, %v3246
    %v3253 = vld [vmem:[%s1 + $0x76] sm:$0x1]
    %v3254 = vperm.slane %v3253, 0
    %v3256 = vsel %vm93, %v3248, 0
    %v3259 = vsel %vm93, %v3249, 0
    %v3262 = vsel %vm93, %v3250, 0
    %3264 = vmatpush.bf16.msra.mxu0 0
    %3265 = vmatpush.bf16.msra.mxu0 0
    %3266 = vmatpush.bf16.msra.mxu0 0
    %3267 = vmatpush.bf16.msra.mxu0 0
    %3268 = vmatpush.bf16.msra.mxu0 0
    %3269 = vmatpush.bf16.msra.mxu0 0
    %3270 = vmatpush.bf16.msra.mxu0 %v3252
    %3271 = vmatpush.bf16.msra.mxu0 %v3251
    %3272 = vmatmul.bf16.gmra.mxu0 %v3256
    %v3273 = vpop.f32.mrf.mxu0
    %v3274 = vadd.f32 %v3254, %v3273
    %v3275 = vpop.f32.mrf.mxu0
    %v3276 = vadd.f32 %v3254, %v3275
    %3277 = vmatmul.bf16.gmra.mxu0 %v3259
    %v3278 = vpop.f32.mrf.mxu0
    %v3279 = vadd.f32 %v3254, %v3278
    %v3280 = vpop.f32.mrf.mxu0
    %v3281 = vadd.f32 %v3254, %v3280
    %3282 = vmatmul.bf16.gmra.mxu0 %v3262
    %v3283 = vpop.f32.mrf.mxu0
    %v3284 = vadd.f32 %v3254, %v3283
    %v3285 = vpop.f32.mrf.mxu0
    %v3286 = vadd.f32 %v3254, %v3285
    %3287 = vdwg.mxu0
    %v3288 = vmul.f32 %v3274, 1.702
    %v3289 = vmul.f32 %v3276, 1.702
    %v3290 = vmul.f32 %v3279, 1.702
    %v3291 = vmul.f32 %v3281, 1.702
    %v3292 = vmul.f32 %v3284, 1.702
    %v3293 = vmul.f32 %v3286, 1.702
    %v3294 = vxor.u32 %v3288, 2147483648
    %v3295 = vxor.u32 %v3289, 2147483648
    %v3296 = vxor.u32 %v3290, 2147483648
    %v3297 = vxor.u32 %v3291, 2147483648
    %v3298 = vxor.u32 %v3292, 2147483648
    %v3299 = vxor.u32 %v3293, 2147483648
    %v3300 = vmul.f32 %v3294, 1.442695
    %v3301 = vpow.pop %v3300
    %v3302 = vmul.f32 %v3295, 1.442695
    %v3303 = vpow.pop %v3302
    %v3304 = vmul.f32 %v3296, 1.442695
    %v3305 = vpow.pop %v3304
    %v3306 = vmul.f32 %v3297, 1.442695
    %v3307 = vpow.pop %v3306
    %v3308 = vmul.f32 %v3298, 1.442695
    %v3309 = vpow.pop %v3308
    %v3310 = vmul.f32 %v3299, 1.442695
    %v3311 = vpow.pop %v3310
    %v3312 = vadd.f32 %v3301, 1.0
    %v3313 = vadd.f32 %v3303, 1.0
    %v3314 = vadd.f32 %v3305, 1.0
    %v3315 = vadd.f32 %v3307, 1.0
    %v3316 = vadd.f32 %v3309, 1.0
    %v3317 = vadd.f32 %v3311, 1.0
    %v3318 = vrcp.pop %v3312
    %v3319 = vmul.f32 %v3312, %v3318
    %v3320 = vsub.f32 1.0, %v3319
    %v3321 = vmul.f32 %v3318, %v3320
    %v3322 = vadd.f32 %v3318, %v3321
    %vm3323 = vweird.f32 %v3312
    %vm3324 = vweird.f32 %v3318
    %vm3325 = vmor %vm3323, %vm3324
    %v3326 = vsel %vm3325, %v3318, %v3322
    %v3327 = vand.u32 2147483647, %v3312
    %vm3328 = vcmp.eq.f32.partialorder %v3327, 8.507059e+37
    %v3329 = vand.u32 %v3312, 2147483648
    %v3330 = vor.u32 1.1754944e-38, %v3329
    %v3331 = vsel %vm3328, %v3330, %v3326
    %v3332 = vmul.f32 1.0, %v3331
    %v3333 = vrcp.pop %v3313
    %v3334 = vmul.f32 %v3313, %v3333
    %v3335 = vsub.f32 1.0, %v3334
    %v3336 = vmul.f32 %v3333, %v3335
    %v3337 = vadd.f32 %v3333, %v3336
    %vm3338 = vweird.f32 %v3313
    %vm3339 = vweird.f32 %v3333
    %vm3340 = vmor %vm3338, %vm3339
    %v3341 = vsel %vm3340, %v3333, %v3337
    %v3342 = vand.u32 2147483647, %v3313
    %vm3343 = vcmp.eq.f32.partialorder %v3342, 8.507059e+37
    %v3344 = vand.u32 %v3313, 2147483648
    %v3345 = vor.u32 1.1754944e-38, %v3344
    %v3346 = vsel %vm3343, %v3345, %v3341
    %v3347 = vmul.f32 1.0, %v3346
    %v3348 = vrcp.pop %v3314
    %v3349 = vmul.f32 %v3314, %v3348
    %v3350 = vsub.f32 1.0, %v3349
    %v3351 = vmul.f32 %v3348, %v3350
    %v3352 = vadd.f32 %v3348, %v3351
    %vm3353 = vweird.f32 %v3314
    %vm3354 = vweird.f32 %v3348
    %vm3355 = vmor %vm3353, %vm3354
    %v3356 = vsel %vm3355, %v3348, %v3352
    %v3357 = vand.u32 2147483647, %v3314
    %vm3358 = vcmp.eq.f32.partialorder %v3357, 8.507059e+37
    %v3359 = vand.u32 %v3314, 2147483648
    %v3360 = vor.u32 1.1754944e-38, %v3359
    %v3361 = vsel %vm3358, %v3360, %v3356
    %v3362 = vmul.f32 1.0, %v3361
    %v3363 = vrcp.pop %v3315
    %v3364 = vmul.f32 %v3315, %v3363
    %v3365 = vsub.f32 1.0, %v3364
    %v3366 = vmul.f32 %v3363, %v3365
    %v3367 = vadd.f32 %v3363, %v3366
    %vm3368 = vweird.f32 %v3315
    %vm3369 = vweird.f32 %v3363
    %vm3370 = vmor %vm3368, %vm3369
    %v3371 = vsel %vm3370, %v3363, %v3367
    %v3372 = vand.u32 2147483647, %v3315
    %vm3373 = vcmp.eq.f32.partialorder %v3372, 8.507059e+37
    %v3374 = vand.u32 %v3315, 2147483648
    %v3375 = vor.u32 1.1754944e-38, %v3374
    %v3376 = vsel %vm3373, %v3375, %v3371
    %v3377 = vmul.f32 1.0, %v3376
    %v3378 = vrcp.pop %v3316
    %v3379 = vmul.f32 %v3316, %v3378
    %v3380 = vsub.f32 1.0, %v3379
    %v3381 = vmul.f32 %v3378, %v3380
    %v3382 = vadd.f32 %v3378, %v3381
    %vm3383 = vweird.f32 %v3316
    %vm3384 = vweird.f32 %v3378
    %vm3385 = vmor %vm3383, %vm3384
    %v3386 = vsel %vm3385, %v3378, %v3382
    %v3387 = vand.u32 2147483647, %v3316
    %vm3388 = vcmp.eq.f32.partialorder %v3387, 8.507059e+37
    %v3389 = vand.u32 %v3316, 2147483648
    %v3390 = vor.u32 1.1754944e-38, %v3389
    %v3391 = vsel %vm3388, %v3390, %v3386
    %v3392 = vmul.f32 1.0, %v3391
    %v3393 = vrcp.pop %v3317
    %v3394 = vmul.f32 %v3317, %v3393
    %v3395 = vsub.f32 1.0, %v3394
    %v3396 = vmul.f32 %v3393, %v3395
    %v3397 = vadd.f32 %v3393, %v3396
    %vm3398 = vweird.f32 %v3317
    %vm3399 = vweird.f32 %v3393
    %vm3400 = vmor %vm3398, %vm3399
    %v3401 = vsel %vm3400, %v3393, %v3397
    %v3402 = vand.u32 2147483647, %v3317
    %vm3403 = vcmp.eq.f32.partialorder %v3402, 8.507059e+37
    %v3404 = vand.u32 %v3317, 2147483648
    %v3405 = vor.u32 1.1754944e-38, %v3404
    %v3406 = vsel %vm3403, %v3405, %v3401
    %v3407 = vmul.f32 1.0, %v3406
    %v3408 = vmul.f32 %v3274, %v3332
    %v3409 = vmul.f32 %v3276, %v3347
    %v3410 = vmul.f32 %v3279, %v3362
    %v3411 = vmul.f32 %v3281, %v3377
    %v3412 = vmul.f32 %v3284, %v3392
    %v3413 = vmul.f32 %v3286, %v3407
    %v3414 = vld [vmem:[%s1 + $0x238] sm:$0xff]
    %v3415 = vld [vmem:[%s1 + $0x240] sm:$0xff]
    %v3416 = vld [vmem:[%s1 + $0x248] sm:$0xff]
    %v3417 = vld [vmem:[%s1 + $0x250] sm:$0xff]
    %v3418 = vld [vmem:[%s1 + $0x258] sm:$0xff]
    %v3419 = vld [vmem:[%s1 + $0x260] sm:$0xff]
    %v3420 = vld [vmem:[%s1 + $0x268] sm:$0xff]
    %v3421 = vld [vmem:[%s1 + $0x270] sm:$0xff]
    %v3422 = vld [vmem:[%s1 + $0x278] sm:$0xff]
    %v3423 = vld [vmem:[%s1 + $0x280] sm:$0xff]
    %v3424 = vld [vmem:[%s1 + $0x288] sm:$0xff]
    %v3425 = vld [vmem:[%s1 + $0x290] sm:$0xff]
    %v3426 = vld [vmem:[%s1 + $0x298] sm:$0xff]
    %v3427 = vld [vmem:[%s1 + $0x2a0] sm:$0xff]
    %v3428 = vld [vmem:[%s1 + $0x2a8] sm:$0xff]
    %v3429 = vld [vmem:[%s1 + $0x2b0] sm:$0xff]
    %v3430 = vpack.c.bf16 %v3409, %v3408
    %v3431 = vpack.c.bf16 %v3411, %v3410
    %v3432 = vpack.c.bf16 %v3413, %v3412
    %v3433 = vpack.c.bf16 %v3415, %v3414
    %v3434 = vpack.c.bf16 %v3417, %v3416
    %v3435 = vpack.c.bf16 %v3419, %v3418
    %v3436 = vpack.c.bf16 %v3421, %v3420
    %v3437 = vpack.c.bf16 %v3423, %v3422
    %v3438 = vpack.c.bf16 %v3425, %v3424
    %v3439 = vpack.c.bf16 %v3427, %v3426
    %v3440 = vpack.c.bf16 %v3429, %v3428
    %3441 = vmatpush.bf16.msra.mxu0 %v3440
    %3442 = vmatpush.bf16.msra.mxu0 %v3439
    %3443 = vmatpush.bf16.msra.mxu0 %v3438
    %3444 = vmatpush.bf16.msra.mxu0 %v3437
    %3445 = vmatpush.bf16.msra.mxu0 %v3436
    %3446 = vmatpush.bf16.msra.mxu0 %v3435
    %3447 = vmatpush.bf16.msra.mxu0 %v3434
    %3448 = vmatpush.bf16.msra.mxu0 %v3433
    %3449 = vmatmul.bf16.gmra.mxu0 %v3430
    %v3450 = vpop.f32.mrf.mxu0
    %v3451 = vadd.f32 0.0, %v3450
    %v3452 = vpop.f32.mrf.mxu0
    %3453 = vmatmul.bf16.gmra.mxu0 %v3431
    %v3454 = vpop.f32.mrf.mxu0
    %v3455 = vpop.f32.mrf.mxu0
    %v3456 = vadd.f32 0.0, %v3455
    %3457 = vmatmul.bf16.gmra.mxu0 %v3432
    %v3458 = vpop.f32.mrf.mxu0
    %v3459 = vpop.f32.mrf.mxu0
    %3460 = vdwg.mxu0
    %v3461 = vadd.f32 %v3090, %v3451
    %v3462 = vadd.f32 %v3093, %v3456
    %v3463 = vld [vmem:[%s1 + $0x77] sm:$0x1]
    %v3464 = vperm.slane %v3463, 0
    %v3465 = vadd.f32 %v3461, %v3464
    %v3466 = vadd.f32 %v3462, %v3464
    %v3468 = vrot.slane %v3466, 7
    %vm3470 = vcmask 1040384
    %v3471 = vsel %vm3470, %v3465, %v3468
    %v3472 = vld [vmem:[%s1 + $0x62] sm:$0x1]
    %v3473 = vld [vmem:[%s1 + $0x63] sm:$0x1]
    %vm3474 = vcmask 254976
    %v3475 = vsel %vm3474, %v3471, 0.0
    %3476 = vadd.xlane.f32.xlu0 %v3475
    %v3477 = vpop.xlane.xlu0 %3476
    %v3478 = vmul.f32 %v3477, %v118
    %v3479 = vsub.f32 %v3471, %v3478
    %v3480 = vmul.f32 %v3479, %v3479
    %v3481 = vsel %vm3474, %v3480, 0.0
    %3482 = vadd.xlane.f32.xlu0 %v3481
    %v3483 = vpop.xlane.xlu0 %3482
    %v3484 = vmul.f32 %v3483, %v118
    %v3485 = vadd.f32 %v3484, 1e-05
    %v3486 = vrsqrt.pop %v3485
    %v3487 = vmul.f32 %v3486, %v3485
    %v3488 = vmul.f32 %v3487, %v3486
    %v3489 = vmul.f32 0.5, %v3488
    %v3490 = vsub.f32 1.5, %v3489
    %v3491 = vmul.f32 %v3486, %v3490
    %vm3492 = vweird.f32 %v3485
    %vm3493 = vweird.f32 %v3486
    %vm3494 = vmor %vm3492, %vm3493
    %v3495 = vsel %vm3494, %v3486, %v3491
    %v3496 = vmul.f32 %v3479, %v3495
    %v3497 = vperm.slane %v3472, 0
    %v3498 = vmul.f32 %v3496, %v3497
    %v3499 = vperm.slane %v3473, 0
    %v3500 = vadd.f32 %v3498, %v3499
    %v3501 = vld [vmem:[%s1 + $0x2b8] sm:$0xff]
    %v3502 = vld [vmem:[%s1 + $0x2c0] sm:$0xff]
    %v3503 = vld [vmem:[%s1 + $0x2c8] sm:$0xff]
    %v3504 = vld [vmem:[%s1 + $0x2d0] sm:$0xff]
    %v3505 = vpack.c.bf16 %v3500, %v3500
    %v3506 = vpack.c.bf16 %v3502, %v3501
    %v3507 = vpack.c.bf16 %v3504, %v3503
    %v3509 = vsel %vm93, %v3505, 0
    %3511 = vmatpush.bf16.msra.mxu0 0
    %3512 = vmatpush.bf16.msra.mxu0 0
    %3513 = vmatpush.bf16.msra.mxu0 0
    %3514 = vmatpush.bf16.msra.mxu0 0
    %3515 = vmatpush.bf16.msra.mxu0 0
    %3516 = vmatpush.bf16.msra.mxu0 0
    %3517 = vmatpush.bf16.msra.mxu0 %v3507
    %3518 = vmatpush.bf16.msra.mxu0 %v3506
    %3519 = vmatmul.bf16.gmra.mxu0 %v3509
    %v3520 = vpop.f32.mrf.mxu0
    %v3521 = vadd.f32 0.0, %v3520
    %v3522 = vpop.f32.mrf.mxu0
    %3523 = vdwg.mxu0
    %v3524 = vld [vmem:[%s1 + $0x2d8] sm:$0xff]
    %v3525 = vld [vmem:[%s1 + $0x2e0] sm:$0xff]
    %v3526 = vld [vmem:[%s1 + $0x2e8] sm:$0xff]
    %v3527 = vld [vmem:[%s1 + $0x2f0] sm:$0xff]
    %v3528 = vpack.c.bf16 %v3521, %v3521
    %v3529 = vpack.c.bf16 %v3525, %v3524
    %v3530 = vpack.c.bf16 %v3527, %v3526
    %v3532 = vsel %vm93, %v3528, 0
    %3534 = vmatpush.bf16.msra.mxu0 0
    %3535 = vmatpush.bf16.msra.mxu0 0
    %3536 = vmatpush.bf16.msra.mxu0 0
    %3537 = vmatpush.bf16.msra.mxu0 0
    %3538 = vmatpush.bf16.msra.mxu0 0
    %3539 = vmatpush.bf16.msra.mxu0 0
    %3540 = vmatpush.bf16.msra.mxu0 %v3530
    %3541 = vmatpush.bf16.msra.mxu0 %v3529
    %3542 = vmatmul.bf16.gmra.mxu0 %v3532
    %v3543 = vpop.f32.mrf.mxu0
    %v3544 = vadd.f32 0.0, %v3543
    %v3545 = vpop.f32.mrf.mxu0
    %3546 = vdwg.mxu0
    %vm3547 = vcmask 517120
    %3548 = vst.msk [vmem:[#allocation2] sm:$0x3] %vm3547, %v3544
    // Predicated region
    $region10: #{forward.1} parent=1 // pred_check
      _
    $region11: #{forward.1} parent=1 // pred_check_branch
      %3550 = sbr.rel (0) target = $region13
    $region12: #{forward.1} parent=1 // pred_region
      %3552 = vsyncadd [#allocation3], 0
      %s3554 = sshll.u32 [#allocation2], 4
      %s3555 = int_to_ptr.vmem [resolvable:$true] %s3554
      %s3556 = sshll.u32 %s2, 4
      %s3557 = int_to_ptr.hbm [resolvable:$true] %s3556
      %3559 = dma.vmem_to_hbm [thread:$0]  %s3555, 32, %s3557, [#allocation3]
    $region13: #{forward.1} parent=1 // pred_fallthru
      _
    // Predicated region
    $region14: #{forward.1} parent=1 // pred_check
      _
    $region15: #{forward.1} parent=1 // pred_check_branch
      %3561 = sbr.rel (0) target = $region17
    $region16: #{forward.1} parent=1 // pred_region
      %3563 = dma.done [#allocation3], 32
    $region17: #{forward.1} parent=1 // pred_fallthru
      _
    %3564 = vsyncpa [#allocation3], 1

</llo_original>
